<compile_context>
chip_gen: v7x
topology: tpu7x:2x2x1
jax: 0.10.0
libtpu: 0.0.40
codegen_flags: <defaults>
</compile_context>

<pallas_src>
import functools

import jax
import jax.numpy as jnp
import numpy as np
from jax.experimental import pallas as pl
from jax.experimental.pallas import tpu as pltpu


# ----------------------------------------------------------------------------
# Host-side constant / weight-matrix builders (all tiny; run under jit).
# ----------------------------------------------------------------------------
def _build_h_matrices(H):
    """(6, H, H): [shift_up, shift_dn, FH_r, FH_i, IFH_r, IFH_i]."""
    m = np.arange(H)[:, None]
    h = np.arange(H)[None, :]
    ang = 2.0 * np.pi * m * h / H
    hm = np.stack([
        np.eye(H, k=-1),            # row h -> x[h-1]   (zero row at h=0)
        np.eye(H, k=1),             # row h -> x[h+1]   (zero row at h=H-1)
        np.cos(ang), -np.sin(ang),  # forward DFT over H (norm='backward')
        np.cos(ang) / H, np.sin(ang) / H,   # inverse DFT over H (1/H)
    ]).astype(np.float32)
    return jnp.asarray(hm)


def _build_w_dft_matrices(W, Ci):
    """Channel-batched (via kron with I_Ci) W-direction rDFT / C2R matrices."""
    Wf = W // 2 + 1
    w = np.arange(W)[:, None]
    k = np.arange(Wf)[None, :]
    ang = 2.0 * np.pi * w * k / W
    ewr, ewi = np.cos(ang), -np.sin(ang)               # (W, Wf) forward rDFT
    c = np.full((Wf,), 2.0)
    c[0] = 1.0
    if W % 2 == 0:
        c[-1] = 1.0                                    # DC / Nyquist once
    kk = np.arange(Wf)[:, None]
    ww = np.arange(W)[None, :]
    angi = 2.0 * np.pi * kk * ww / W
    cw = c[:, None] * np.cos(angi) / W                 # (Wf, W) C2R cos part
    sw = c[:, None] * np.sin(angi) / W                 # (Wf, W) C2R sin part
    eye = np.eye(Ci)
    ewk = np.stack([np.kron(ewr, eye), np.kron(ewi, eye)]).astype(np.float32)
    cswk = np.stack([np.kron(cw, eye), np.kron(sw, eye)]).astype(np.float32)
    return jnp.asarray(ewk), jnp.asarray(cswk)         # (2,W*Ci,Wf*Ci), (2,Wf*Ci,W*Ci)


def _conv_row_matrix(k_hwio, W):
    """Banded matrix A (3*W*Cin, W*Cout) for a 3x3 'same' conv acting on rows
    RI[h] = [x[h-1] | x[h] | x[h+1]], each row W-interleaved (lane = w*Cin+ci)."""
    Cin, Cout = k_hwio.shape[2], k_hwio.shape[3]
    s = np.zeros((3, W, W), np.float32)                # s[dx, p, w]: p == w+dx-1
    for dx in range(3):
        for w in range(W):
            p = w + dx - 1
            if 0 <= p < W:
                s[dx, p, w] = 1.0
    a = jnp.einsum('dxio,xpw->dpiwo', k_hwio, jnp.asarray(s))
    return a.reshape(3 * W * Cin, W * Cout)


def _chan_row(v, reps):
    """Per-channel vector -> (1, reps*len(v)) W-interleaved broadcast row."""
    return jnp.tile(v, reps)[None, :].astype(jnp.float32)


# ----------------------------------------------------------------------------
# Fused FastFC kernel (one batch element per grid step).
# ----------------------------------------------------------------------------
def _make_fastfc_kernel(W, C):
    L = W * C
    f32 = jnp.float32

    def kernel(xl_ref, xg_ref, hm_ref,
               a_llg_ref, b_llg_ref, a_gl_ref, b_gl_ref,
               s1_ref, h1_ref, al1_ref,
               m_in_ref, b_in_ref, a_in_ref,
               ewk_ref, m_mid_ref, b_mid_ref, a_mid_ref,
               cswk_ref, m_out_ref, b_out_ref,
               s2_ref, h2_ref, al2_ref,
               a_fl_ref, a_fg_ref, b_fin_ref,
               out_ref, olg_ref):
        dot = lambda a, b: jnp.dot(a, b, preferred_element_type=f32)
        prelu = lambda v, a: jnp.where(v >= 0, v, a * v)

        x_loc = xl_ref[0].astype(f32)                  # (H, W*C)
        x_glo = xg_ref[0].astype(f32)                  # (H, W*C)
        sh_up, sh_dn = hm_ref[0], hm_ref[1]
        fhr, fhi = hm_ref[2], hm_ref[3]
        ifhr, ifhi = hm_ref[4], hm_ref[5]

        def rows3(x):                                  # (H, n) -> (H, 3n)
            return jnp.concatenate([dot(sh_up, x), x, dot(sh_dn, x)], axis=1)

        # ---- three 3x3 'same' convs; conv_ll & conv_lg fused in one matmul ----
        ri_l = rows3(x_loc)                            # (H, 3*W*C)
        ri_g = rows3(x_glo)
        y_l = dot(ri_l, a_llg_ref[...]) + b_llg_ref[...]   # (H, 2*W*C)
        x_ll = y_l[:, :L]
        x_lg = y_l[:, L:]
        x_gl = dot(ri_g, a_gl_ref[...]) + b_gl_ref[...]    # (H, W*C)

        # ---- out_loc = PReLU(BN(x_ll + x_gl)) + x_loc ----
        t1 = (x_ll + x_gl) * s1_ref[...] + h1_ref[...]
        out_loc = prelu(t1, al1_ref[...]) + x_loc

        # ---- Spectra(x_glo): inConv -> rfft2 -> midConv -> irfft2 -> outConv ----
        y = prelu(dot(x_glo, m_in_ref[...]) + b_in_ref[...], a_in_ref[...])  # (H, W*Ci)
        tr = dot(y, ewk_ref[0])                        # (H, Wf*Ci)  rDFT over W
        ti = dot(y, ewk_ref[1])
        zr = dot(fhr, tr) - dot(fhi, ti)               # DFT over H (all channels at once)
        zi = dot(fhr, ti) + dot(fhi, tr)
        mr = prelu(dot(zr, m_mid_ref[...]) + b_mid_ref[...], a_mid_ref[...])
        mi = prelu(dot(zi, m_mid_ref[...]) + b_mid_ref[...], a_mid_ref[...])
        gr = dot(ifhr, mr) - dot(ifhi, mi)             # inverse DFT over H
        gi = dot(ifhr, mi) + dot(ifhi, mr)
        sp = dot(gr, cswk_ref[0]) - dot(gi, cswk_ref[1])   # C2R over W -> (H, W*Ci)
        x_gg = dot(sp + y, m_out_ref[...]) + b_out_ref[...]  # outConv, + skip inside

        # ---- out_glo = PReLU(BN(x_gg + x_lg)) + x_glo ----
        t2 = (x_gg + x_lg) * s2_ref[...] + h2_ref[...]
        out_glo = prelu(t2, al2_ref[...]) + x_glo

        # ---- final 3x3 conv on cat(out_loc, out_glo) ----
        out_fin = (dot(rows3(out_loc), a_fl_ref[...])
                   + dot(rows3(out_glo), a_fg_ref[...]) + b_fin_ref[...])

        out_ref[0] = out_fin.astype(out_ref.dtype)                             # 128 lanes
        olg_ref[0] = jnp.concatenate([out_loc, out_glo], axis=1).astype(olg_ref.dtype)

    return kernel


def _const_spec(shape):
    nd = len(shape)
    return pl.BlockSpec(shape, lambda i, _nd=nd: (0,) * _nd)


# ----------------------------------------------------------------------------
# FastFC forward (NCHW in / NCHW out, like the PyTorch module)
# ----------------------------------------------------------------------------
def fastfc_forward(x_nchw, params):
    p = params
    B, cin_total, H, W = x_nchw.shape
    C = cin_total // 2
    Ci = p['spectra']['w_in'].shape[0]
    Cout = p['w_final'].shape[-1]
    Wf = W // 2 + 1
    L, Li, Lf = W * C, W * Ci, Wf * Ci
    f32 = jnp.float32

    # ---- inputs in flattened NHWC ("W-interleaved channel") layout ----
    x_nhwc = jnp.transpose(x_nchw, (0, 2, 3, 1))
    x_loc = x_nhwc[..., :C]
    # odd in_depth: channel `mid` is dropped, exactly as in the torch code.
    x_glo = x_nhwc[..., C + 1:] if (cin_total % 2) else x_nhwc[..., C:]
    xl = x_loc.reshape(B, H, L).astype(f32)
    xg = x_glo.reshape(B, H, L).astype(f32)

    # ---- constant matrices ----
    hmats = _build_h_matrices(H)                       # (6, H, H)
    ewk, cswk = _build_w_dft_matrices(W, Ci)           # (2, Li, Lf), (2, Lf, Li)

    # ---- banded 3x3-conv matrices (all 9 taps in one matmul) ----
    a_llg = jnp.concatenate([_conv_row_matrix(p['w_ll'], W),
                             _conv_row_matrix(p['w_lg'], W)], axis=1)
    b_llg = jnp.concatenate([jnp.tile(p['b_ll'], W),
                             jnp.tile(p['b_lg'], W)])[None, :].astype(f32)
    a_gl = _conv_row_matrix(p['w_gl'], W)
    b_gl = _chan_row(p['b_gl'], W)
    a_fl = _conv_row_matrix(p['w_final'][:, :, :C, :], W)
    a_fg = _conv_row_matrix(p['w_final'][:, :, C:, :], W)
    b_fin = _chan_row(p['b_final'], W)

    # ---- BN (folded) / PReLU broadcast rows ----
    s1, h1, al1 = (_chan_row(p['bn1_scale'], W), _chan_row(p['bn1_shift'], W),
                   _chan_row(p['alpha1'], W))
    s2, h2, al2 = (_chan_row(p['bn2_scale'], W), _chan_row(p['bn2_shift'], W),
                   _chan_row(p['alpha2'], W))

    # ---- Spectra 1x1-conv block matrices (BN already folded into weights) ----
    sp = p['spectra']
    m_in = jnp.kron(jnp.eye(W, dtype=f32), sp['w_in'].T)      # (L, Li)
    b_in, a_in = _chan_row(sp['b_in'], W), _chan_row(sp['a1'], W)
    m_mid = jnp.kron(jnp.eye(Wf, dtype=f32), sp['w_mid'].T)   # (Lf, Lf)
    b_mid, a_mid = _chan_row(sp['b_mid'], Wf), _chan_row(sp['a2'], Wf)
    m_out = jnp.kron(jnp.eye(W, dtype=f32), sp['w_out'].T)    # (Li, L)
    b_out = _chan_row(sp['b_out'], W)

    kernel = _make_fastfc_kernel(W, C)
    batch_spec = lambda last: pl.BlockSpec((1, H, last), lambda i: (i, 0, 0))
    cs = _const_spec

    out, olg = pl.pallas_call(
        kernel,
        out_shape=(
            jax.ShapeDtypeStruct((B, H, W * Cout), x_nchw.dtype),
            jax.ShapeDtypeStruct((B, H, 2 * L), x_nchw.dtype),
        ),
        grid=(B,),
        in_specs=[
            batch_spec(L), batch_spec(L), cs((6, H, H)),
            cs((3 * L, 2 * L)), cs((1, 2 * L)), cs((3 * L, L)), cs((1, L)),
            cs((1, L)), cs((1, L)), cs((1, L)),
            cs((L, Li)), cs((1, Li)), cs((1, Li)),
            cs((2, Li, Lf)), cs((Lf, Lf)), cs((1, Lf)), cs((1, Lf)),
            cs((2, Lf, Li)), cs((Li, L)), cs((1, L)),
            cs((1, L)), cs((1, L)), cs((1, L)),
            cs((3 * L, W * Cout)), cs((3 * L, W * Cout)), cs((1, W * Cout)),
        ],
        out_specs=(batch_spec(W * Cout), batch_spec(2 * L)),
        compiler_params=pltpu.CompilerParams(
            dimension_semantics=("parallel",)),
    )(xl, xg, hmats, a_llg, b_llg, a_gl, b_gl, s1, h1, al1,
      m_in, b_in, a_in, ewk, m_mid, b_mid, a_mid, cswk, m_out, b_out,
      s2, h2, al2, a_fl, a_fg, b_fin)

    out = jnp.transpose(out.reshape(B, H, W, Cout), (0, 3, 1, 2))
    out_loc = jnp.transpose(olg[..., :L].reshape(B, H, W, C), (0, 3, 1, 2))
    out_glo = jnp.transpose(olg[..., L:].reshape(B, H, W, C), (0, 3, 1, 2))
    return out, out_loc, out_glo


# ----------------------------------------------------------------------------
# Deterministic parameter initialization (synthetic, no checkpoints).
# Conv weights are HWIO; BatchNorm running stats are folded (inference mode).
# ----------------------------------------------------------------------------
def _fold_bn(gamma, beta, mean, var, eps=1e-5):
    scale = gamma / jnp.sqrt(var + eps)
    shift = beta - scale * mean
    return scale, shift


def init_params(key, in_depth, out_depth):
    C = in_depth // 2
    Ci = C // 2 if C >= 2 else C
    keys = iter(jax.random.split(key, 64))

    def nrm(shape, s=0.1):
        return s * jax.random.normal(next(keys), shape, jnp.float32)

    def bn(ch):
        gamma = 1.0 + nrm((ch,))
        beta = nrm((ch,))
        mean = nrm((ch,))
        var = 0.5 + jax.random.uniform(next(keys), (ch,), jnp.float32)
        return _fold_bn(gamma, beta, mean, var)

    p = {
        'w_ll': nrm((3, 3, C, C)), 'b_ll': nrm((C,)),
        'w_lg': nrm((3, 3, C, C)), 'b_lg': nrm((C,)),
        'w_gl': nrm((3, 3, C, C)), 'b_gl': nrm((C,)),
        'w_final': nrm((3, 3, 2 * C, out_depth)), 'b_final': nrm((out_depth,)),
        'alpha1': jnp.full((C,), 0.25, jnp.float32),   # PReLU default init
        'alpha2': jnp.full((C,), 0.25, jnp.float32),
    }
    p['bn1_scale'], p['bn1_shift'] = bn(C)
    p['bn2_scale'], p['bn2_shift'] = bn(C)

    # Spectra: fold the BN that follows each 1x1 conv into the conv weights.
    w_in, b_in = nrm((Ci, C)), nrm((Ci,))
    s_in, sh_in = bn(Ci)
    w_mid, b_mid = nrm((Ci, Ci)), nrm((Ci,))
    s_mid, sh_mid = bn(Ci)
    p['spectra'] = {
        'w_in': w_in * s_in[:, None], 'b_in': s_in * b_in + sh_in,
        'a1': jnp.full((Ci,), 0.25, jnp.float32),
        'w_mid': w_mid * s_mid[:, None], 'b_mid': s_mid * b_mid + sh_mid,
        'a2': jnp.full((Ci,), 0.25, jnp.float32),
        'w_out': nrm((C, Ci)), 'b_out': nrm((C,)),
    }
    return p


if __name__ == "__main__":
    B, in_depth, out_depth, H, W = 2, 8, 8, 16, 16
    key = jax.random.PRNGKey(0)
    kp, kx = jax.random.split(key)
    params = init_params(kp, in_depth, out_depth)
    x = jax.random.normal(kx, (B, in_depth, H, W), jnp.float32)

    fwd = jax.jit(functools.partial(fastfc_forward, params=params))
    out, out_loc, out_glo = fwd(x)
    jax.block_until_ready((out, out_loc, out_glo))

    assert out.shape == (B, out_depth, H, W)
    assert out_loc.shape == (B, in_depth // 2, H, W)
    assert out_glo.shape == (B, in_depth // 2, H, W)
    assert bool(jnp.all(jnp.isfinite(out)))
    assert bool(jnp.all(jnp.isfinite(out_loc)))
    assert bool(jnp.all(jnp.isfinite(out_glo)))
    print("KERNEL_OK")
</pallas_src>

<mosaic_0001>
module attributes {stable_mosaic.version = 11 : i64} {
  func.func @kernel(%arg0: i32, %arg1: memref<1x16x64xf32, #tpu.memory_space<vmem>>, %arg2: memref<1x16x64xf32, #tpu.memory_space<vmem>>, %arg3: memref<6x16x16xf32, #tpu.memory_space<vmem>>, %arg4: memref<192x128xf32, #tpu.memory_space<vmem>>, %arg5: memref<1x128xf32, #tpu.memory_space<vmem>>, %arg6: memref<192x64xf32, #tpu.memory_space<vmem>>, %arg7: memref<1x64xf32, #tpu.memory_space<vmem>>, %arg8: memref<1x64xf32, #tpu.memory_space<vmem>>, %arg9: memref<1x64xf32, #tpu.memory_space<vmem>>, %arg10: memref<1x64xf32, #tpu.memory_space<vmem>>, %arg11: memref<64x32xf32, #tpu.memory_space<vmem>>, %arg12: memref<1x32xf32, #tpu.memory_space<vmem>>, %arg13: memref<1x32xf32, #tpu.memory_space<vmem>>, %arg14: memref<2x32x18xf32, #tpu.memory_space<vmem>>, %arg15: memref<18x18xf32, #tpu.memory_space<vmem>>, %arg16: memref<1x18xf32, #tpu.memory_space<vmem>>, %arg17: memref<1x18xf32, #tpu.memory_space<vmem>>, %arg18: memref<2x18x32xf32, #tpu.memory_space<vmem>>, %arg19: memref<32x64xf32, #tpu.memory_space<vmem>>, %arg20: memref<1x64xf32, #tpu.memory_space<vmem>>, %arg21: memref<1x64xf32, #tpu.memory_space<vmem>>, %arg22: memref<1x64xf32, #tpu.memory_space<vmem>>, %arg23: memref<1x64xf32, #tpu.memory_space<vmem>>, %arg24: memref<192x128xf32, #tpu.memory_space<vmem>>, %arg25: memref<192x128xf32, #tpu.memory_space<vmem>>, %arg26: memref<1x128xf32, #tpu.memory_space<vmem>>, %arg27: memref<1x16x128xf32, #tpu.memory_space<vmem>>, %arg28: memref<1x16x128xf32, #tpu.memory_space<vmem>>) attributes {dimension_semantics = [#tpu.dimension_semantics<parallel>], iteration_bounds = array<i64: 2>, scalar_prefetch = 0 : i64, scratch_operands = 0 : i64, tpu.core_type = #tpu.core_type<tc>, window_params = [{transform_indices = @transform_0, window_bounds = array<i64: 1, 16, 64>}, {transform_indices = @transform_1, window_bounds = array<i64: 1, 16, 64>}, {pipeline_mode = #tpu.pipeline_mode<synchronous>, transform_indices = @transform_2, window_bounds = array<i64: 6, 16, 16>}, {pipeline_mode = #tpu.pipeline_mode<synchronous>, transform_indices = @transform_3, window_bounds = array<i64: 192, 128>}, {pipeline_mode = #tpu.pipeline_mode<synchronous>, transform_indices = @transform_4, window_bounds = array<i64: 1, 128>}, {pipeline_mode = #tpu.pipeline_mode<synchronous>, transform_indices = @transform_5, window_bounds = array<i64: 192, 64>}, {pipeline_mode = #tpu.pipeline_mode<synchronous>, transform_indices = @transform_6, window_bounds = array<i64: 1, 64>}, {pipeline_mode = #tpu.pipeline_mode<synchronous>, transform_indices = @transform_7, window_bounds = array<i64: 1, 64>}, {pipeline_mode = #tpu.pipeline_mode<synchronous>, transform_indices = @transform_8, window_bounds = array<i64: 1, 64>}, {pipeline_mode = #tpu.pipeline_mode<synchronous>, transform_indices = @transform_9, window_bounds = array<i64: 1, 64>}, {pipeline_mode = #tpu.pipeline_mode<synchronous>, transform_indices = @transform_10, window_bounds = array<i64: 64, 32>}, {pipeline_mode = #tpu.pipeline_mode<synchronous>, transform_indices = @transform_11, window_bounds = array<i64: 1, 32>}, {pipeline_mode = #tpu.pipeline_mode<synchronous>, transform_indices = @transform_12, window_bounds = array<i64: 1, 32>}, {pipeline_mode = #tpu.pipeline_mode<synchronous>, transform_indices = @transform_13, window_bounds = array<i64: 2, 32, 18>}, {pipeline_mode = #tpu.pipeline_mode<synchronous>, transform_indices = @transform_14, window_bounds = array<i64: 18, 18>}, {pipeline_mode = #tpu.pipeline_mode<synchronous>, transform_indices = @transform_15, window_bounds = array<i64: 1, 18>}, {pipeline_mode = #tpu.pipeline_mode<synchronous>, transform_indices = @transform_16, window_bounds = array<i64: 1, 18>}, {pipeline_mode = #tpu.pipeline_mode<synchronous>, transform_indices = @transform_17, window_bounds = array<i64: 2, 18, 32>}, {pipeline_mode = #tpu.pipeline_mode<synchronous>, transform_indices = @transform_18, window_bounds = array<i64: 32, 64>}, {pipeline_mode = #tpu.pipeline_mode<synchronous>, transform_indices = @transform_19, window_bounds = array<i64: 1, 64>}, {pipeline_mode = #tpu.pipeline_mode<synchronous>, transform_indices = @transform_20, window_bounds = array<i64: 1, 64>}, {pipeline_mode = #tpu.pipeline_mode<synchronous>, transform_indices = @transform_21, window_bounds = array<i64: 1, 64>}, {pipeline_mode = #tpu.pipeline_mode<synchronous>, transform_indices = @transform_22, window_bounds = array<i64: 1, 64>}, {pipeline_mode = #tpu.pipeline_mode<synchronous>, transform_indices = @transform_23, window_bounds = array<i64: 192, 128>}, {pipeline_mode = #tpu.pipeline_mode<synchronous>, transform_indices = @transform_24, window_bounds = array<i64: 192, 128>}, {pipeline_mode = #tpu.pipeline_mode<synchronous>, transform_indices = @transform_25, window_bounds = array<i64: 1, 128>}, {transform_indices = @transform_26, window_bounds = array<i64: 1, 16, 128>}, {transform_indices = @transform_27, window_bounds = array<i64: 1, 16, 128>}]} {
    %c0 = arith.constant 0 : index
    %c0_0 = arith.constant 0 : index
    %c0_1 = arith.constant 0 : index
    %0 = vector.load %arg1[%c0, %c0_0, %c0_1] : memref<1x16x64xf32, #tpu.memory_space<vmem>>, vector<1x16x64xf32>
    %1 = vector.shape_cast %0 : vector<1x16x64xf32> to vector<16x64xf32>
    %c0_2 = arith.constant 0 : index
    %c0_3 = arith.constant 0 : index
    %c0_4 = arith.constant 0 : index
    %2 = vector.load %arg2[%c0_2, %c0_3, %c0_4] : memref<1x16x64xf32, #tpu.memory_space<vmem>>, vector<1x16x64xf32>
    %3 = vector.shape_cast %2 : vector<1x16x64xf32> to vector<16x64xf32>
    %c0_5 = arith.constant 0 : index
    %c0_6 = arith.constant 0 : index
    %c0_7 = arith.constant 0 : index
    %4 = vector.load %arg3[%c0_5, %c0_6, %c0_7] : memref<6x16x16xf32, #tpu.memory_space<vmem>>, vector<1x16x16xf32>
    %5 = vector.shape_cast %4 : vector<1x16x16xf32> to vector<16x16xf32>
    %c1 = arith.constant 1 : index
    %c0_8 = arith.constant 0 : index
    %c0_9 = arith.constant 0 : index
    %6 = vector.load %arg3[%c1, %c0_8, %c0_9] : memref<6x16x16xf32, #tpu.memory_space<vmem>>, vector<1x16x16xf32>
    %7 = vector.shape_cast %6 : vector<1x16x16xf32> to vector<16x16xf32>
    %c2 = arith.constant 2 : index
    %c0_10 = arith.constant 0 : index
    %c0_11 = arith.constant 0 : index
    %8 = vector.load %arg3[%c2, %c0_10, %c0_11] : memref<6x16x16xf32, #tpu.memory_space<vmem>>, vector<1x16x16xf32>
    %9 = vector.shape_cast %8 : vector<1x16x16xf32> to vector<16x16xf32>
    %c3 = arith.constant 3 : index
    %c0_12 = arith.constant 0 : index
    %c0_13 = arith.constant 0 : index
    %10 = vector.load %arg3[%c3, %c0_12, %c0_13] : memref<6x16x16xf32, #tpu.memory_space<vmem>>, vector<1x16x16xf32>
    %11 = vector.shape_cast %10 : vector<1x16x16xf32> to vector<16x16xf32>
    %c4 = arith.constant 4 : index
    %c0_14 = arith.constant 0 : index
    %c0_15 = arith.constant 0 : index
    %12 = vector.load %arg3[%c4, %c0_14, %c0_15] : memref<6x16x16xf32, #tpu.memory_space<vmem>>, vector<1x16x16xf32>
    %13 = vector.shape_cast %12 : vector<1x16x16xf32> to vector<16x16xf32>
    %c5 = arith.constant 5 : index
    %c0_16 = arith.constant 0 : index
    %c0_17 = arith.constant 0 : index
    %14 = vector.load %arg3[%c5, %c0_16, %c0_17] : memref<6x16x16xf32, #tpu.memory_space<vmem>>, vector<1x16x16xf32>
    %15 = vector.shape_cast %14 : vector<1x16x16xf32> to vector<16x16xf32>
    %cst = arith.constant dense<0.000000e+00> : vector<16x64xf32>
    %16 = tpu.matmul %5, %1, %cst {dimension_numbers = #tpu.dot_dimension_numbers<[1], [0], [0], [1], [0, 0, 1, 1], [], []>} : vector<16x16xf32>, vector<16x64xf32>, vector<16x64xf32> -> vector<16x64xf32>
    %cst_18 = arith.constant dense<0.000000e+00> : vector<16x64xf32>
    %17 = tpu.matmul %7, %1, %cst_18 {dimension_numbers = #tpu.dot_dimension_numbers<[1], [0], [0], [1], [0, 0, 1, 1], [], []>} : vector<16x16xf32>, vector<16x64xf32>, vector<16x64xf32> -> vector<16x64xf32>
    %18 = tpu.concatenate %16, %1, %17 in 1 : vector<16x64xf32>, vector<16x64xf32>, vector<16x64xf32> -> vector<16x192xf32>
    %cst_19 = arith.constant dense<0.000000e+00> : vector<16x64xf32>
    %19 = tpu.matmul %5, %3, %cst_19 {dimension_numbers = #tpu.dot_dimension_numbers<[1], [0], [0], [1], [0, 0, 1, 1], [], []>} : vector<16x16xf32>, vector<16x64xf32>, vector<16x64xf32> -> vector<16x64xf32>
    %cst_20 = arith.constant dense<0.000000e+00> : vector<16x64xf32>
    %20 = tpu.matmul %7, %3, %cst_20 {dimension_numbers = #tpu.dot_dimension_numbers<[1], [0], [0], [1], [0, 0, 1, 1], [], []>} : vector<16x16xf32>, vector<16x64xf32>, vector<16x64xf32> -> vector<16x64xf32>
    %21 = tpu.concatenate %19, %3, %20 in 1 : vector<16x64xf32>, vector<16x64xf32>, vector<16x64xf32> -> vector<16x192xf32>
    %c0_21 = arith.constant 0 : index
    %c0_22 = arith.constant 0 : index
    %22 = vector.load %arg4[%c0_21, %c0_22] : memref<192x128xf32, #tpu.memory_space<vmem>>, vector<192x128xf32>
    %cst_23 = arith.constant dense<0.000000e+00> : vector<16x128xf32>
    %23 = tpu.matmul %18, %22, %cst_23 {dimension_numbers = #tpu.dot_dimension_numbers<[1], [0], [0], [1], [0, 0, 1, 1], [], []>} : vector<16x192xf32>, vector<192x128xf32>, vector<16x128xf32> -> vector<16x128xf32>
    %c0_24 = arith.constant 0 : index
    %c0_25 = arith.constant 0 : index
    %24 = vector.load %arg5[%c0_24, %c0_25] : memref<1x128xf32, #tpu.memory_space<vmem>>, vector<1x128xf32>
    %25 = vector.broadcast %24 : vector<1x128xf32> to vector<16x128xf32>
    %26 = arith.addf %23, %25 : vector<16x128xf32>
    %27 = vector.extract_strided_slice %26 {offsets = [0, 0], sizes = [16, 64], strides = [1, 1]} : vector<16x128xf32> to vector<16x64xf32>
    %28 = vector.extract_strided_slice %26 {offsets = [0, 64], sizes = [16, 64], strides = [1, 1]} : vector<16x128xf32> to vector<16x64xf32>
    %c0_26 = arith.constant 0 : index
    %c0_27 = arith.constant 0 : index
    %29 = vector.load %arg6[%c0_26, %c0_27] : memref<192x64xf32, #tpu.memory_space<vmem>>, vector<192x64xf32>
    %cst_28 = arith.constant dense<0.000000e+00> : vector<16x64xf32>
    %30 = tpu.matmul %21, %29, %cst_28 {dimension_numbers = #tpu.dot_dimension_numbers<[1], [0], [0], [1], [0, 0, 1, 1], [], []>} : vector<16x192xf32>, vector<192x64xf32>, vector<16x64xf32> -> vector<16x64xf32>
    %c0_29 = arith.constant 0 : index
    %c0_30 = arith.constant 0 : index
    %31 = vector.load %arg7[%c0_29, %c0_30] : memref<1x64xf32, #tpu.memory_space<vmem>>, vector<1x64xf32>
    %32 = vector.broadcast %31 : vector<1x64xf32> to vector<16x64xf32>
    %33 = arith.addf %30, %32 : vector<16x64xf32>
    %34 = arith.addf %27, %33 : vector<16x64xf32>
    %c0_31 = arith.constant 0 : index
    %c0_32 = arith.constant 0 : index
    %35 = vector.load %arg8[%c0_31, %c0_32] : memref<1x64xf32, #tpu.memory_space<vmem>>, vector<1x64xf32>
    %36 = vector.broadcast %35 : vector<1x64xf32> to vector<16x64xf32>
    %37 = arith.mulf %34, %36 : vector<16x64xf32>
    %c0_33 = arith.constant 0 : index
    %c0_34 = arith.constant 0 : index
    %38 = vector.load %arg9[%c0_33, %c0_34] : memref<1x64xf32, #tpu.memory_space<vmem>>, vector<1x64xf32>
    %39 = vector.broadcast %38 : vector<1x64xf32> to vector<16x64xf32>
    %40 = arith.addf %37, %39 : vector<16x64xf32>
    %c0_35 = arith.constant 0 : index
    %c0_36 = arith.constant 0 : index
    %41 = vector.load %arg10[%c0_35, %c0_36] : memref<1x64xf32, #tpu.memory_space<vmem>>, vector<1x64xf32>
    %cst_37 = arith.constant 0.000000e+00 : f32
    %42 = vector.broadcast %cst_37 : f32 to vector<16x64xf32>
    %43 = arith.cmpf oge, %40, %42 : vector<16x64xf32>
    %44 = vector.broadcast %41 : vector<1x64xf32> to vector<16x64xf32>
    %45 = arith.mulf %44, %40 : vector<16x64xf32>
    %46 = arith.select %43, %40, %45 : vector<16x64xi1>, vector<16x64xf32>
    %47 = arith.addf %46, %1 : vector<16x64xf32>
    %c0_38 = arith.constant 0 : index
    %c0_39 = arith.constant 0 : index
    %48 = vector.load %arg11[%c0_38, %c0_39] : memref<64x32xf32, #tpu.memory_space<vmem>>, vector<64x32xf32>
    %cst_40 = arith.constant dense<0.000000e+00> : vector<16x32xf32>
    %49 = tpu.matmul %3, %48, %cst_40 {dimension_numbers = #tpu.dot_dimension_numbers<[1], [0], [0], [1], [0, 0, 1, 1], [], []>} : vector<16x64xf32>, vector<64x32xf32>, vector<16x32xf32> -> vector<16x32xf32>
    %c0_41 = arith.constant 0 : index
    %c0_42 = arith.constant 0 : index
    %50 = vector.load %arg12[%c0_41, %c0_42] : memref<1x32xf32, #tpu.memory_space<vmem>>, vector<1x32xf32>
    %51 = vector.broadcast %50 : vector<1x32xf32> to vector<16x32xf32>
    %52 = arith.addf %49, %51 : vector<16x32xf32>
    %c0_43 = arith.constant 0 : index
    %c0_44 = arith.constant 0 : index
    %53 = vector.load %arg13[%c0_43, %c0_44] : memref<1x32xf32, #tpu.memory_space<vmem>>, vector<1x32xf32>
    %cst_45 = arith.constant 0.000000e+00 : f32
    %54 = vector.broadcast %cst_45 : f32 to vector<16x32xf32>
    %55 = arith.cmpf oge, %52, %54 : vector<16x32xf32>
    %56 = vector.broadcast %53 : vector<1x32xf32> to vector<16x32xf32>
    %57 = arith.mulf %56, %52 : vector<16x32xf32>
    %58 = arith.select %55, %52, %57 : vector<16x32xi1>, vector<16x32xf32>
    %c0_46 = arith.constant 0 : index
    %c0_47 = arith.constant 0 : index
    %c0_48 = arith.constant 0 : index
    %59 = vector.load %arg14[%c0_46, %c0_47, %c0_48] : memref<2x32x18xf32, #tpu.memory_space<vmem>>, vector<1x32x18xf32>
    %60 = vector.shape_cast %59 : vector<1x32x18xf32> to vector<32x18xf32>
    %cst_49 = arith.constant dense<0.000000e+00> : vector<16x18xf32>
    %61 = tpu.matmul %58, %60, %cst_49 {dimension_numbers = #tpu.dot_dimension_numbers<[1], [0], [0], [1], [0, 0, 1, 1], [], []>} : vector<16x32xf32>, vector<32x18xf32>, vector<16x18xf32> -> vector<16x18xf32>
    %c1_50 = arith.constant 1 : index
    %c0_51 = arith.constant 0 : index
    %c0_52 = arith.constant 0 : index
    %62 = vector.load %arg14[%c1_50, %c0_51, %c0_52] : memref<2x32x18xf32, #tpu.memory_space<vmem>>, vector<1x32x18xf32>
    %63 = vector.shape_cast %62 : vector<1x32x18xf32> to vector<32x18xf32>
    %cst_53 = arith.constant dense<0.000000e+00> : vector<16x18xf32>
    %64 = tpu.matmul %58, %63, %cst_53 {dimension_numbers = #tpu.dot_dimension_numbers<[1], [0], [0], [1], [0, 0, 1, 1], [], []>} : vector<16x32xf32>, vector<32x18xf32>, vector<16x18xf32> -> vector<16x18xf32>
    %cst_54 = arith.constant dense<0.000000e+00> : vector<16x18xf32>
    %65 = tpu.matmul %9, %61, %cst_54 {dimension_numbers = #tpu.dot_dimension_numbers<[1], [0], [0], [1], [0, 0, 1, 1], [], []>} : vector<16x16xf32>, vector<16x18xf32>, vector<16x18xf32> -> vector<16x18xf32>
    %cst_55 = arith.constant dense<0.000000e+00> : vector<16x18xf32>
    %66 = tpu.matmul %11, %64, %cst_55 {dimension_numbers = #tpu.dot_dimension_numbers<[1], [0], [0], [1], [0, 0, 1, 1], [], []>} : vector<16x16xf32>, vector<16x18xf32>, vector<16x18xf32> -> vector<16x18xf32>
    %67 = arith.subf %65, %66 : vector<16x18xf32>
    %cst_56 = arith.constant dense<0.000000e+00> : vector<16x18xf32>
    %68 = tpu.matmul %9, %64, %cst_56 {dimension_numbers = #tpu.dot_dimension_numbers<[1], [0], [0], [1], [0, 0, 1, 1], [], []>} : vector<16x16xf32>, vector<16x18xf32>, vector<16x18xf32> -> vector<16x18xf32>
    %cst_57 = arith.constant dense<0.000000e+00> : vector<16x18xf32>
    %69 = tpu.matmul %11, %61, %cst_57 {dimension_numbers = #tpu.dot_dimension_numbers<[1], [0], [0], [1], [0, 0, 1, 1], [], []>} : vector<16x16xf32>, vector<16x18xf32>, vector<16x18xf32> -> vector<16x18xf32>
    %70 = arith.addf %68, %69 : vector<16x18xf32>
    %c0_58 = arith.constant 0 : index
    %c0_59 = arith.constant 0 : index
    %71 = vector.load %arg15[%c0_58, %c0_59] : memref<18x18xf32, #tpu.memory_space<vmem>>, vector<18x18xf32>
    %cst_60 = arith.constant dense<0.000000e+00> : vector<16x18xf32>
    %72 = tpu.matmul %67, %71, %cst_60 {dimension_numbers = #tpu.dot_dimension_numbers<[1], [0], [0], [1], [0, 0, 1, 1], [], []>} : vector<16x18xf32>, vector<18x18xf32>, vector<16x18xf32> -> vector<16x18xf32>
    %c0_61 = arith.constant 0 : index
    %c0_62 = arith.constant 0 : index
    %73 = vector.load %arg16[%c0_61, %c0_62] : memref<1x18xf32, #tpu.memory_space<vmem>>, vector<1x18xf32>
    %74 = vector.broadcast %73 : vector<1x18xf32> to vector<16x18xf32>
    %75 = arith.addf %72, %74 : vector<16x18xf32>
    %c0_63 = arith.constant 0 : index
    %c0_64 = arith.constant 0 : index
    %76 = vector.load %arg17[%c0_63, %c0_64] : memref<1x18xf32, #tpu.memory_space<vmem>>, vector<1x18xf32>
    %cst_65 = arith.constant 0.000000e+00 : f32
    %77 = vector.broadcast %cst_65 : f32 to vector<16x18xf32>
    %78 = arith.cmpf oge, %75, %77 : vector<16x18xf32>
    %79 = vector.broadcast %76 : vector<1x18xf32> to vector<16x18xf32>
    %80 = arith.mulf %79, %75 : vector<16x18xf32>
    %81 = arith.select %78, %75, %80 : vector<16x18xi1>, vector<16x18xf32>
    %c0_66 = arith.constant 0 : index
    %c0_67 = arith.constant 0 : index
    %82 = vector.load %arg15[%c0_66, %c0_67] : memref<18x18xf32, #tpu.memory_space<vmem>>, vector<18x18xf32>
    %cst_68 = arith.constant dense<0.000000e+00> : vector<16x18xf32>
    %83 = tpu.matmul %70, %82, %cst_68 {dimension_numbers = #tpu.dot_dimension_numbers<[1], [0], [0], [1], [0, 0, 1, 1], [], []>} : vector<16x18xf32>, vector<18x18xf32>, vector<16x18xf32> -> vector<16x18xf32>
    %c0_69 = arith.constant 0 : index
    %c0_70 = arith.constant 0 : index
    %84 = vector.load %arg16[%c0_69, %c0_70] : memref<1x18xf32, #tpu.memory_space<vmem>>, vector<1x18xf32>
    %85 = vector.broadcast %84 : vector<1x18xf32> to vector<16x18xf32>
    %86 = arith.addf %83, %85 : vector<16x18xf32>
    %c0_71 = arith.constant 0 : index
    %c0_72 = arith.constant 0 : index
    %87 = vector.load %arg17[%c0_71, %c0_72] : memref<1x18xf32, #tpu.memory_space<vmem>>, vector<1x18xf32>
    %cst_73 = arith.constant 0.000000e+00 : f32
    %88 = vector.broadcast %cst_73 : f32 to vector<16x18xf32>
    %89 = arith.cmpf oge, %86, %88 : vector<16x18xf32>
    %90 = vector.broadcast %87 : vector<1x18xf32> to vector<16x18xf32>
    %91 = arith.mulf %90, %86 : vector<16x18xf32>
    %92 = arith.select %89, %86, %91 : vector<16x18xi1>, vector<16x18xf32>
    %cst_74 = arith.constant dense<0.000000e+00> : vector<16x18xf32>
    %93 = tpu.matmul %13, %81, %cst_74 {dimension_numbers = #tpu.dot_dimension_numbers<[1], [0], [0], [1], [0, 0, 1, 1], [], []>} : vector<16x16xf32>, vector<16x18xf32>, vector<16x18xf32> -> vector<16x18xf32>
    %cst_75 = arith.constant dense<0.000000e+00> : vector<16x18xf32>
    %94 = tpu.matmul %15, %92, %cst_75 {dimension_numbers = #tpu.dot_dimension_numbers<[1], [0], [0], [1], [0, 0, 1, 1], [], []>} : vector<16x16xf32>, vector<16x18xf32>, vector<16x18xf32> -> vector<16x18xf32>
    %95 = arith.subf %93, %94 : vector<16x18xf32>
    %cst_76 = arith.constant dense<0.000000e+00> : vector<16x18xf32>
    %96 = tpu.matmul %13, %92, %cst_76 {dimension_numbers = #tpu.dot_dimension_numbers<[1], [0], [0], [1], [0, 0, 1, 1], [], []>} : vector<16x16xf32>, vector<16x18xf32>, vector<16x18xf32> -> vector<16x18xf32>
    %cst_77 = arith.constant dense<0.000000e+00> : vector<16x18xf32>
    %97 = tpu.matmul %15, %81, %cst_77 {dimension_numbers = #tpu.dot_dimension_numbers<[1], [0], [0], [1], [0, 0, 1, 1], [], []>} : vector<16x16xf32>, vector<16x18xf32>, vector<16x18xf32> -> vector<16x18xf32>
    %98 = arith.addf %96, %97 : vector<16x18xf32>
    %c0_78 = arith.constant 0 : index
    %c0_79 = arith.constant 0 : index
    %c0_80 = arith.constant 0 : index
    %99 = vector.load %arg18[%c0_78, %c0_79, %c0_80] : memref<2x18x32xf32, #tpu.memory_space<vmem>>, vector<1x18x32xf32>
    %100 = vector.shape_cast %99 : vector<1x18x32xf32> to vector<18x32xf32>
    %cst_81 = arith.constant dense<0.000000e+00> : vector<16x32xf32>
    %101 = tpu.matmul %95, %100, %cst_81 {dimension_numbers = #tpu.dot_dimension_numbers<[1], [0], [0], [1], [0, 0, 1, 1], [], []>} : vector<16x18xf32>, vector<18x32xf32>, vector<16x32xf32> -> vector<16x32xf32>
    %c1_82 = arith.constant 1 : index
    %c0_83 = arith.constant 0 : index
    %c0_84 = arith.constant 0 : index
    %102 = vector.load %arg18[%c1_82, %c0_83, %c0_84] : memref<2x18x32xf32, #tpu.memory_space<vmem>>, vector<1x18x32xf32>
    %103 = vector.shape_cast %102 : vector<1x18x32xf32> to vector<18x32xf32>
    %cst_85 = arith.constant dense<0.000000e+00> : vector<16x32xf32>
    %104 = tpu.matmul %98, %103, %cst_85 {dimension_numbers = #tpu.dot_dimension_numbers<[1], [0], [0], [1], [0, 0, 1, 1], [], []>} : vector<16x18xf32>, vector<18x32xf32>, vector<16x32xf32> -> vector<16x32xf32>
    %105 = arith.subf %101, %104 : vector<16x32xf32>
    %106 = arith.addf %105, %58 : vector<16x32xf32>
    %c0_86 = arith.constant 0 : index
    %c0_87 = arith.constant 0 : index
    %107 = vector.load %arg19[%c0_86, %c0_87] : memref<32x64xf32, #tpu.memory_space<vmem>>, vector<32x64xf32>
    %cst_88 = arith.constant dense<0.000000e+00> : vector<16x64xf32>
    %108 = tpu.matmul %106, %107, %cst_88 {dimension_numbers = #tpu.dot_dimension_numbers<[1], [0], [0], [1], [0, 0, 1, 1], [], []>} : vector<16x32xf32>, vector<32x64xf32>, vector<16x64xf32> -> vector<16x64xf32>
    %c0_89 = arith.constant 0 : index
    %c0_90 = arith.constant 0 : index
    %109 = vector.load %arg20[%c0_89, %c0_90] : memref<1x64xf32, #tpu.memory_space<vmem>>, vector<1x64xf32>
    %110 = vector.broadcast %109 : vector<1x64xf32> to vector<16x64xf32>
    %111 = arith.addf %108, %110 : vector<16x64xf32>
    %112 = arith.addf %111, %28 : vector<16x64xf32>
    %c0_91 = arith.constant 0 : index
    %c0_92 = arith.constant 0 : index
    %113 = vector.load %arg21[%c0_91, %c0_92] : memref<1x64xf32, #tpu.memory_space<vmem>>, vector<1x64xf32>
    %114 = vector.broadcast %113 : vector<1x64xf32> to vector<16x64xf32>
    %115 = arith.mulf %112, %114 : vector<16x64xf32>
    %c0_93 = arith.constant 0 : index
    %c0_94 = arith.constant 0 : index
    %116 = vector.load %arg22[%c0_93, %c0_94] : memref<1x64xf32, #tpu.memory_space<vmem>>, vector<1x64xf32>
    %117 = vector.broadcast %116 : vector<1x64xf32> to vector<16x64xf32>
    %118 = arith.addf %115, %117 : vector<16x64xf32>
    %c0_95 = arith.constant 0 : index
    %c0_96 = arith.constant 0 : index
    %119 = vector.load %arg23[%c0_95, %c0_96] : memref<1x64xf32, #tpu.memory_space<vmem>>, vector<1x64xf32>
    %cst_97 = arith.constant 0.000000e+00 : f32
    %120 = vector.broadcast %cst_97 : f32 to vector<16x64xf32>
    %121 = arith.cmpf oge, %118, %120 : vector<16x64xf32>
    %122 = vector.broadcast %119 : vector<1x64xf32> to vector<16x64xf32>
    %123 = arith.mulf %122, %118 : vector<16x64xf32>
    %124 = arith.select %121, %118, %123 : vector<16x64xi1>, vector<16x64xf32>
    %125 = arith.addf %124, %3 : vector<16x64xf32>
    %cst_98 = arith.constant dense<0.000000e+00> : vector<16x64xf32>
    %126 = tpu.matmul %5, %47, %cst_98 {dimension_numbers = #tpu.dot_dimension_numbers<[1], [0], [0], [1], [0, 0, 1, 1], [], []>} : vector<16x16xf32>, vector<16x64xf32>, vector<16x64xf32> -> vector<16x64xf32>
    %cst_99 = arith.constant dense<0.000000e+00> : vector<16x64xf32>
    %127 = tpu.matmul %7, %47, %cst_99 {dimension_numbers = #tpu.dot_dimension_numbers<[1], [0], [0], [1], [0, 0, 1, 1], [], []>} : vector<16x16xf32>, vector<16x64xf32>, vector<16x64xf32> -> vector<16x64xf32>
    %128 = tpu.concatenate %126, %47, %127 in 1 : vector<16x64xf32>, vector<16x64xf32>, vector<16x64xf32> -> vector<16x192xf32>
    %c0_100 = arith.constant 0 : index
    %c0_101 = arith.constant 0 : index
    %129 = vector.load %arg24[%c0_100, %c0_101] : memref<192x128xf32, #tpu.memory_space<vmem>>, vector<192x128xf32>
    %cst_102 = arith.constant dense<0.000000e+00> : vector<16x128xf32>
    %130 = tpu.matmul %128, %129, %cst_102 {dimension_numbers = #tpu.dot_dimension_numbers<[1], [0], [0], [1], [0, 0, 1, 1], [], []>} : vector<16x192xf32>, vector<192x128xf32>, vector<16x128xf32> -> vector<16x128xf32>
    %cst_103 = arith.constant dense<0.000000e+00> : vector<16x64xf32>
    %131 = tpu.matmul %5, %125, %cst_103 {dimension_numbers = #tpu.dot_dimension_numbers<[1], [0], [0], [1], [0, 0, 1, 1], [], []>} : vector<16x16xf32>, vector<16x64xf32>, vector<16x64xf32> -> vector<16x64xf32>
    %cst_104 = arith.constant dense<0.000000e+00> : vector<16x64xf32>
    %132 = tpu.matmul %7, %125, %cst_104 {dimension_numbers = #tpu.dot_dimension_numbers<[1], [0], [0], [1], [0, 0, 1, 1], [], []>} : vector<16x16xf32>, vector<16x64xf32>, vector<16x64xf32> -> vector<16x64xf32>
    %133 = tpu.concatenate %131, %125, %132 in 1 : vector<16x64xf32>, vector<16x64xf32>, vector<16x64xf32> -> vector<16x192xf32>
    %c0_105 = arith.constant 0 : index
    %c0_106 = arith.constant 0 : index
    %134 = vector.load %arg25[%c0_105, %c0_106] : memref<192x128xf32, #tpu.memory_space<vmem>>, vector<192x128xf32>
    %cst_107 = arith.constant dense<0.000000e+00> : vector<16x128xf32>
    %135 = tpu.matmul %133, %134, %cst_107 {dimension_numbers = #tpu.dot_dimension_numbers<[1], [0], [0], [1], [0, 0, 1, 1], [], []>} : vector<16x192xf32>, vector<192x128xf32>, vector<16x128xf32> -> vector<16x128xf32>
    %136 = arith.addf %130, %135 : vector<16x128xf32>
    %c0_108 = arith.constant 0 : index
    %c0_109 = arith.constant 0 : index
    %137 = vector.load %arg26[%c0_108, %c0_109] : memref<1x128xf32, #tpu.memory_space<vmem>>, vector<1x128xf32>
    %138 = vector.broadcast %137 : vector<1x128xf32> to vector<16x128xf32>
    %139 = arith.addf %136, %138 : vector<16x128xf32>
    %c0_110 = arith.constant 0 : index
    %c0_111 = arith.constant 0 : index
    %c0_112 = arith.constant 0 : index
    %140 = vector.load %arg27[%c0_110, %c0_111, %c0_112] : memref<1x16x128xf32, #tpu.memory_space<vmem>>, vector<1x16x128xf32>
    %141 = vector.shape_cast %140 : vector<1x16x128xf32> to vector<16x128xf32>
    %142 = vector.shape_cast %139 : vector<16x128xf32> to vector<1x16x128xf32>
    tpu.vector_store %arg27[%c0_110, %c0_111, %c0_112], %142 {strides = array<i32>} : memref<1x16x128xf32, #tpu.memory_space<vmem>>, vector<1x16x128xf32>,
    %143 = tpu.concatenate %47, %125 in 1 : vector<16x64xf32>, vector<16x64xf32> -> vector<16x128xf32>
    %c0_113 = arith.constant 0 : index
    %c0_114 = arith.constant 0 : index
    %c0_115 = arith.constant 0 : index
    %144 = vector.load %arg28[%c0_113, %c0_114, %c0_115] : memref<1x16x128xf32, #tpu.memory_space<vmem>>, vector<1x16x128xf32>
    %145 = vector.shape_cast %144 : vector<1x16x128xf32> to vector<16x128xf32>
    %146 = vector.shape_cast %143 : vector<16x128xf32> to vector<1x16x128xf32>
    tpu.vector_store %arg28[%c0_113, %c0_114, %c0_115], %146 {strides = array<i32>} : memref<1x16x128xf32, #tpu.memory_space<vmem>>, vector<1x16x128xf32>,
    return
  }
  func.func @transform_0(%arg0: i32) -> (i32, i32, i32) {
    %c0_i32 = arith.constant 0 : i32
    %c0_i32_0 = arith.constant 0 : i32
    %c0_i32_1 = arith.constant 0 : i32
    return %arg0, %c0_i32, %c0_i32_0 : i32, i32, i32
  }
  func.func @transform_1(%arg0: i32) -> (i32, i32, i32) {
    %c0_i32 = arith.constant 0 : i32
    %c0_i32_0 = arith.constant 0 : i32
    %c0_i32_1 = arith.constant 0 : i32
    return %arg0, %c0_i32, %c0_i32_0 : i32, i32, i32
  }
  func.func @transform_2(%arg0: i32) -> (i32, i32, i32) {
    %c0_i32 = arith.constant 0 : i32
    %c0_i32_0 = arith.constant 0 : i32
    %c0_i32_1 = arith.constant 0 : i32
    %c0_i32_2 = arith.constant 0 : i32
    return %c0_i32, %c0_i32_0, %c0_i32_1 : i32, i32, i32
  }
  func.func @transform_3(%arg0: i32) -> (i32, i32) {
    %c0_i32 = arith.constant 0 : i32
    %c0_i32_0 = arith.constant 0 : i32
    %c0_i32_1 = arith.constant 0 : i32
    return %c0_i32, %c0_i32_0 : i32, i32
  }
  func.func @transform_4(%arg0: i32) -> (i32, i32) {
    %c0_i32 = arith.constant 0 : i32
    %c0_i32_0 = arith.constant 0 : i32
    %c0_i32_1 = arith.constant 0 : i32
    return %c0_i32, %c0_i32_0 : i32, i32
  }
  func.func @transform_5(%arg0: i32) -> (i32, i32) {
    %c0_i32 = arith.constant 0 : i32
    %c0_i32_0 = arith.constant 0 : i32
    %c0_i32_1 = arith.constant 0 : i32
    return %c0_i32, %c0_i32_0 : i32, i32
  }
  func.func @transform_6(%arg0: i32) -> (i32, i32) {
    %c0_i32 = arith.constant 0 : i32
    %c0_i32_0 = arith.constant 0 : i32
    %c0_i32_1 = arith.constant 0 : i32
    return %c0_i32, %c0_i32_0 : i32, i32
  }
  func.func @transform_7(%arg0: i32) -> (i32, i32) {
    %c0_i32 = arith.constant 0 : i32
    %c0_i32_0 = arith.constant 0 : i32
    %c0_i32_1 = arith.constant 0 : i32
    return %c0_i32, %c0_i32_0 : i32, i32
  }
  func.func @transform_8(%arg0: i32) -> (i32, i32) {
    %c0_i32 = arith.constant 0 : i32
    %c0_i32_0 = arith.constant 0 : i32
    %c0_i32_1 = arith.constant 0 : i32
    return %c0_i32, %c0_i32_0 : i32, i32
  }
  func.func @transform_9(%arg0: i32) -> (i32, i32) {
    %c0_i32 = arith.constant 0 : i32
    %c0_i32_0 = arith.constant 0 : i32
    %c0_i32_1 = arith.constant 0 : i32
    return %c0_i32, %c0_i32_0 : i32, i32
  }
  func.func @transform_10(%arg0: i32) -> (i32, i32) {
    %c0_i32 = arith.constant 0 : i32
    %c0_i32_0 = arith.constant 0 : i32
    %c0_i32_1 = arith.constant 0 : i32
    return %c0_i32, %c0_i32_0 : i32, i32
  }
  func.func @transform_11(%arg0: i32) -> (i32, i32) {
    %c0_i32 = arith.constant 0 : i32
    %c0_i32_0 = arith.constant 0 : i32
    %c0_i32_1 = arith.constant 0 : i32
    return %c0_i32, %c0_i32_0 : i32, i32
  }
  func.func @transform_12(%arg0: i32) -> (i32, i32) {
    %c0_i32 = arith.constant 0 : i32
    %c0_i32_0 = arith.constant 0 : i32
    %c0_i32_1 = arith.constant 0 : i32
    return %c0_i32, %c0_i32_0 : i32, i32
  }
  func.func @transform_13(%arg0: i32) -> (i32, i32, i32) {
    %c0_i32 = arith.constant 0 : i32
    %c0_i32_0 = arith.constant 0 : i32
    %c0_i32_1 = arith.constant 0 : i32
    %c0_i32_2 = arith.constant 0 : i32
    return %c0_i32, %c0_i32_0, %c0_i32_1 : i32, i32, i32
  }
  func.func @transform_14(%arg0: i32) -> (i32, i32) {
    %c0_i32 = arith.constant 0 : i32
    %c0_i32_0 = arith.constant 0 : i32
    %c0_i32_1 = arith.constant 0 : i32
    return %c0_i32, %c0_i32_0 : i32, i32
  }
  func.func @transform_15(%arg0: i32) -> (i32, i32) {
    %c0_i32 = arith.constant 0 : i32
    %c0_i32_0 = arith.constant 0 : i32
    %c0_i32_1 = arith.constant 0 : i32
    return %c0_i32, %c0_i32_0 : i32, i32
  }
  func.func @transform_16(%arg0: i32) -> (i32, i32) {
    %c0_i32 = arith.constant 0 : i32
    %c0_i32_0 = arith.constant 0 : i32
    %c0_i32_1 = arith.constant 0 : i32
    return %c0_i32, %c0_i32_0 : i32, i32
  }
  func.func @transform_17(%arg0: i32) -> (i32, i32, i32) {
    %c0_i32 = arith.constant 0 : i32
    %c0_i32_0 = arith.constant 0 : i32
    %c0_i32_1 = arith.constant 0 : i32
    %c0_i32_2 = arith.constant 0 : i32
    return %c0_i32, %c0_i32_0, %c0_i32_1 : i32, i32, i32
  }
  func.func @transform_18(%arg0: i32) -> (i32, i32) {
    %c0_i32 = arith.constant 0 : i32
    %c0_i32_0 = arith.constant 0 : i32
    %c0_i32_1 = arith.constant 0 : i32
    return %c0_i32, %c0_i32_0 : i32, i32
  }
  func.func @transform_19(%arg0: i32) -> (i32, i32) {
    %c0_i32 = arith.constant 0 : i32
    %c0_i32_0 = arith.constant 0 : i32
    %c0_i32_1 = arith.constant 0 : i32
    return %c0_i32, %c0_i32_0 : i32, i32
  }
  func.func @transform_20(%arg0: i32) -> (i32, i32) {
    %c0_i32 = arith.constant 0 : i32
    %c0_i32_0 = arith.constant 0 : i32
    %c0_i32_1 = arith.constant 0 : i32
    return %c0_i32, %c0_i32_0 : i32, i32
  }
  func.func @transform_21(%arg0: i32) -> (i32, i32) {
    %c0_i32 = arith.constant 0 : i32
    %c0_i32_0 = arith.constant 0 : i32
    %c0_i32_1 = arith.constant 0 : i32
    return %c0_i32, %c0_i32_0 : i32, i32
  }
  func.func @transform_22(%arg0: i32) -> (i32, i32) {
    %c0_i32 = arith.constant 0 : i32
    %c0_i32_0 = arith.constant 0 : i32
    %c0_i32_1 = arith.constant 0 : i32
    return %c0_i32, %c0_i32_0 : i32, i32
  }
  func.func @transform_23(%arg0: i32) -> (i32, i32) {
    %c0_i32 = arith.constant 0 : i32
    %c0_i32_0 = arith.constant 0 : i32
    %c0_i32_1 = arith.constant 0 : i32
    return %c0_i32, %c0_i32_0 : i32, i32
  }
  func.func @transform_24(%arg0: i32) -> (i32, i32) {
    %c0_i32 = arith.constant 0 : i32
    %c0_i32_0 = arith.constant 0 : i32
    %c0_i32_1 = arith.constant 0 : i32
    return %c0_i32, %c0_i32_0 : i32, i32
  }
  func.func @transform_25(%arg0: i32) -> (i32, i32) {
    %c0_i32 = arith.constant 0 : i32
    %c0_i32_0 = arith.constant 0 : i32
    %c0_i32_1 = arith.constant 0 : i32
    return %c0_i32, %c0_i32_0 : i32, i32
  }
  func.func @transform_26(%arg0: i32) -> (i32, i32, i32) {
    %c0_i32 = arith.constant 0 : i32
    %c0_i32_0 = arith.constant 0 : i32
    %c0_i32_1 = arith.constant 0 : i32
    return %arg0, %c0_i32, %c0_i32_0 : i32, i32, i32
  }
  func.func @transform_27(%arg0: i32) -> (i32, i32, i32) {
    %c0_i32 = arith.constant 0 : i32
    %c0_i32_0 = arith.constant 0 : i32
    %c0_i32_1 = arith.constant 0 : i32
    return %arg0, %c0_i32, %c0_i32_0 : i32, i32, i32
  }
}

</mosaic_0001>

<llo_original>
// kernel: tile.52
$region0: #{tile.52}
  #allocation0 [shape = 's32[1]{0}', space=sflag, size = 0x4, scoped, tag = 'scoped memory for tile.52']
  %s0 = inlined_call_operand.vmem [shape: f32[4], index: 0, kind: input, shape index: {}]
  %s1 = inlined_call_operand.vmem [shape: f32[16,4], index: 1, kind: output, shape index: {}]
  // Predicated region
  $region2: #{tile.52} parent=0 // pred_check
    _
  $region3: #{tile.52} parent=0 // pred_check_branch
    %3 = sbr.rel (0) target = $region5
  $region4: #{tile.52} parent=0 // pred_region
    _
  $region5: #{tile.52} parent=0 // pred_fallthru
    _
  %v4 = vld [vmem:[%s0] ss:$0 sm:$0xff]
  %5 = vst [vmem:[%s1] sm:$0xff] %v4
  %s6 = scalar_lea.vmem %s1, 8
  %7 = vst [vmem:[%s6] sm:$0xff] %v4

// kernel: tile.57
$region0: #{tile.57}
  %s0 = inlined_call_operand.vmem [shape: f32[16,4], index: 0, kind: input, shape index: {}]
  %s1 = inlined_call_operand.vmem [shape: f32[1,64], index: 1, kind: output, shape index: {}]
  $region1: #{tile.57} parent=0
    #allocation0 [shape = 'u8[4096]{0}', space=vmem, size = 0x1000, scoped, tag = 'scoped mem for output reshape']
    %v2 = vld [vmem:[%s0] sm:$0x1]
    %vm3 = vcmask 31744
    %4 = vst.msk [vmem:[#allocation0] sm:$0x1] %vm3, %v2
    %s5 = scalar_lea.vmem %s0, 15
    %v6 = vld [vmem:[%s5] sm:$0x1]
    %7 = vrot.lane.b32.xlu0 %v6, 60
    %v8 = vpop.permute.xlu0 %7
    %vm9 = vcmask 523744
    %10 = vst.msk [vmem:[#allocation0] sm:$0x1] %vm9, %v8
    %s11 = scalar_lea.vmem %s0, 14
    %v12 = vld [vmem:[%s11] sm:$0x1]
    %13 = vrot.lane.b32.xlu0 %v12, 56
    %v14 = vpop.permute.xlu0 %13
    %vm15 = vcmask 490944
    %16 = vst.msk [vmem:[#allocation0] sm:$0x1] %vm15, %v14
    %s17 = scalar_lea.vmem %s0, 13
    %v18 = vld [vmem:[%s17] sm:$0x1]
    %19 = vrot.lane.b32.xlu0 %v18, 52
    %v20 = vpop.permute.xlu0 %19
    %vm21 = vcmask 458144
    %22 = vst.msk [vmem:[#allocation0] sm:$0x1] %vm21, %v20
    %s23 = scalar_lea.vmem %s0, 12
    %v24 = vld [vmem:[%s23] sm:$0x1]
    %25 = vrot.lane.b32.xlu0 %v24, 48
    %v26 = vpop.permute.xlu0 %25
    %vm27 = vcmask 425344
    %28 = vst.msk [vmem:[#allocation0] sm:$0x1] %vm27, %v26
    %s29 = scalar_lea.vmem %s0, 11
    %v30 = vld [vmem:[%s29] sm:$0x1]
    %31 = vrot.lane.b32.xlu0 %v30, 44
    %v32 = vpop.permute.xlu0 %31
    %vm33 = vcmask 392544
    %34 = vst.msk [vmem:[#allocation0] sm:$0x1] %vm33, %v32
    %s35 = scalar_lea.vmem %s0, 10
    %v36 = vld [vmem:[%s35] sm:$0x1]
    %37 = vrot.lane.b32.xlu0 %v36, 40
    %v38 = vpop.permute.xlu0 %37
    %vm39 = vcmask 359744
    %40 = vst.msk [vmem:[#allocation0] sm:$0x1] %vm39, %v38
    %s41 = scalar_lea.vmem %s0, 9
    %v42 = vld [vmem:[%s41] sm:$0x1]
    %43 = vrot.lane.b32.xlu0 %v42, 36
    %v44 = vpop.permute.xlu0 %43
    %vm45 = vcmask 326944
    %46 = vst.msk [vmem:[#allocation0] sm:$0x1] %vm45, %v44
    %s47 = scalar_lea.vmem %s0, 8
    %v48 = vld [vmem:[%s47] sm:$0x1]
    %49 = vrot.lane.b32.xlu0 %v48, 32
    %v50 = vpop.permute.xlu0 %49
    %vm51 = vcmask 294144
    %52 = vst.msk [vmem:[#allocation0] sm:$0x1] %vm51, %v50
    %s53 = scalar_lea.vmem %s0, 7
    %v54 = vld [vmem:[%s53] sm:$0x1]
    %55 = vrot.lane.b32.xlu0 %v54, 28
    %v56 = vpop.permute.xlu0 %55
    %vm57 = vcmask 261344
    %58 = vst.msk [vmem:[#allocation0] sm:$0x1] %vm57, %v56
    %s59 = scalar_lea.vmem %s0, 6
    %v60 = vld [vmem:[%s59] sm:$0x1]
    %61 = vrot.lane.b32.xlu0 %v60, 24
    %v62 = vpop.permute.xlu0 %61
    %vm63 = vcmask 228544
    %64 = vst.msk [vmem:[#allocation0] sm:$0x1] %vm63, %v62
    %s65 = scalar_lea.vmem %s0, 5
    %v66 = vld [vmem:[%s65] sm:$0x1]
    %67 = vrot.lane.b32.xlu0 %v66, 20
    %v68 = vpop.permute.xlu0 %67
    %vm69 = vcmask 195744
    %70 = vst.msk [vmem:[#allocation0] sm:$0x1] %vm69, %v68
    %s71 = scalar_lea.vmem %s0, 4
    %v72 = vld [vmem:[%s71] sm:$0x1]
    %73 = vrot.lane.b32.xlu0 %v72, 16
    %v74 = vpop.permute.xlu0 %73
    %vm75 = vcmask 162944
    %76 = vst.msk [vmem:[#allocation0] sm:$0x1] %vm75, %v74
    %s77 = scalar_lea.vmem %s0, 3
    %v78 = vld [vmem:[%s77] sm:$0x1]
    %79 = vrot.lane.b32.xlu0 %v78, 12
    %v80 = vpop.permute.xlu0 %79
    %vm81 = vcmask 130144
    %82 = vst.msk [vmem:[#allocation0] sm:$0x1] %vm81, %v80
    %s83 = scalar_lea.vmem %s0, 2
    %v84 = vld [vmem:[%s83] sm:$0x1]
    %85 = vrot.lane.b32.xlu0 %v84, 8
    %v86 = vpop.permute.xlu0 %85
    %vm87 = vcmask 97344
    %88 = vst.msk [vmem:[#allocation0] sm:$0x1] %vm87, %v86
    %s89 = scalar_lea.vmem %s0, 1
    %v90 = vld [vmem:[%s89] sm:$0x1]
    %91 = vrot.lane.b32.xlu0 %v90, 4
    %v92 = vpop.permute.xlu0 %91
    %vm93 = vcmask 64544
    %94 = vst.msk [vmem:[#allocation0] sm:$0x1] %vm93, %v92
    %s96 = sshllo.u32 0, 1
    %v98 = vld [vmem:[#allocation0] sm:%s96]
    %s99 = sshllo.u32 0, 1
    %100 = vst [vmem:[%s1] sm:%s99] %v98

// kernel: tile.53
$region0: #{tile.53}
  %s0 = inlined_call_operand.vmem [shape: f32[16,4], index: 0, kind: input, shape index: {}]
  %s1 = inlined_call_operand.vmem [shape: f32[64], index: 1, kind: output, shape index: {}]
  $region1: #{tile.53} parent=0
    #allocation0 [shape = 'u8[4096]{0}', space=vmem, size = 0x1000, scoped, tag = 'scoped mem for output reshape']
    %v2 = vld [vmem:[%s0] sm:$0x1]
    %vm3 = vcmask 31744
    %4 = vst.msk [vmem:[#allocation0] sm:$0x1] %vm3, %v2
    %s5 = scalar_lea.vmem %s0, 15
    %v6 = vld [vmem:[%s5] sm:$0x1]
    %7 = vrot.lane.b32.xlu0 %v6, 60
    %v8 = vpop.permute.xlu0 %7
    %vm9 = vcmask 523744
    %10 = vst.msk [vmem:[#allocation0] sm:$0x1] %vm9, %v8
    %s11 = scalar_lea.vmem %s0, 14
    %v12 = vld [vmem:[%s11] sm:$0x1]
    %13 = vrot.lane.b32.xlu0 %v12, 56
    %v14 = vpop.permute.xlu0 %13
    %vm15 = vcmask 490944
    %16 = vst.msk [vmem:[#allocation0] sm:$0x1] %vm15, %v14
    %s17 = scalar_lea.vmem %s0, 13
    %v18 = vld [vmem:[%s17] sm:$0x1]
    %19 = vrot.lane.b32.xlu0 %v18, 52
    %v20 = vpop.permute.xlu0 %19
    %vm21 = vcmask 458144
    %22 = vst.msk [vmem:[#allocation0] sm:$0x1] %vm21, %v20
    %s23 = scalar_lea.vmem %s0, 12
    %v24 = vld [vmem:[%s23] sm:$0x1]
    %25 = vrot.lane.b32.xlu0 %v24, 48
    %v26 = vpop.permute.xlu0 %25
    %vm27 = vcmask 425344
    %28 = vst.msk [vmem:[#allocation0] sm:$0x1] %vm27, %v26
    %s29 = scalar_lea.vmem %s0, 11
    %v30 = vld [vmem:[%s29] sm:$0x1]
    %31 = vrot.lane.b32.xlu0 %v30, 44
    %v32 = vpop.permute.xlu0 %31
    %vm33 = vcmask 392544
    %34 = vst.msk [vmem:[#allocation0] sm:$0x1] %vm33, %v32
    %s35 = scalar_lea.vmem %s0, 10
    %v36 = vld [vmem:[%s35] sm:$0x1]
    %37 = vrot.lane.b32.xlu0 %v36, 40
    %v38 = vpop.permute.xlu0 %37
    %vm39 = vcmask 359744
    %40 = vst.msk [vmem:[#allocation0] sm:$0x1] %vm39, %v38
    %s41 = scalar_lea.vmem %s0, 9
    %v42 = vld [vmem:[%s41] sm:$0x1]
    %43 = vrot.lane.b32.xlu0 %v42, 36
    %v44 = vpop.permute.xlu0 %43
    %vm45 = vcmask 326944
    %46 = vst.msk [vmem:[#allocation0] sm:$0x1] %vm45, %v44
    %s47 = scalar_lea.vmem %s0, 8
    %v48 = vld [vmem:[%s47] sm:$0x1]
    %49 = vrot.lane.b32.xlu0 %v48, 32
    %v50 = vpop.permute.xlu0 %49
    %vm51 = vcmask 294144
    %52 = vst.msk [vmem:[#allocation0] sm:$0x1] %vm51, %v50
    %s53 = scalar_lea.vmem %s0, 7
    %v54 = vld [vmem:[%s53] sm:$0x1]
    %55 = vrot.lane.b32.xlu0 %v54, 28
    %v56 = vpop.permute.xlu0 %55
    %vm57 = vcmask 261344
    %58 = vst.msk [vmem:[#allocation0] sm:$0x1] %vm57, %v56
    %s59 = scalar_lea.vmem %s0, 6
    %v60 = vld [vmem:[%s59] sm:$0x1]
    %61 = vrot.lane.b32.xlu0 %v60, 24
    %v62 = vpop.permute.xlu0 %61
    %vm63 = vcmask 228544
    %64 = vst.msk [vmem:[#allocation0] sm:$0x1] %vm63, %v62
    %s65 = scalar_lea.vmem %s0, 5
    %v66 = vld [vmem:[%s65] sm:$0x1]
    %67 = vrot.lane.b32.xlu0 %v66, 20
    %v68 = vpop.permute.xlu0 %67
    %vm69 = vcmask 195744
    %70 = vst.msk [vmem:[#allocation0] sm:$0x1] %vm69, %v68
    %s71 = scalar_lea.vmem %s0, 4
    %v72 = vld [vmem:[%s71] sm:$0x1]
    %73 = vrot.lane.b32.xlu0 %v72, 16
    %v74 = vpop.permute.xlu0 %73
    %vm75 = vcmask 162944
    %76 = vst.msk [vmem:[#allocation0] sm:$0x1] %vm75, %v74
    %s77 = scalar_lea.vmem %s0, 3
    %v78 = vld [vmem:[%s77] sm:$0x1]
    %79 = vrot.lane.b32.xlu0 %v78, 12
    %v80 = vpop.permute.xlu0 %79
    %vm81 = vcmask 130144
    %82 = vst.msk [vmem:[#allocation0] sm:$0x1] %vm81, %v80
    %s83 = scalar_lea.vmem %s0, 2
    %v84 = vld [vmem:[%s83] sm:$0x1]
    %85 = vrot.lane.b32.xlu0 %v84, 8
    %v86 = vpop.permute.xlu0 %85
    %vm87 = vcmask 97344
    %88 = vst.msk [vmem:[#allocation0] sm:$0x1] %vm87, %v86
    %s89 = scalar_lea.vmem %s0, 1
    %v90 = vld [vmem:[%s89] sm:$0x1]
    %91 = vrot.lane.b32.xlu0 %v90, 4
    %v92 = vpop.permute.xlu0 %91
    %vm93 = vcmask 64544
    %94 = vst.msk [vmem:[#allocation0] sm:$0x1] %vm93, %v92
    %s96 = sshllo.u32 0, 1
    %v98 = vld [vmem:[#allocation0] sm:%s96]
    %s99 = sshllo.u32 0, 1
    %100 = vst [vmem:[%s1] sm:%s99] %v98

// kernel: tile.80
$region0: #{tile.80}
  #allocation0 [shape = 's32[1]{0}', space=sflag, size = 0x4, scoped, tag = 'scoped memory for tile.80']
  %s0 = inlined_call_operand.vmem [shape: f32[2], index: 0, kind: input, shape index: {}]
  %s1 = inlined_call_operand.vmem [shape: f32[16,2], index: 1, kind: output, shape index: {}]
  // Predicated region
  $region2: #{tile.80} parent=0 // pred_check
    _
  $region3: #{tile.80} parent=0 // pred_check_branch
    %3 = sbr.rel (0) target = $region5
  $region4: #{tile.80} parent=0 // pred_region
    _
  $region5: #{tile.80} parent=0 // pred_fallthru
    _
  %v4 = vld [vmem:[%s0] ss:$0 sm:$0xff]
  %5 = vst [vmem:[%s1] sm:$0xff] %v4
  %s6 = scalar_lea.vmem %s1, 8
  %7 = vst [vmem:[%s6] sm:$0xff] %v4

// kernel: tile.81
$region0: #{tile.81}
  %s0 = inlined_call_operand.vmem [shape: f32[16,2], index: 0, kind: input, shape index: {}]
  %s1 = inlined_call_operand.vmem [shape: f32[1,32], index: 1, kind: output, shape index: {}]
  $region1: #{tile.81} parent=0
    #allocation0 [shape = 'u8[4096]{0}', space=vmem, size = 0x1000, scoped, tag = 'scoped mem for output reshape']
    %v2 = vld [vmem:[%s0] sm:$0x1]
    %vm3 = vcmask 15360
    %4 = vst.msk [vmem:[#allocation0] sm:$0x1] %vm3, %v2
    %s5 = scalar_lea.vmem %s0, 15
    %v6 = vld [vmem:[%s5] sm:$0x1]
    %7 = vrot.lane.b32.xlu0 %v6, 30
    %v8 = vpop.permute.xlu0 %7
    %vm9 = vcmask 261360
    %10 = vst.msk [vmem:[#allocation0] sm:$0x1] %vm9, %v8
    %s11 = scalar_lea.vmem %s0, 14
    %v12 = vld [vmem:[%s11] sm:$0x1]
    %13 = vrot.lane.b32.xlu0 %v12, 28
    %v14 = vpop.permute.xlu0 %13
    %vm15 = vcmask 244960
    %16 = vst.msk [vmem:[#allocation0] sm:$0x1] %vm15, %v14
    %s17 = scalar_lea.vmem %s0, 13
    %v18 = vld [vmem:[%s17] sm:$0x1]
    %19 = vrot.lane.b32.xlu0 %v18, 26
    %v20 = vpop.permute.xlu0 %19
    %vm21 = vcmask 228560
    %22 = vst.msk [vmem:[#allocation0] sm:$0x1] %vm21, %v20
    %s23 = scalar_lea.vmem %s0, 12
    %v24 = vld [vmem:[%s23] sm:$0x1]
    %25 = vrot.lane.b32.xlu0 %v24, 24
    %v26 = vpop.permute.xlu0 %25
    %vm27 = vcmask 212160
    %28 = vst.msk [vmem:[#allocation0] sm:$0x1] %vm27, %v26
    %s29 = scalar_lea.vmem %s0, 11
    %v30 = vld [vmem:[%s29] sm:$0x1]
    %31 = vrot.lane.b32.xlu0 %v30, 22
    %v32 = vpop.permute.xlu0 %31
    %vm33 = vcmask 195760
    %34 = vst.msk [vmem:[#allocation0] sm:$0x1] %vm33, %v32
    %s35 = scalar_lea.vmem %s0, 10
    %v36 = vld [vmem:[%s35] sm:$0x1]
    %37 = vrot.lane.b32.xlu0 %v36, 20
    %v38 = vpop.permute.xlu0 %37
    %vm39 = vcmask 179360
    %40 = vst.msk [vmem:[#allocation0] sm:$0x1] %vm39, %v38
    %s41 = scalar_lea.vmem %s0, 9
    %v42 = vld [vmem:[%s41] sm:$0x1]
    %43 = vrot.lane.b32.xlu0 %v42, 18
    %v44 = vpop.permute.xlu0 %43
    %vm45 = vcmask 162960
    %46 = vst.msk [vmem:[#allocation0] sm:$0x1] %vm45, %v44
    %s47 = scalar_lea.vmem %s0, 8
    %v48 = vld [vmem:[%s47] sm:$0x1]
    %49 = vrot.lane.b32.xlu0 %v48, 16
    %v50 = vpop.permute.xlu0 %49
    %vm51 = vcmask 146560
    %52 = vst.msk [vmem:[#allocation0] sm:$0x1] %vm51, %v50
    %s53 = scalar_lea.vmem %s0, 7
    %v54 = vld [vmem:[%s53] sm:$0x1]
    %55 = vrot.lane.b32.xlu0 %v54, 14
    %v56 = vpop.permute.xlu0 %55
    %vm57 = vcmask 130160
    %58 = vst.msk [vmem:[#allocation0] sm:$0x1] %vm57, %v56
    %s59 = scalar_lea.vmem %s0, 6
    %v60 = vld [vmem:[%s59] sm:$0x1]
    %61 = vrot.lane.b32.xlu0 %v60, 12
    %v62 = vpop.permute.xlu0 %61
    %vm63 = vcmask 113760
    %64 = vst.msk [vmem:[#allocation0] sm:$0x1] %vm63, %v62
    %s65 = scalar_lea.vmem %s0, 5
    %v66 = vld [vmem:[%s65] sm:$0x1]
    %67 = vrot.lane.b32.xlu0 %v66, 10
    %v68 = vpop.permute.xlu0 %67
    %vm69 = vcmask 97360
    %70 = vst.msk [vmem:[#allocation0] sm:$0x1] %vm69, %v68
    %s71 = scalar_lea.vmem %s0, 4
    %v72 = vld [vmem:[%s71] sm:$0x1]
    %73 = vrot.lane.b32.xlu0 %v72, 8
    %v74 = vpop.permute.xlu0 %73
    %vm75 = vcmask 80960
    %76 = vst.msk [vmem:[#allocation0] sm:$0x1] %vm75, %v74
    %s77 = scalar_lea.vmem %s0, 3
    %v78 = vld [vmem:[%s77] sm:$0x1]
    %79 = vrot.lane.b32.xlu0 %v78, 6
    %v80 = vpop.permute.xlu0 %79
    %vm81 = vcmask 64560
    %82 = vst.msk [vmem:[#allocation0] sm:$0x1] %vm81, %v80
    %s83 = scalar_lea.vmem %s0, 2
    %v84 = vld [vmem:[%s83] sm:$0x1]
    %85 = vrot.lane.b32.xlu0 %v84, 4
    %v86 = vpop.permute.xlu0 %85
    %vm87 = vcmask 48160
    %88 = vst.msk [vmem:[#allocation0] sm:$0x1] %vm87, %v86
    %s89 = scalar_lea.vmem %s0, 1
    %v90 = vld [vmem:[%s89] sm:$0x1]
    %91 = vrot.lane.b32.xlu0 %v90, 2
    %v92 = vpop.permute.xlu0 %91
    %vm93 = vcmask 31760
    %94 = vst.msk [vmem:[#allocation0] sm:$0x1] %vm93, %v92
    %s96 = sshllo.u32 0, 1
    %v98 = vld [vmem:[#allocation0] sm:%s96]
    %s99 = sshllo.u32 0, 1
    %100 = vst [vmem:[%s1] sm:%s99] %v98

// kernel: tile.84
$region0: #{tile.84}
  #allocation0 [shape = 's32[1]{0}', space=sflag, size = 0x4, scoped, tag = 'scoped memory for tile.84']
  %s0 = inlined_call_operand.vmem [shape: f32[2], index: 0, kind: input, shape index: {}]
  %s1 = inlined_call_operand.vmem [shape: f32[9,2], index: 1, kind: output, shape index: {}]
  // Predicated region
  $region2: #{tile.84} parent=0 // pred_check
    _
  $region3: #{tile.84} parent=0 // pred_check_branch
    %3 = sbr.rel (0) target = $region5
  $region4: #{tile.84} parent=0 // pred_region
    _
  $region5: #{tile.84} parent=0 // pred_fallthru
    _
  %v4 = vld [vmem:[%s0] ss:$0 sm:$0xff]
  %5 = vst [vmem:[%s1] sm:$0xff] %v4
  %s6 = scalar_lea.vmem %s1, 8
  %7 = vst [vmem:[%s6] sm:$0xff] %v4

// kernel: tile.85
$region0: #{tile.85}
  %s0 = inlined_call_operand.vmem [shape: f32[9,2], index: 0, kind: input, shape index: {}]
  %s1 = inlined_call_operand.vmem [shape: f32[1,18], index: 1, kind: output, shape index: {}]
  $region1: #{tile.85} parent=0
    #allocation0 [shape = 'u8[4096]{0}', space=vmem, size = 0x1000, scoped, tag = 'scoped mem for output reshape']
    %v2 = vld [vmem:[%s0] sm:$0x1]
    %vm3 = vcmask 15360
    %4 = vst.msk [vmem:[#allocation0] sm:$0x1] %vm3, %v2
    %s5 = scalar_lea.vmem %s0, 8
    %v6 = vld [vmem:[%s5] sm:$0x1]
    %7 = vrot.lane.b32.xlu0 %v6, 16
    %v8 = vpop.permute.xlu0 %7
    %vm9 = vcmask 146560
    %10 = vst.msk [vmem:[#allocation0] sm:$0x1] %vm9, %v8
    %s11 = scalar_lea.vmem %s0, 7
    %v12 = vld [vmem:[%s11] sm:$0x1]
    %13 = vrot.lane.b32.xlu0 %v12, 14
    %v14 = vpop.permute.xlu0 %13
    %vm15 = vcmask 130160
    %16 = vst.msk [vmem:[#allocation0] sm:$0x1] %vm15, %v14
    %s17 = scalar_lea.vmem %s0, 6
    %v18 = vld [vmem:[%s17] sm:$0x1]
    %19 = vrot.lane.b32.xlu0 %v18, 12
    %v20 = vpop.permute.xlu0 %19
    %vm21 = vcmask 113760
    %22 = vst.msk [vmem:[#allocation0] sm:$0x1] %vm21, %v20
    %s23 = scalar_lea.vmem %s0, 5
    %v24 = vld [vmem:[%s23] sm:$0x1]
    %25 = vrot.lane.b32.xlu0 %v24, 10
    %v26 = vpop.permute.xlu0 %25
    %vm27 = vcmask 97360
    %28 = vst.msk [vmem:[#allocation0] sm:$0x1] %vm27, %v26
    %s29 = scalar_lea.vmem %s0, 4
    %v30 = vld [vmem:[%s29] sm:$0x1]
    %31 = vrot.lane.b32.xlu0 %v30, 8
    %v32 = vpop.permute.xlu0 %31
    %vm33 = vcmask 80960
    %34 = vst.msk [vmem:[#allocation0] sm:$0x1] %vm33, %v32
    %s35 = scalar_lea.vmem %s0, 3
    %v36 = vld [vmem:[%s35] sm:$0x1]
    %37 = vrot.lane.b32.xlu0 %v36, 6
    %v38 = vpop.permute.xlu0 %37
    %vm39 = vcmask 64560
    %40 = vst.msk [vmem:[#allocation0] sm:$0x1] %vm39, %v38
    %s41 = scalar_lea.vmem %s0, 2
    %v42 = vld [vmem:[%s41] sm:$0x1]
    %43 = vrot.lane.b32.xlu0 %v42, 4
    %v44 = vpop.permute.xlu0 %43
    %vm45 = vcmask 48160
    %46 = vst.msk [vmem:[#allocation0] sm:$0x1] %vm45, %v44
    %s47 = scalar_lea.vmem %s0, 1
    %v48 = vld [vmem:[%s47] sm:$0x1]
    %49 = vrot.lane.b32.xlu0 %v48, 2
    %v50 = vpop.permute.xlu0 %49
    %vm51 = vcmask 31760
    %52 = vst.msk [vmem:[#allocation0] sm:$0x1] %vm51, %v50
    %s54 = sshllo.u32 0, 1
    %v56 = vld [vmem:[#allocation0] sm:%s54]
    %s57 = sshllo.u32 0, 1
    %58 = vst [vmem:[%s1] sm:%s57] %v56

// kernel: tile.60
$region0: #{tile.60}
  #allocation0 [shape = 's32[1]{0}', space=sflag, size = 0x4, scoped, tag = 'scoped memory for tile.60']
  %s0 = inlined_call_operand.vmem [shape: f32[8], index: 0, kind: input, shape index: {}]
  %s1 = inlined_call_operand.vmem [shape: f32[16,8], index: 1, kind: output, shape index: {}]
  // Predicated region
  $region2: #{tile.60} parent=0 // pred_check
    _
  $region3: #{tile.60} parent=0 // pred_check_branch
    %3 = sbr.rel (0) target = $region5
  $region4: #{tile.60} parent=0 // pred_region
    _
  $region5: #{tile.60} parent=0 // pred_fallthru
    _
  %v4 = vld [vmem:[%s0] ss:$0 sm:$0xff]
  %5 = vst [vmem:[%s1] sm:$0xff] %v4
  %s6 = scalar_lea.vmem %s1, 8
  %7 = vst [vmem:[%s6] sm:$0xff] %v4

// kernel: tile.61
$region0: #{tile.61}
  %s0 = inlined_call_operand.vmem [shape: f32[16,8], index: 0, kind: input, shape index: {}]
  %s1 = inlined_call_operand.vmem [shape: f32[1,128], index: 1, kind: output, shape index: {}]
  $region1: #{tile.61} parent=0
    #allocation0 [shape = 'u8[4096]{0}', space=vmem, size = 0x1000, scoped, tag = 'scoped mem for output reshape']
    %v2 = vld [vmem:[%s0] sm:$0x1]
    %vm3 = vcmask 64512
    %4 = vst.msk [vmem:[#allocation0] sm:$0x1] %vm3, %v2
    %s5 = scalar_lea.vmem %s0, 15
    %v6 = vld [vmem:[%s5] sm:$0x1]
    %7 = vrot.lane.b32.xlu0 %v6, 120
    %v8 = vpop.permute.xlu0 %7
    %vm9 = vcmask 1048512
    %10 = vst.msk [vmem:[#allocation0] sm:$0x1] %vm9, %v8
    %s11 = scalar_lea.vmem %s0, 14
    %v12 = vld [vmem:[%s11] sm:$0x1]
    %13 = vrot.lane.b32.xlu0 %v12, 112
    %v14 = vpop.permute.xlu0 %13
    %vm15 = vcmask 982912
    %16 = vst.msk [vmem:[#allocation0] sm:$0x1] %vm15, %v14
    %s17 = scalar_lea.vmem %s0, 13
    %v18 = vld [vmem:[%s17] sm:$0x1]
    %19 = vrot.lane.b32.xlu0 %v18, 104
    %v20 = vpop.permute.xlu0 %19
    %vm21 = vcmask 917312
    %22 = vst.msk [vmem:[#allocation0] sm:$0x1] %vm21, %v20
    %s23 = scalar_lea.vmem %s0, 12
    %v24 = vld [vmem:[%s23] sm:$0x1]
    %25 = vrot.lane.b32.xlu0 %v24, 96
    %v26 = vpop.permute.xlu0 %25
    %vm27 = vcmask 851712
    %28 = vst.msk [vmem:[#allocation0] sm:$0x1] %vm27, %v26
    %s29 = scalar_lea.vmem %s0, 11
    %v30 = vld [vmem:[%s29] sm:$0x1]
    %31 = vrot.lane.b32.xlu0 %v30, 88
    %v32 = vpop.permute.xlu0 %31
    %vm33 = vcmask 786112
    %34 = vst.msk [vmem:[#allocation0] sm:$0x1] %vm33, %v32
    %s35 = scalar_lea.vmem %s0, 10
    %v36 = vld [vmem:[%s35] sm:$0x1]
    %37 = vrot.lane.b32.xlu0 %v36, 80
    %v38 = vpop.permute.xlu0 %37
    %vm39 = vcmask 720512
    %40 = vst.msk [vmem:[#allocation0] sm:$0x1] %vm39, %v38
    %s41 = scalar_lea.vmem %s0, 9
    %v42 = vld [vmem:[%s41] sm:$0x1]
    %43 = vrot.lane.b32.xlu0 %v42, 72
    %v44 = vpop.permute.xlu0 %43
    %vm45 = vcmask 654912
    %46 = vst.msk [vmem:[#allocation0] sm:$0x1] %vm45, %v44
    %s47 = scalar_lea.vmem %s0, 8
    %v48 = vld [vmem:[%s47] sm:$0x1]
    %49 = vrot.lane.b32.xlu0 %v48, 64
    %v50 = vpop.permute.xlu0 %49
    %vm51 = vcmask 589312
    %52 = vst.msk [vmem:[#allocation0] sm:$0x1] %vm51, %v50
    %s53 = scalar_lea.vmem %s0, 7
    %v54 = vld [vmem:[%s53] sm:$0x1]
    %55 = vrot.lane.b32.xlu0 %v54, 56
    %v56 = vpop.permute.xlu0 %55
    %vm57 = vcmask 523712
    %58 = vst.msk [vmem:[#allocation0] sm:$0x1] %vm57, %v56
    %s59 = scalar_lea.vmem %s0, 6
    %v60 = vld [vmem:[%s59] sm:$0x1]
    %61 = vrot.lane.b32.xlu0 %v60, 48
    %v62 = vpop.permute.xlu0 %61
    %vm63 = vcmask 458112
    %64 = vst.msk [vmem:[#allocation0] sm:$0x1] %vm63, %v62
    %s65 = scalar_lea.vmem %s0, 5
    %v66 = vld [vmem:[%s65] sm:$0x1]
    %67 = vrot.lane.b32.xlu0 %v66, 40
    %v68 = vpop.permute.xlu0 %67
    %vm69 = vcmask 392512
    %70 = vst.msk [vmem:[#allocation0] sm:$0x1] %vm69, %v68
    %s71 = scalar_lea.vmem %s0, 4
    %v72 = vld [vmem:[%s71] sm:$0x1]
    %73 = vrot.lane.b32.xlu0 %v72, 32
    %v74 = vpop.permute.xlu0 %73
    %vm75 = vcmask 326912
    %76 = vst.msk [vmem:[#allocation0] sm:$0x1] %vm75, %v74
    %s77 = scalar_lea.vmem %s0, 3
    %v78 = vld [vmem:[%s77] sm:$0x1]
    %79 = vrot.lane.b32.xlu0 %v78, 24
    %v80 = vpop.permute.xlu0 %79
    %vm81 = vcmask 261312
    %82 = vst.msk [vmem:[#allocation0] sm:$0x1] %vm81, %v80
    %s83 = scalar_lea.vmem %s0, 2
    %v84 = vld [vmem:[%s83] sm:$0x1]
    %85 = vrot.lane.b32.xlu0 %v84, 16
    %v86 = vpop.permute.xlu0 %85
    %vm87 = vcmask 195712
    %88 = vst.msk [vmem:[#allocation0] sm:$0x1] %vm87, %v86
    %s89 = scalar_lea.vmem %s0, 1
    %v90 = vld [vmem:[%s89] sm:$0x1]
    %91 = vrot.lane.b32.xlu0 %v90, 8
    %v92 = vpop.permute.xlu0 %91
    %vm93 = vcmask 130112
    %94 = vst.msk [vmem:[#allocation0] sm:$0x1] %vm93, %v92
    %s96 = sshllo.u32 0, 1
    %v98 = vld [vmem:[#allocation0] sm:%s96]
    %s99 = sshllo.u32 0, 1
    %100 = vst [vmem:[%s1] sm:%s99] %v98

// kernel: tile.45
$region0: #{tile.45}
  #allocation0 [shape = 's32[1]{0}', space=sflag, size = 0x4, scoped, tag = 'scoped memory for tile.45']
  %s0 = inlined_call_operand.<no memory space> [shape: f32[], index: 0, kind: input, shape index: {}]
  %s1 = inlined_call_operand.vmem [shape: f32[1,32], index: 1, kind: output, shape index: {}]
  %v2 = vstv %s0
  %3 = vst [vmem:[%s1] sm:$0x1] %v2

// kernel: fastfc_forward.1
$region0: #{fastfc_forward.1}
  #allocation0 [shape = 'u32[]', space=smem, size = 0x4, offset = 0x4, fixed_abs, tag = 'smem constant byte address 0x4 - core index']
  #allocation1 [shape = 'u32[144,128]{1,0:T(1,128)}', space=vmem, size = 0x12000, scoped, tag = 'internal scratch']
  %s0 = inlined_call_operand.vmem [shape: f32[2,16,64], index: 0, kind: input, shape index: {}]
  %s1 = inlined_call_operand.vmem [shape: f32[2,16,64], index: 1, kind: input, shape index: {}]
  %s2 = inlined_call_operand.vmem [shape: f32[6,16,16], index: 2, kind: input, shape index: {}]
  %s3 = inlined_call_operand.vmem [shape: f32[192,128], index: 3, kind: input, shape index: {}]
  %s4 = inlined_call_operand.vmem [shape: f32[1,128], index: 4, kind: input, shape index: {}]
  %s5 = inlined_call_operand.vmem [shape: f32[192,64], index: 5, kind: input, shape index: {}]
  %s6 = inlined_call_operand.vmem [shape: f32[1,64], index: 6, kind: input, shape index: {}]
  %s7 = inlined_call_operand.vmem [shape: f32[1,64], index: 7, kind: input, shape index: {}]
  %s8 = inlined_call_operand.vmem [shape: f32[1,64], index: 8, kind: input, shape index: {}]
  %s9 = inlined_call_operand.vmem [shape: f32[1,64], index: 9, kind: input, shape index: {}, may-alias: {9,22}]
  %s10 = inlined_call_operand.vmem [shape: f32[64,32], index: 10, kind: input, shape index: {}]
  %s11 = inlined_call_operand.vmem [shape: f32[1,32], index: 11, kind: input, shape index: {}]
  %s12 = inlined_call_operand.vmem [shape: f32[1,32], index: 12, kind: input, shape index: {}]
  %s13 = inlined_call_operand.vmem [shape: f32[2,32,18], index: 13, kind: input, shape index: {}]
  %s14 = inlined_call_operand.vmem [shape: f32[18,18], index: 14, kind: input, shape index: {}]
  %s15 = inlined_call_operand.vmem [shape: f32[1,18], index: 15, kind: input, shape index: {}]
  %s16 = inlined_call_operand.vmem [shape: f32[1,18], index: 16, kind: input, shape index: {}]
  %s17 = inlined_call_operand.vmem [shape: f32[2,18,32], index: 17, kind: input, shape index: {}]
  %s18 = inlined_call_operand.vmem [shape: f32[32,64], index: 18, kind: input, shape index: {}]
  %s19 = inlined_call_operand.vmem [shape: f32[1,64], index: 19, kind: input, shape index: {}]
  %s20 = inlined_call_operand.vmem [shape: f32[1,64], index: 20, kind: input, shape index: {}]
  %s21 = inlined_call_operand.vmem [shape: f32[1,64], index: 21, kind: input, shape index: {}]
  %s22 = inlined_call_operand.vmem [shape: f32[1,64], index: 22, kind: input, shape index: {}, may-alias: {9,22}]
  %s23 = inlined_call_operand.vmem [shape: f32[192,128], index: 23, kind: input, shape index: {}]
  %s24 = inlined_call_operand.vmem [shape: f32[192,128], index: 24, kind: input, shape index: {}]
  %s25 = inlined_call_operand.vmem [shape: f32[1,128], index: 25, kind: input, shape index: {}]
  %s26 = inlined_call_operand.vmem [shape: f32[2,16,128], index: 26, kind: output, shape index: {0}]
  %s27 = inlined_call_operand.vmem [shape: f32[2,16,128], index: 27, kind: output, shape index: {1}]
  %28 = xla_tuple %s26, %s27
  %s29 = sld [smem:[#allocation0]]
  $region145: #{fastfc_forward.1} parent=0
    _
  %s31 = ssub.s32 1, %s29
  %s32 = scalar_select 0, %s31, %s29
  loop: start=0, step=1, limit=4
  $region2: #{fastfc_forward.1} parent=0 // loop_pre_header
    _
  $region3: #{fastfc_forward.1} parent=0 // loop_header
    %s34 = sphi 0, %s38
    %p35 = scmp.ge.s32.totalorder %s34, 4
    %s44 = sphi 0, %s46
    %s47 = sphi 0, %s44
    %s48 = sphi 0, %s47
    %s64 = sphi 0, %s48
    %s70 = sphi 0, %s72
    %s73 = sphi 0, %s70
    %s74 = sphi 0, %s73
    %s90 = sphi 0, %s74
    %s94 = sphi 0, %s94
    %s96 = sphi 0, %s94
    %s97 = sphi 0, %s96
    %s111 = sphi 0, %s97
    %s115 = sphi 0, %s115
    %s117 = sphi 0, %s115
    %s118 = sphi 0, %s117
    %s132 = sphi 0, %s118
    %s136 = sphi 0, %s136
    %s138 = sphi 0, %s136
    %s139 = sphi 0, %s138
    %s153 = sphi 0, %s139
    %s157 = sphi 0, %s157
    %s159 = sphi 0, %s157
    %s160 = sphi 0, %s159
    %s174 = sphi 0, %s160
    %s178 = sphi 0, %s178
    %s180 = sphi 0, %s178
    %s181 = sphi 0, %s180
    %s195 = sphi 0, %s181
    %s199 = sphi 0, %s199
    %s201 = sphi 0, %s199
    %s202 = sphi 0, %s201
    %s216 = sphi 0, %s202
    %s220 = sphi 0, %s220
    %s222 = sphi 0, %s220
    %s223 = sphi 0, %s222
    %s237 = sphi 0, %s223
    %s241 = sphi 0, %s241
    %s243 = sphi 0, %s241
    %s244 = sphi 0, %s243
    %s258 = sphi 0, %s244
    %s262 = sphi 0, %s262
    %s264 = sphi 0, %s262
    %s265 = sphi 0, %s264
    %s279 = sphi 0, %s265
    %s283 = sphi 0, %s283
    %s285 = sphi 0, %s283
    %s286 = sphi 0, %s285
    %s300 = sphi 0, %s286
    %s304 = sphi 0, %s304
    %s306 = sphi 0, %s304
    %s307 = sphi 0, %s306
    %s321 = sphi 0, %s307
    %s325 = sphi 0, %s325
    %s327 = sphi 0, %s325
    %s328 = sphi 0, %s327
    %s342 = sphi 0, %s328
    %s346 = sphi 0, %s346
    %s348 = sphi 0, %s346
    %s349 = sphi 0, %s348
    %s363 = sphi 0, %s349
    %s367 = sphi 0, %s367
    %s369 = sphi 0, %s367
    %s370 = sphi 0, %s369
    %s384 = sphi 0, %s370
    %s388 = sphi 0, %s388
    %s390 = sphi 0, %s388
    %s391 = sphi 0, %s390
    %s405 = sphi 0, %s391
    %s409 = sphi 0, %s409
    %s411 = sphi 0, %s409
    %s412 = sphi 0, %s411
    %s426 = sphi 0, %s412
    %s430 = sphi 0, %s430
    %s432 = sphi 0, %s430
    %s433 = sphi 0, %s432
    %s447 = sphi 0, %s433
    %s451 = sphi 0, %s451
    %s453 = sphi 0, %s451
    %s454 = sphi 0, %s453
    %s468 = sphi 0, %s454
    %s472 = sphi 0, %s472
    %s474 = sphi 0, %s472
    %s475 = sphi 0, %s474
    %s489 = sphi 0, %s475
    %s493 = sphi 0, %s493
    %s495 = sphi 0, %s493
    %s496 = sphi 0, %s495
    %s510 = sphi 0, %s496
    %s514 = sphi 0, %s514
    %s516 = sphi 0, %s514
    %s517 = sphi 0, %s516
    %s531 = sphi 0, %s517
    %s535 = sphi 0, %s535
    %s537 = sphi 0, %s535
    %s538 = sphi 0, %s537
    %s552 = sphi 0, %s538
    %s556 = sphi 0, %s556
    %s558 = sphi 0, %s556
    %s559 = sphi 0, %s558
    %s573 = sphi 0, %s559
    %s577 = sphi 0, %s577
    %s579 = sphi 0, %s577
    %s580 = sphi 0, %s579
    %s594 = sphi 0, %s580
    %s600 = sphi 0, %s602
    %s603 = sphi 0, %s600
    %s604 = sphi 0, %s603
    %s620 = sphi 0, %s604
    %s626 = sphi 0, %s628
    %s629 = sphi 0, %s626
    %s630 = sphi 0, %s629
    %s646 = sphi 0, %s630
  $region4: #{fastfc_forward.1} parent=0 // loop_header_branch
    %37 = sbr.rel (%p35) target = $region8
  $region5: #{fastfc_forward.1} parent=0 // loop_body
    %s39 = ssub.s32 %s34, 1
    %s40 = ssub.s32 %s34, 2
    %s41 = sadd.s32 %s34, 1
    %s42 = ssub.s32 %s34, %s41
    %p43 = scmp.eq.s32.totalorder %s42, 0
    %s45 = sadd.s32 %s44, 1
    %s46 = scalar_select %p43, %s44, %s45
    %p49 = pneg %p43
    %p50 = scmp.eq.s32.totalorder %s34, 1
    %p51 = por %p49, %p50
    %p52 = scmp.ne.s32.totalorder %s44, %s47
    %p53 = scmp.eq.s32.totalorder %s34, 0
    %p54 = por %p52, %p53
    %p55 = scmp.ne.s32.totalorder %s44, %s47
    %p56 = scmp.eq.s32.totalorder %s39, 1
    %p57 = por %p55, %p56
    %p58 = scmp.ne.s32.totalorder %s47, %s48
    %p59 = scmp.eq.s32.totalorder %s39, 0
    %p60 = por %p58, %p59
    %p61 = scmp.ne.s32.totalorder %s47, %s48
    %p62 = scmp.eq.s32.totalorder %s40, 1
    %p63 = por %p61, %p62
    %p65 = scmp.ne.s32.totalorder %s48, %s64
    %p66 = scmp.eq.s32.totalorder %s40, 0
    %p67 = por %p65, %p66
    %s68 = ssub.s32 %s34, %s41
    %p69 = scmp.eq.s32.totalorder %s68, 0
    %s71 = sadd.s32 %s70, 1
    %s72 = scalar_select %p69, %s70, %s71
    %p75 = pneg %p69
    %p76 = scmp.eq.s32.totalorder %s34, 1
    %p77 = por %p75, %p76
    %p78 = scmp.ne.s32.totalorder %s70, %s73
    %p79 = scmp.eq.s32.totalorder %s34, 0
    %p80 = por %p78, %p79
    %p81 = scmp.ne.s32.totalorder %s70, %s73
    %p82 = scmp.eq.s32.totalorder %s39, 1
    %p83 = por %p81, %p82
    %p84 = scmp.ne.s32.totalorder %s73, %s74
    %p85 = scmp.eq.s32.totalorder %s39, 0
    %p86 = por %p84, %p85
    %p87 = scmp.ne.s32.totalorder %s73, %s74
    %p88 = scmp.eq.s32.totalorder %s40, 1
    %p89 = por %p87, %p88
    %p91 = scmp.ne.s32.totalorder %s74, %s90
    %p92 = scmp.eq.s32.totalorder %s40, 0
    %p93 = por %p91, %p92
    %s95 = sadd.s32 %s94, 1
    %p98 = scmp.eq.s32.totalorder %s34, 1
    %p99 = scmp.ne.s32.totalorder %s94, %s96
    %p100 = scmp.eq.s32.totalorder %s34, 0
    %p101 = por %p99, %p100
    %p102 = scmp.ne.s32.totalorder %s94, %s96
    %p103 = scmp.eq.s32.totalorder %s39, 1
    %p104 = por %p102, %p103
    %p105 = scmp.ne.s32.totalorder %s96, %s97
    %p106 = scmp.eq.s32.totalorder %s39, 0
    %p107 = por %p105, %p106
    %p108 = scmp.ne.s32.totalorder %s96, %s97
    %p109 = scmp.eq.s32.totalorder %s40, 1
    %p110 = por %p108, %p109
    %p112 = scmp.ne.s32.totalorder %s97, %s111
    %p113 = scmp.eq.s32.totalorder %s40, 0
    %p114 = por %p112, %p113
    %s116 = sadd.s32 %s115, 1
    %p119 = scmp.eq.s32.totalorder %s34, 1
    %p120 = scmp.ne.s32.totalorder %s115, %s117
    %p121 = scmp.eq.s32.totalorder %s34, 0
    %p122 = por %p120, %p121
    %p123 = scmp.ne.s32.totalorder %s115, %s117
    %p124 = scmp.eq.s32.totalorder %s39, 1
    %p125 = por %p123, %p124
    %p126 = scmp.ne.s32.totalorder %s117, %s118
    %p127 = scmp.eq.s32.totalorder %s39, 0
    %p128 = por %p126, %p127
    %p129 = scmp.ne.s32.totalorder %s117, %s118
    %p130 = scmp.eq.s32.totalorder %s40, 1
    %p131 = por %p129, %p130
    %p133 = scmp.ne.s32.totalorder %s118, %s132
    %p134 = scmp.eq.s32.totalorder %s40, 0
    %p135 = por %p133, %p134
    %s137 = sadd.s32 %s136, 1
    %p140 = scmp.eq.s32.totalorder %s34, 1
    %p141 = scmp.ne.s32.totalorder %s136, %s138
    %p142 = scmp.eq.s32.totalorder %s34, 0
    %p143 = por %p141, %p142
    %p144 = scmp.ne.s32.totalorder %s136, %s138
    %p145 = scmp.eq.s32.totalorder %s39, 1
    %p146 = por %p144, %p145
    %p147 = scmp.ne.s32.totalorder %s138, %s139
    %p148 = scmp.eq.s32.totalorder %s39, 0
    %p149 = por %p147, %p148
    %p150 = scmp.ne.s32.totalorder %s138, %s139
    %p151 = scmp.eq.s32.totalorder %s40, 1
    %p152 = por %p150, %p151
    %p154 = scmp.ne.s32.totalorder %s139, %s153
    %p155 = scmp.eq.s32.totalorder %s40, 0
    %p156 = por %p154, %p155
    %s158 = sadd.s32 %s157, 1
    %p161 = scmp.eq.s32.totalorder %s34, 1
    %p162 = scmp.ne.s32.totalorder %s157, %s159
    %p163 = scmp.eq.s32.totalorder %s34, 0
    %p164 = por %p162, %p163
    %p165 = scmp.ne.s32.totalorder %s157, %s159
    %p166 = scmp.eq.s32.totalorder %s39, 1
    %p167 = por %p165, %p166
    %p168 = scmp.ne.s32.totalorder %s159, %s160
    %p169 = scmp.eq.s32.totalorder %s39, 0
    %p170 = por %p168, %p169
    %p171 = scmp.ne.s32.totalorder %s159, %s160
    %p172 = scmp.eq.s32.totalorder %s40, 1
    %p173 = por %p171, %p172
    %p175 = scmp.ne.s32.totalorder %s160, %s174
    %p176 = scmp.eq.s32.totalorder %s40, 0
    %p177 = por %p175, %p176
    %s179 = sadd.s32 %s178, 1
    %p182 = scmp.eq.s32.totalorder %s34, 1
    %p183 = scmp.ne.s32.totalorder %s178, %s180
    %p184 = scmp.eq.s32.totalorder %s34, 0
    %p185 = por %p183, %p184
    %p186 = scmp.ne.s32.totalorder %s178, %s180
    %p187 = scmp.eq.s32.totalorder %s39, 1
    %p188 = por %p186, %p187
    %p189 = scmp.ne.s32.totalorder %s180, %s181
    %p190 = scmp.eq.s32.totalorder %s39, 0
    %p191 = por %p189, %p190
    %p192 = scmp.ne.s32.totalorder %s180, %s181
    %p193 = scmp.eq.s32.totalorder %s40, 1
    %p194 = por %p192, %p193
    %p196 = scmp.ne.s32.totalorder %s181, %s195
    %p197 = scmp.eq.s32.totalorder %s40, 0
    %p198 = por %p196, %p197
    %s200 = sadd.s32 %s199, 1
    %p203 = scmp.eq.s32.totalorder %s34, 1
    %p204 = scmp.ne.s32.totalorder %s199, %s201
    %p205 = scmp.eq.s32.totalorder %s34, 0
    %p206 = por %p204, %p205
    %p207 = scmp.ne.s32.totalorder %s199, %s201
    %p208 = scmp.eq.s32.totalorder %s39, 1
    %p209 = por %p207, %p208
    %p210 = scmp.ne.s32.totalorder %s201, %s202
    %p211 = scmp.eq.s32.totalorder %s39, 0
    %p212 = por %p210, %p211
    %p213 = scmp.ne.s32.totalorder %s201, %s202
    %p214 = scmp.eq.s32.totalorder %s40, 1
    %p215 = por %p213, %p214
    %p217 = scmp.ne.s32.totalorder %s202, %s216
    %p218 = scmp.eq.s32.totalorder %s40, 0
    %p219 = por %p217, %p218
    %s221 = sadd.s32 %s220, 1
    %p224 = scmp.eq.s32.totalorder %s34, 1
    %p225 = scmp.ne.s32.totalorder %s220, %s222
    %p226 = scmp.eq.s32.totalorder %s34, 0
    %p227 = por %p225, %p226
    %p228 = scmp.ne.s32.totalorder %s220, %s222
    %p229 = scmp.eq.s32.totalorder %s39, 1
    %p230 = por %p228, %p229
    %p231 = scmp.ne.s32.totalorder %s222, %s223
    %p232 = scmp.eq.s32.totalorder %s39, 0
    %p233 = por %p231, %p232
    %p234 = scmp.ne.s32.totalorder %s222, %s223
    %p235 = scmp.eq.s32.totalorder %s40, 1
    %p236 = por %p234, %p235
    %p238 = scmp.ne.s32.totalorder %s223, %s237
    %p239 = scmp.eq.s32.totalorder %s40, 0
    %p240 = por %p238, %p239
    %s242 = sadd.s32 %s241, 1
    %p245 = scmp.eq.s32.totalorder %s34, 1
    %p246 = scmp.ne.s32.totalorder %s241, %s243
    %p247 = scmp.eq.s32.totalorder %s34, 0
    %p248 = por %p246, %p247
    %p249 = scmp.ne.s32.totalorder %s241, %s243
    %p250 = scmp.eq.s32.totalorder %s39, 1
    %p251 = por %p249, %p250
    %p252 = scmp.ne.s32.totalorder %s243, %s244
    %p253 = scmp.eq.s32.totalorder %s39, 0
    %p254 = por %p252, %p253
    %p255 = scmp.ne.s32.totalorder %s243, %s244
    %p256 = scmp.eq.s32.totalorder %s40, 1
    %p257 = por %p255, %p256
    %p259 = scmp.ne.s32.totalorder %s244, %s258
    %p260 = scmp.eq.s32.totalorder %s40, 0
    %p261 = por %p259, %p260
    %s263 = sadd.s32 %s262, 1
    %p266 = scmp.eq.s32.totalorder %s34, 1
    %p267 = scmp.ne.s32.totalorder %s262, %s264
    %p268 = scmp.eq.s32.totalorder %s34, 0
    %p269 = por %p267, %p268
    %p270 = scmp.ne.s32.totalorder %s262, %s264
    %p271 = scmp.eq.s32.totalorder %s39, 1
    %p272 = por %p270, %p271
    %p273 = scmp.ne.s32.totalorder %s264, %s265
    %p274 = scmp.eq.s32.totalorder %s39, 0
    %p275 = por %p273, %p274
    %p276 = scmp.ne.s32.totalorder %s264, %s265
    %p277 = scmp.eq.s32.totalorder %s40, 1
    %p278 = por %p276, %p277
    %p280 = scmp.ne.s32.totalorder %s265, %s279
    %p281 = scmp.eq.s32.totalorder %s40, 0
    %p282 = por %p280, %p281
    %s284 = sadd.s32 %s283, 1
    %p287 = scmp.eq.s32.totalorder %s34, 1
    %p288 = scmp.ne.s32.totalorder %s283, %s285
    %p289 = scmp.eq.s32.totalorder %s34, 0
    %p290 = por %p288, %p289
    %p291 = scmp.ne.s32.totalorder %s283, %s285
    %p292 = scmp.eq.s32.totalorder %s39, 1
    %p293 = por %p291, %p292
    %p294 = scmp.ne.s32.totalorder %s285, %s286
    %p295 = scmp.eq.s32.totalorder %s39, 0
    %p296 = por %p294, %p295
    %p297 = scmp.ne.s32.totalorder %s285, %s286
    %p298 = scmp.eq.s32.totalorder %s40, 1
    %p299 = por %p297, %p298
    %p301 = scmp.ne.s32.totalorder %s286, %s300
    %p302 = scmp.eq.s32.totalorder %s40, 0
    %p303 = por %p301, %p302
    %s305 = sadd.s32 %s304, 1
    %p308 = scmp.eq.s32.totalorder %s34, 1
    %p309 = scmp.ne.s32.totalorder %s304, %s306
    %p310 = scmp.eq.s32.totalorder %s34, 0
    %p311 = por %p309, %p310
    %p312 = scmp.ne.s32.totalorder %s304, %s306
    %p313 = scmp.eq.s32.totalorder %s39, 1
    %p314 = por %p312, %p313
    %p315 = scmp.ne.s32.totalorder %s306, %s307
    %p316 = scmp.eq.s32.totalorder %s39, 0
    %p317 = por %p315, %p316
    %p318 = scmp.ne.s32.totalorder %s306, %s307
    %p319 = scmp.eq.s32.totalorder %s40, 1
    %p320 = por %p318, %p319
    %p322 = scmp.ne.s32.totalorder %s307, %s321
    %p323 = scmp.eq.s32.totalorder %s40, 0
    %p324 = por %p322, %p323
    %s326 = sadd.s32 %s325, 1
    %p329 = scmp.eq.s32.totalorder %s34, 1
    %p330 = scmp.ne.s32.totalorder %s325, %s327
    %p331 = scmp.eq.s32.totalorder %s34, 0
    %p332 = por %p330, %p331
    %p333 = scmp.ne.s32.totalorder %s325, %s327
    %p334 = scmp.eq.s32.totalorder %s39, 1
    %p335 = por %p333, %p334
    %p336 = scmp.ne.s32.totalorder %s327, %s328
    %p337 = scmp.eq.s32.totalorder %s39, 0
    %p338 = por %p336, %p337
    %p339 = scmp.ne.s32.totalorder %s327, %s328
    %p340 = scmp.eq.s32.totalorder %s40, 1
    %p341 = por %p339, %p340
    %p343 = scmp.ne.s32.totalorder %s328, %s342
    %p344 = scmp.eq.s32.totalorder %s40, 0
    %p345 = por %p343, %p344
    %s347 = sadd.s32 %s346, 1
    %p350 = scmp.eq.s32.totalorder %s34, 1
    %p351 = scmp.ne.s32.totalorder %s346, %s348
    %p352 = scmp.eq.s32.totalorder %s34, 0
    %p353 = por %p351, %p352
    %p354 = scmp.ne.s32.totalorder %s346, %s348
    %p355 = scmp.eq.s32.totalorder %s39, 1
    %p356 = por %p354, %p355
    %p357 = scmp.ne.s32.totalorder %s348, %s349
    %p358 = scmp.eq.s32.totalorder %s39, 0
    %p359 = por %p357, %p358
    %p360 = scmp.ne.s32.totalorder %s348, %s349
    %p361 = scmp.eq.s32.totalorder %s40, 1
    %p362 = por %p360, %p361
    %p364 = scmp.ne.s32.totalorder %s349, %s363
    %p365 = scmp.eq.s32.totalorder %s40, 0
    %p366 = por %p364, %p365
    %s368 = sadd.s32 %s367, 1
    %p371 = scmp.eq.s32.totalorder %s34, 1
    %p372 = scmp.ne.s32.totalorder %s367, %s369
    %p373 = scmp.eq.s32.totalorder %s34, 0
    %p374 = por %p372, %p373
    %p375 = scmp.ne.s32.totalorder %s367, %s369
    %p376 = scmp.eq.s32.totalorder %s39, 1
    %p377 = por %p375, %p376
    %p378 = scmp.ne.s32.totalorder %s369, %s370
    %p379 = scmp.eq.s32.totalorder %s39, 0
    %p380 = por %p378, %p379
    %p381 = scmp.ne.s32.totalorder %s369, %s370
    %p382 = scmp.eq.s32.totalorder %s40, 1
    %p383 = por %p381, %p382
    %p385 = scmp.ne.s32.totalorder %s370, %s384
    %p386 = scmp.eq.s32.totalorder %s40, 0
    %p387 = por %p385, %p386
    %s389 = sadd.s32 %s388, 1
    %p392 = scmp.eq.s32.totalorder %s34, 1
    %p393 = scmp.ne.s32.totalorder %s388, %s390
    %p394 = scmp.eq.s32.totalorder %s34, 0
    %p395 = por %p393, %p394
    %p396 = scmp.ne.s32.totalorder %s388, %s390
    %p397 = scmp.eq.s32.totalorder %s39, 1
    %p398 = por %p396, %p397
    %p399 = scmp.ne.s32.totalorder %s390, %s391
    %p400 = scmp.eq.s32.totalorder %s39, 0
    %p401 = por %p399, %p400
    %p402 = scmp.ne.s32.totalorder %s390, %s391
    %p403 = scmp.eq.s32.totalorder %s40, 1
    %p404 = por %p402, %p403
    %p406 = scmp.ne.s32.totalorder %s391, %s405
    %p407 = scmp.eq.s32.totalorder %s40, 0
    %p408 = por %p406, %p407
    %s410 = sadd.s32 %s409, 1
    %p413 = scmp.eq.s32.totalorder %s34, 1
    %p414 = scmp.ne.s32.totalorder %s409, %s411
    %p415 = scmp.eq.s32.totalorder %s34, 0
    %p416 = por %p414, %p415
    %p417 = scmp.ne.s32.totalorder %s409, %s411
    %p418 = scmp.eq.s32.totalorder %s39, 1
    %p419 = por %p417, %p418
    %p420 = scmp.ne.s32.totalorder %s411, %s412
    %p421 = scmp.eq.s32.totalorder %s39, 0
    %p422 = por %p420, %p421
    %p423 = scmp.ne.s32.totalorder %s411, %s412
    %p424 = scmp.eq.s32.totalorder %s40, 1
    %p425 = por %p423, %p424
    %p427 = scmp.ne.s32.totalorder %s412, %s426
    %p428 = scmp.eq.s32.totalorder %s40, 0
    %p429 = por %p427, %p428
    %s431 = sadd.s32 %s430, 1
    %p434 = scmp.eq.s32.totalorder %s34, 1
    %p435 = scmp.ne.s32.totalorder %s430, %s432
    %p436 = scmp.eq.s32.totalorder %s34, 0
    %p437 = por %p435, %p436
    %p438 = scmp.ne.s32.totalorder %s430, %s432
    %p439 = scmp.eq.s32.totalorder %s39, 1
    %p440 = por %p438, %p439
    %p441 = scmp.ne.s32.totalorder %s432, %s433
    %p442 = scmp.eq.s32.totalorder %s39, 0
    %p443 = por %p441, %p442
    %p444 = scmp.ne.s32.totalorder %s432, %s433
    %p445 = scmp.eq.s32.totalorder %s40, 1
    %p446 = por %p444, %p445
    %p448 = scmp.ne.s32.totalorder %s433, %s447
    %p449 = scmp.eq.s32.totalorder %s40, 0
    %p450 = por %p448, %p449
    %s452 = sadd.s32 %s451, 1
    %p455 = scmp.eq.s32.totalorder %s34, 1
    %p456 = scmp.ne.s32.totalorder %s451, %s453
    %p457 = scmp.eq.s32.totalorder %s34, 0
    %p458 = por %p456, %p457
    %p459 = scmp.ne.s32.totalorder %s451, %s453
    %p460 = scmp.eq.s32.totalorder %s39, 1
    %p461 = por %p459, %p460
    %p462 = scmp.ne.s32.totalorder %s453, %s454
    %p463 = scmp.eq.s32.totalorder %s39, 0
    %p464 = por %p462, %p463
    %p465 = scmp.ne.s32.totalorder %s453, %s454
    %p466 = scmp.eq.s32.totalorder %s40, 1
    %p467 = por %p465, %p466
    %p469 = scmp.ne.s32.totalorder %s454, %s468
    %p470 = scmp.eq.s32.totalorder %s40, 0
    %p471 = por %p469, %p470
    %s473 = sadd.s32 %s472, 1
    %p476 = scmp.eq.s32.totalorder %s34, 1
    %p477 = scmp.ne.s32.totalorder %s472, %s474
    %p478 = scmp.eq.s32.totalorder %s34, 0
    %p479 = por %p477, %p478
    %p480 = scmp.ne.s32.totalorder %s472, %s474
    %p481 = scmp.eq.s32.totalorder %s39, 1
    %p482 = por %p480, %p481
    %p483 = scmp.ne.s32.totalorder %s474, %s475
    %p484 = scmp.eq.s32.totalorder %s39, 0
    %p485 = por %p483, %p484
    %p486 = scmp.ne.s32.totalorder %s474, %s475
    %p487 = scmp.eq.s32.totalorder %s40, 1
    %p488 = por %p486, %p487
    %p490 = scmp.ne.s32.totalorder %s475, %s489
    %p491 = scmp.eq.s32.totalorder %s40, 0
    %p492 = por %p490, %p491
    %s494 = sadd.s32 %s493, 1
    %p497 = scmp.eq.s32.totalorder %s34, 1
    %p498 = scmp.ne.s32.totalorder %s493, %s495
    %p499 = scmp.eq.s32.totalorder %s34, 0
    %p500 = por %p498, %p499
    %p501 = scmp.ne.s32.totalorder %s493, %s495
    %p502 = scmp.eq.s32.totalorder %s39, 1
    %p503 = por %p501, %p502
    %p504 = scmp.ne.s32.totalorder %s495, %s496
    %p505 = scmp.eq.s32.totalorder %s39, 0
    %p506 = por %p504, %p505
    %p507 = scmp.ne.s32.totalorder %s495, %s496
    %p508 = scmp.eq.s32.totalorder %s40, 1
    %p509 = por %p507, %p508
    %p511 = scmp.ne.s32.totalorder %s496, %s510
    %p512 = scmp.eq.s32.totalorder %s40, 0
    %p513 = por %p511, %p512
    %s515 = sadd.s32 %s514, 1
    %p518 = scmp.eq.s32.totalorder %s34, 1
    %p519 = scmp.ne.s32.totalorder %s514, %s516
    %p520 = scmp.eq.s32.totalorder %s34, 0
    %p521 = por %p519, %p520
    %p522 = scmp.ne.s32.totalorder %s514, %s516
    %p523 = scmp.eq.s32.totalorder %s39, 1
    %p524 = por %p522, %p523
    %p525 = scmp.ne.s32.totalorder %s516, %s517
    %p526 = scmp.eq.s32.totalorder %s39, 0
    %p527 = por %p525, %p526
    %p528 = scmp.ne.s32.totalorder %s516, %s517
    %p529 = scmp.eq.s32.totalorder %s40, 1
    %p530 = por %p528, %p529
    %p532 = scmp.ne.s32.totalorder %s517, %s531
    %p533 = scmp.eq.s32.totalorder %s40, 0
    %p534 = por %p532, %p533
    %s536 = sadd.s32 %s535, 1
    %p539 = scmp.eq.s32.totalorder %s34, 1
    %p540 = scmp.ne.s32.totalorder %s535, %s537
    %p541 = scmp.eq.s32.totalorder %s34, 0
    %p542 = por %p540, %p541
    %p543 = scmp.ne.s32.totalorder %s535, %s537
    %p544 = scmp.eq.s32.totalorder %s39, 1
    %p545 = por %p543, %p544
    %p546 = scmp.ne.s32.totalorder %s537, %s538
    %p547 = scmp.eq.s32.totalorder %s39, 0
    %p548 = por %p546, %p547
    %p549 = scmp.ne.s32.totalorder %s537, %s538
    %p550 = scmp.eq.s32.totalorder %s40, 1
    %p551 = por %p549, %p550
    %p553 = scmp.ne.s32.totalorder %s538, %s552
    %p554 = scmp.eq.s32.totalorder %s40, 0
    %p555 = por %p553, %p554
    %s557 = sadd.s32 %s556, 1
    %p560 = scmp.eq.s32.totalorder %s34, 1
    %p561 = scmp.ne.s32.totalorder %s556, %s558
    %p562 = scmp.eq.s32.totalorder %s34, 0
    %p563 = por %p561, %p562
    %p564 = scmp.ne.s32.totalorder %s556, %s558
    %p565 = scmp.eq.s32.totalorder %s39, 1
    %p566 = por %p564, %p565
    %p567 = scmp.ne.s32.totalorder %s558, %s559
    %p568 = scmp.eq.s32.totalorder %s39, 0
    %p569 = por %p567, %p568
    %p570 = scmp.ne.s32.totalorder %s558, %s559
    %p571 = scmp.eq.s32.totalorder %s40, 1
    %p572 = por %p570, %p571
    %p574 = scmp.ne.s32.totalorder %s559, %s573
    %p575 = scmp.eq.s32.totalorder %s40, 0
    %p576 = por %p574, %p575
    %s578 = sadd.s32 %s577, 1
    %p581 = scmp.eq.s32.totalorder %s34, 1
    %p582 = scmp.ne.s32.totalorder %s577, %s579
    %p583 = scmp.eq.s32.totalorder %s34, 0
    %p584 = por %p582, %p583
    %p585 = scmp.ne.s32.totalorder %s577, %s579
    %p586 = scmp.eq.s32.totalorder %s39, 1
    %p587 = por %p585, %p586
    %p588 = scmp.ne.s32.totalorder %s579, %s580
    %p589 = scmp.eq.s32.totalorder %s39, 0
    %p590 = por %p588, %p589
    %p591 = scmp.ne.s32.totalorder %s579, %s580
    %p592 = scmp.eq.s32.totalorder %s40, 1
    %p593 = por %p591, %p592
    %p595 = scmp.ne.s32.totalorder %s580, %s594
    %p596 = scmp.eq.s32.totalorder %s40, 0
    %p597 = por %p595, %p596
    %s598 = ssub.s32 %s34, %s41
    %p599 = scmp.eq.s32.totalorder %s598, 0
    %s601 = sadd.s32 %s600, 1
    %s602 = scalar_select %p599, %s600, %s601
    %p605 = pneg %p599
    %p606 = scmp.eq.s32.totalorder %s34, 1
    %p607 = por %p605, %p606
    %p608 = scmp.ne.s32.totalorder %s600, %s603
    %p609 = scmp.eq.s32.totalorder %s34, 0
    %p610 = por %p608, %p609
    %p611 = scmp.ne.s32.totalorder %s600, %s603
    %p612 = scmp.eq.s32.totalorder %s39, 1
    %p613 = por %p611, %p612
    %p614 = scmp.ne.s32.totalorder %s603, %s604
    %p615 = scmp.eq.s32.totalorder %s39, 0
    %p616 = por %p614, %p615
    %p617 = scmp.ne.s32.totalorder %s603, %s604
    %p618 = scmp.eq.s32.totalorder %s40, 1
    %p619 = por %p617, %p618
    %p621 = scmp.ne.s32.totalorder %s604, %s620
    %p622 = scmp.eq.s32.totalorder %s40, 0
    %p623 = por %p621, %p622
    %s624 = ssub.s32 %s34, %s41
    %p625 = scmp.eq.s32.totalorder %s624, 0
    %s627 = sadd.s32 %s626, 1
    %s628 = scalar_select %p625, %s626, %s627
    %p631 = pneg %p625
    %p632 = scmp.eq.s32.totalorder %s34, 1
    %p633 = por %p631, %p632
    %p634 = scmp.ne.s32.totalorder %s626, %s629
    %p635 = scmp.eq.s32.totalorder %s34, 0
    %p636 = por %p634, %p635
    %p637 = scmp.ne.s32.totalorder %s626, %s629
    %p638 = scmp.eq.s32.totalorder %s39, 1
    %p639 = por %p637, %p638
    %p640 = scmp.ne.s32.totalorder %s629, %s630
    %p641 = scmp.eq.s32.totalorder %s39, 0
    %p642 = por %p640, %p641
    %p643 = scmp.ne.s32.totalorder %s629, %s630
    %p644 = scmp.eq.s32.totalorder %s40, 1
    %p645 = por %p643, %p644
    %p647 = scmp.ne.s32.totalorder %s630, %s646
    %p648 = scmp.eq.s32.totalorder %s40, 0
    %p649 = por %p647, %p648
    %p650 = scmp.le.s32.totalorder 1, %s34
    %p651 = scmp.lt.s32.totalorder %s34, 3
    %p652 = pnand %p650, %p651
    %p653 = pneg %p652
    // Predicated region
    $region9: #{fastfc_forward.1} parent=5 // pred_check
      _
    $region10: #{fastfc_forward.1} parent=5 // pred_check_branch
      %655 = sbr.rel (%p652) target = $region12
    $region11: #{fastfc_forward.1} parent=5 // pred_region
      %s656 = ssub.s32 %s34, 1
      // Predicated region
      $region13: #{fastfc_forward.1} parent=11 // pred_check
        %p657 = pneg %p107
      $region14: #{fastfc_forward.1} parent=11 // pred_check_branch
        %659 = sbr.rel (%p657) target = $region16
      $region15: #{fastfc_forward.1} parent=11 // pred_region
        _
      $region16: #{fastfc_forward.1} parent=11 // pred_fallthru
        _
      // Predicated region
      $region17: #{fastfc_forward.1} parent=11 // pred_check
        %p660 = pneg %p128
      $region18: #{fastfc_forward.1} parent=11 // pred_check_branch
        %662 = sbr.rel (%p660) target = $region20
      $region19: #{fastfc_forward.1} parent=11 // pred_region
        _
      $region20: #{fastfc_forward.1} parent=11 // pred_fallthru
        _
      // Predicated region
      $region21: #{fastfc_forward.1} parent=11 // pred_check
        %p663 = pneg %p149
      $region22: #{fastfc_forward.1} parent=11 // pred_check_branch
        %665 = sbr.rel (%p663) target = $region24
      $region23: #{fastfc_forward.1} parent=11 // pred_region
        _
      $region24: #{fastfc_forward.1} parent=11 // pred_fallthru
        _
      // Predicated region
      $region25: #{fastfc_forward.1} parent=11 // pred_check
        %p666 = pneg %p170
      $region26: #{fastfc_forward.1} parent=11 // pred_check_branch
        %668 = sbr.rel (%p666) target = $region28
      $region27: #{fastfc_forward.1} parent=11 // pred_region
        _
      $region28: #{fastfc_forward.1} parent=11 // pred_fallthru
        _
      // Predicated region
      $region29: #{fastfc_forward.1} parent=11 // pred_check
        %p669 = pneg %p191
      $region30: #{fastfc_forward.1} parent=11 // pred_check_branch
        %671 = sbr.rel (%p669) target = $region32
      $region31: #{fastfc_forward.1} parent=11 // pred_region
        _
      $region32: #{fastfc_forward.1} parent=11 // pred_fallthru
        _
      // Predicated region
      $region33: #{fastfc_forward.1} parent=11 // pred_check
        %p672 = pneg %p212
      $region34: #{fastfc_forward.1} parent=11 // pred_check_branch
        %674 = sbr.rel (%p672) target = $region36
      $region35: #{fastfc_forward.1} parent=11 // pred_region
        _
      $region36: #{fastfc_forward.1} parent=11 // pred_fallthru
        _
      // Predicated region
      $region37: #{fastfc_forward.1} parent=11 // pred_check
        %p675 = pneg %p233
      $region38: #{fastfc_forward.1} parent=11 // pred_check_branch
        %677 = sbr.rel (%p675) target = $region40
      $region39: #{fastfc_forward.1} parent=11 // pred_region
        _
      $region40: #{fastfc_forward.1} parent=11 // pred_fallthru
        _
      // Predicated region
      $region41: #{fastfc_forward.1} parent=11 // pred_check
        %p678 = pneg %p254
      $region42: #{fastfc_forward.1} parent=11 // pred_check_branch
        %680 = sbr.rel (%p678) target = $region44
      $region43: #{fastfc_forward.1} parent=11 // pred_region
        _
      $region44: #{fastfc_forward.1} parent=11 // pred_fallthru
        _
      // Predicated region
      $region45: #{fastfc_forward.1} parent=11 // pred_check
        %p681 = pneg %p275
      $region46: #{fastfc_forward.1} parent=11 // pred_check_branch
        %683 = sbr.rel (%p681) target = $region48
      $region47: #{fastfc_forward.1} parent=11 // pred_region
        _
      $region48: #{fastfc_forward.1} parent=11 // pred_fallthru
        _
      // Predicated region
      $region49: #{fastfc_forward.1} parent=11 // pred_check
        %p684 = pneg %p296
      $region50: #{fastfc_forward.1} parent=11 // pred_check_branch
        %686 = sbr.rel (%p684) target = $region52
      $region51: #{fastfc_forward.1} parent=11 // pred_region
        _
      $region52: #{fastfc_forward.1} parent=11 // pred_fallthru
        _
      // Predicated region
      $region53: #{fastfc_forward.1} parent=11 // pred_check
        %p687 = pneg %p317
      $region54: #{fastfc_forward.1} parent=11 // pred_check_branch
        %689 = sbr.rel (%p687) target = $region56
      $region55: #{fastfc_forward.1} parent=11 // pred_region
        _
      $region56: #{fastfc_forward.1} parent=11 // pred_fallthru
        _
      // Predicated region
      $region57: #{fastfc_forward.1} parent=11 // pred_check
        %p690 = pneg %p338
      $region58: #{fastfc_forward.1} parent=11 // pred_check_branch
        %692 = sbr.rel (%p690) target = $region60
      $region59: #{fastfc_forward.1} parent=11 // pred_region
        _
      $region60: #{fastfc_forward.1} parent=11 // pred_fallthru
        _
      // Predicated region
      $region61: #{fastfc_forward.1} parent=11 // pred_check
        %p693 = pneg %p359
      $region62: #{fastfc_forward.1} parent=11 // pred_check_branch
        %695 = sbr.rel (%p693) target = $region64
      $region63: #{fastfc_forward.1} parent=11 // pred_region
        _
      $region64: #{fastfc_forward.1} parent=11 // pred_fallthru
        _
      // Predicated region
      $region65: #{fastfc_forward.1} parent=11 // pred_check
        %p696 = pneg %p380
      $region66: #{fastfc_forward.1} parent=11 // pred_check_branch
        %698 = sbr.rel (%p696) target = $region68
      $region67: #{fastfc_forward.1} parent=11 // pred_region
        _
      $region68: #{fastfc_forward.1} parent=11 // pred_fallthru
        _
      // Predicated region
      $region69: #{fastfc_forward.1} parent=11 // pred_check
        %p699 = pneg %p401
      $region70: #{fastfc_forward.1} parent=11 // pred_check_branch
        %701 = sbr.rel (%p699) target = $region72
      $region71: #{fastfc_forward.1} parent=11 // pred_region
        _
      $region72: #{fastfc_forward.1} parent=11 // pred_fallthru
        _
      // Predicated region
      $region73: #{fastfc_forward.1} parent=11 // pred_check
        %p702 = pneg %p422
      $region74: #{fastfc_forward.1} parent=11 // pred_check_branch
        %704 = sbr.rel (%p702) target = $region76
      $region75: #{fastfc_forward.1} parent=11 // pred_region
        _
      $region76: #{fastfc_forward.1} parent=11 // pred_fallthru
        _
      // Predicated region
      $region77: #{fastfc_forward.1} parent=11 // pred_check
        %p705 = pneg %p443
      $region78: #{fastfc_forward.1} parent=11 // pred_check_branch
        %707 = sbr.rel (%p705) target = $region80
      $region79: #{fastfc_forward.1} parent=11 // pred_region
        _
      $region80: #{fastfc_forward.1} parent=11 // pred_fallthru
        _
      // Predicated region
      $region81: #{fastfc_forward.1} parent=11 // pred_check
        %p708 = pneg %p464
      $region82: #{fastfc_forward.1} parent=11 // pred_check_branch
        %710 = sbr.rel (%p708) target = $region84
      $region83: #{fastfc_forward.1} parent=11 // pred_region
        _
      $region84: #{fastfc_forward.1} parent=11 // pred_fallthru
        _
      // Predicated region
      $region85: #{fastfc_forward.1} parent=11 // pred_check
        %p711 = pneg %p485
      $region86: #{fastfc_forward.1} parent=11 // pred_check_branch
        %713 = sbr.rel (%p711) target = $region88
      $region87: #{fastfc_forward.1} parent=11 // pred_region
        _
      $region88: #{fastfc_forward.1} parent=11 // pred_fallthru
        _
      // Predicated region
      $region89: #{fastfc_forward.1} parent=11 // pred_check
        %p714 = pneg %p506
      $region90: #{fastfc_forward.1} parent=11 // pred_check_branch
        %716 = sbr.rel (%p714) target = $region92
      $region91: #{fastfc_forward.1} parent=11 // pred_region
        _
      $region92: #{fastfc_forward.1} parent=11 // pred_fallthru
        _
      // Predicated region
      $region93: #{fastfc_forward.1} parent=11 // pred_check
        %p717 = pneg %p527
      $region94: #{fastfc_forward.1} parent=11 // pred_check_branch
        %719 = sbr.rel (%p717) target = $region96
      $region95: #{fastfc_forward.1} parent=11 // pred_region
        _
      $region96: #{fastfc_forward.1} parent=11 // pred_fallthru
        _
      // Predicated region
      $region97: #{fastfc_forward.1} parent=11 // pred_check
        %p720 = pneg %p548
      $region98: #{fastfc_forward.1} parent=11 // pred_check_branch
        %722 = sbr.rel (%p720) target = $region100
      $region99: #{fastfc_forward.1} parent=11 // pred_region
        _
      $region100: #{fastfc_forward.1} parent=11 // pred_fallthru
        _
      // Predicated region
      $region101: #{fastfc_forward.1} parent=11 // pred_check
        %p723 = pneg %p569
      $region102: #{fastfc_forward.1} parent=11 // pred_check_branch
        %725 = sbr.rel (%p723) target = $region104
      $region103: #{fastfc_forward.1} parent=11 // pred_region
        _
      $region104: #{fastfc_forward.1} parent=11 // pred_fallthru
        _
      // Predicated region
      $region105: #{fastfc_forward.1} parent=11 // pred_check
        %p726 = pneg %p590
      $region106: #{fastfc_forward.1} parent=11 // pred_check_branch
        %728 = sbr.rel (%p726) target = $region108
      $region107: #{fastfc_forward.1} parent=11 // pred_region
        _
      $region108: #{fastfc_forward.1} parent=11 // pred_fallthru
        _
    $region12: #{fastfc_forward.1} parent=5 // pred_fallthru
      _
    %p729 = scmp.lt.s32.totalorder %s34, 2
    // Predicated region
    $region109: #{fastfc_forward.1} parent=5 // pred_check
      %p730 = pneg %p729
    $region110: #{fastfc_forward.1} parent=5 // pred_check_branch
      %732 = sbr.rel (%p730) target = $region112
    $region111: #{fastfc_forward.1} parent=5 // pred_region
      // Predicated region
      $region113: #{fastfc_forward.1} parent=111 // pred_check
        %p733 = pneg %p54
      $region114: #{fastfc_forward.1} parent=111 // pred_check_branch
        %735 = sbr.rel (%p733) target = $region116
      $region115: #{fastfc_forward.1} parent=111 // pred_region
        %p736 = scmp.lt.s32.totalorder %s34, 1
        %s737 = scalar_select %p736, %s34, 1
        %s738 = smul.addr %s737, 2
        %s739 = smul.addr %s738, 8
        %s740 = scalar_lea.vmem %s0, %s739
      $region116: #{fastfc_forward.1} parent=111 // pred_fallthru
        _
      // Predicated region
      $region117: #{fastfc_forward.1} parent=111 // pred_check
        %p741 = pneg %p80
      $region118: #{fastfc_forward.1} parent=111 // pred_check_branch
        %743 = sbr.rel (%p741) target = $region120
      $region119: #{fastfc_forward.1} parent=111 // pred_region
        %p744 = scmp.lt.s32.totalorder %s34, 1
        %s745 = scalar_select %p744, %s34, 1
        %s746 = smul.addr %s745, 2
        %s747 = smul.addr %s746, 8
        %s748 = scalar_lea.vmem %s1, %s747
      $region120: #{fastfc_forward.1} parent=111 // pred_fallthru
        _
    $region112: #{fastfc_forward.1} parent=5 // pred_fallthru
      _
    %p749 = scmp.le.s32.totalorder 1, %s34
    %p750 = scmp.lt.s32.totalorder %s34, 3
    %p751 = pnand %p749, %p750
    %p752 = pneg %p751
    // Predicated region
    $region121: #{fastfc_forward.1} parent=5 // pred_check
      _
    $region122: #{fastfc_forward.1} parent=5 // pred_check_branch
      %754 = sbr.rel (%p751) target = $region124
    $region123: #{fastfc_forward.1} parent=5 // pred_region
      %s755 = ssub.s32 %s34, 1
      %p756 = scmp.lt.s32.totalorder %s39, 1
      %s757 = scalar_select %p756, %s39, 1
      %s758 = smul.addr %s757, 2
      %s759 = smul.addr %s758, 8
      %s760 = scalar_lea.vmem %s0, %s759
      %p761 = pneg %p60
      %p762 = pneg %p57
      %p763 = scmp.lt.s32.totalorder %s39, 1
      %s764 = scalar_select %p763, %s39, 1
      %s765 = smul.addr %s764, 2
      %s766 = smul.addr %s765, 8
      %s767 = scalar_lea.vmem %s1, %s766
      %p768 = pneg %p86
      %p769 = pneg %p83
      %p770 = pneg %p107
      %p771 = pneg %p104
      %p772 = pneg %p128
      %p773 = pneg %p125
      %p774 = pneg %p149
      %p775 = pneg %p146
      %p776 = pneg %p170
      %p777 = pneg %p167
      %p778 = pneg %p191
      %p779 = pneg %p188
      %p780 = pneg %p212
      %p781 = pneg %p209
      %p782 = pneg %p233
      %p783 = pneg %p230
      %p784 = pneg %p254
      %p785 = pneg %p251
      %p786 = pneg %p275
      %p787 = pneg %p272
      %p788 = pneg %p296
      %p789 = pneg %p293
      %p790 = pneg %p317
      %p791 = pneg %p314
      %p792 = pneg %p338
      %p793 = pneg %p335
      %p794 = pneg %p359
      %p795 = pneg %p356
      %p796 = pneg %p380
      %p797 = pneg %p377
      %p798 = pneg %p401
      %p799 = pneg %p398
      %p800 = pneg %p422
      %p801 = pneg %p419
      %p802 = pneg %p443
      %p803 = pneg %p440
      %p804 = pneg %p464
      %p805 = pneg %p461
      %p806 = pneg %p485
      %p807 = pneg %p482
      %p808 = pneg %p506
      %p809 = pneg %p503
      %p810 = pneg %p527
      %p811 = pneg %p524
      %p812 = pneg %p548
      %p813 = pneg %p545
      %p814 = pneg %p569
      %p815 = pneg %p566
      %p816 = pneg %p590
      %p817 = pneg %p587
      %p818 = pneg %p616
      %p819 = pneg %p613
      %p820 = scmp.lt.s32.totalorder %s39, 1
      %s821 = scalar_select %p820, %s39, 1
      %s822 = smul.addr %s821, 2
      %s823 = smul.addr %s822, 8
      %s824 = scalar_lea.vmem %s26, %s823
      %p825 = pneg %p642
      %p826 = pneg %p639
      %p827 = scmp.lt.s32.totalorder %s39, 1
      %s828 = scalar_select %p827, %s39, 1
      %s829 = smul.addr %s828, 2
      %s830 = smul.addr %s829, 8
      %s831 = scalar_lea.vmem %s27, %s830
      %p832 = scmp.lt.s32.totalorder %s39, 1
      %s833 = scalar_select %p832, %s39, 1
      %s834 = smul.addr %s833, 2
      %s835 = smul.addr %s834, 8
      %s836 = scalar_lea.vmem %s0, %s835
      %p837 = scmp.lt.s32.totalorder %s39, 1
      %s838 = scalar_select %p837, %s39, 1
      %s839 = smul.addr %s838, 2
      %s840 = smul.addr %s839, 8
      %s841 = scalar_lea.vmem %s1, %s840
      %p842 = scmp.lt.s32.totalorder %s39, 1
      %s843 = scalar_select %p842, %s39, 1
      %s844 = smul.addr %s843, 2
      %s845 = smul.addr %s844, 8
      %s846 = scalar_lea.vmem %s26, %s845
      %p847 = scmp.lt.s32.totalorder %s39, 1
      %s848 = scalar_select %p847, %s39, 1
      %s849 = smul.addr %s848, 2
      %s850 = smul.addr %s849, 8
      %s851 = scalar_lea.vmem %s27, %s850
      %v852 = vld [vmem:[%s836] sm:$0xff]
      %v853 = vld [vmem:[%s836 + $0x8] sm:$0xff]
      %v854 = vld [vmem:[%s841] sm:$0xff]
      %v855 = vld [vmem:[%s841 + $0x8] sm:$0xff]
      %v856 = vld [vmem:[%s2] sm:$0xff]
      %v857 = vld [vmem:[%s2 + $0x8] sm:$0xff]
      %s858 = scalar_lea.vmem %s2, 16
      %v859 = vld [vmem:[%s858] sm:$0xff]
      %v860 = vld [vmem:[%s858 + $0x8] sm:$0xff]
      %s861 = scalar_lea.vmem %s2, 32
      %v862 = vld [vmem:[%s861] sm:$0xff]
      %v863 = vld [vmem:[%s861 + $0x8] sm:$0xff]
      %s864 = scalar_lea.vmem %s2, 48
      %v865 = vld [vmem:[%s864] sm:$0xff]
      %v866 = vld [vmem:[%s864 + $0x8] sm:$0xff]
      %s867 = scalar_lea.vmem %s2, 64
      %v868 = vld [vmem:[%s867] sm:$0xff]
      %v869 = vld [vmem:[%s867 + $0x8] sm:$0xff]
      %s870 = scalar_lea.vmem %s2, 80
      %v871 = vld [vmem:[%s870] sm:$0xff]
      %v872 = vld [vmem:[%s870 + $0x8] sm:$0xff]
      %vm873 = vcmask 130048
      %v875 = vsel %vm873, %v856, 0
      %v878 = vsel %vm873, %v857, 0
      %880 = vmatprep.subr.mxu0 0.0
      %881 = vmatpush1.msra.mxu0 %v852
      %882 = vmatprep.subr.mxu0 0.0
      %883 = vmatpush1.msra.mxu0 %v853
      %884 = vmatprep.subr.mxu0 0.0
      %885 = vmatpush1.msra.mxu0 0.0
      %886 = vmatprep.subr.mxu0 0.0
      %887 = vmatpush1.msra.mxu0 0.0
      %888 = vmatprep.subr.mxu0 0.0
      %889 = vmatpush1.msra.mxu0 0.0
      %890 = vmatprep.subr.mxu0 0.0
      %891 = vmatpush1.msra.mxu0 0.0
      %892 = vmatprep.subr.mxu0 0.0
      %893 = vmatpush1.msra.mxu0 0.0
      %894 = vmatprep.subr.mxu0 0.0
      %895 = vmatpush1.msra.mxu0 0.0
      %896 = vmatprep.subr.mxu0 0.0
      %897 = vmatpush1.msra.mxu0 0.0
      %898 = vmatprep.subr.mxu0 0.0
      %899 = vmatpush1.msra.mxu0 0.0
      %900 = vmatprep.subr.mxu0 0.0
      %901 = vmatpush1.msra.mxu0 0.0
      %902 = vmatprep.subr.mxu0 0.0
      %903 = vmatpush1.msra.mxu0 0.0
      %904 = vmatprep.subr.mxu0 0.0
      %905 = vmatpush1.msra.mxu0 0.0
      %906 = vmatprep.subr.mxu0 0.0
      %907 = vmatpush1.msra.mxu0 0.0
      %908 = vmatprep.subr.mxu0 0.0
      %909 = vmatpush1.msra.mxu0 0.0
      %910 = vmatprep.subr.mxu0 0.0
      %911 = vmatpush1.msra.mxu0 0.0
      %912 = vmatprep.subr.mxu0 0.0
      %913 = vmatpush1.msra.mxu0 0.0
      %914 = vmatprep.subr.mxu0 0.0
      %915 = vmatpush1.msra.mxu0 0.0
      %916 = vmatprep.subr.mxu0 0.0
      %917 = vmatpush1.msra.mxu0 0.0
      %918 = vmatprep.subr.mxu0 0.0
      %919 = vmatpush1.msra.mxu0 0.0
      %920 = vmatprep.subr.mxu0 0.0
      %921 = vmatpush1.msra.mxu0 0.0
      %922 = vmatprep.subr.mxu0 0.0
      %923 = vmatpush1.msra.mxu0 0.0
      %924 = vmatprep.subr.mxu0 0.0
      %925 = vmatpush1.msra.mxu0 0.0
      %926 = vmatprep.subr.mxu0 0.0
      %927 = vmatpush1.msra.mxu0 0.0
      %928 = vmatprep.subr.mxu0 0.0
      %929 = vmatpush1.msra.mxu0 0.0
      %930 = vmatprep.subr.mxu0 0.0
      %931 = vmatpush1.msra.mxu0 0.0
      %932 = vmatprep.subr.mxu0 0.0
      %933 = vmatpush1.msra.mxu0 0.0
      %934 = vmatprep.subr.mxu0 0.0
      %935 = vmatpush1.msra.mxu0 0.0
      %936 = vmatprep.subr.mxu0 0.0
      %937 = vmatpush1.msra.mxu0 0.0
      %938 = vmatprep.subr.mxu0 0.0
      %939 = vmatpush1.msra.mxu0 0.0
      %940 = vmatprep.subr.mxu0 0.0
      %941 = vmatpush1.msra.mxu0 0.0
      %942 = vmatprep.subr.mxu0 0.0
      %943 = vmatpush1.msra.mxu0 0.0
      %944 = vmatprep.mubr.f32.mxu0 0.0
      %945 = vmatmul.mubr.f32.gmra.mrb[0].mxu0 %v875
      %v946 = vpop.f32.mrb[0].mxu0
      %v947 = vadd.f32 0.0, %v946
      %v948 = vpop.f32.mrb[0].mxu0
      %949 = vmatprep.mubr.f32.mxu0 0.0
      %950 = vmatmul.mubr.f32.gmra.mrb[0].mxu0 %v878
      %v951 = vpop.f32.mrb[0].mxu0
      %v952 = vadd.f32 0.0, %v951
      %v953 = vpop.f32.mrb[0].mxu0
      %954 = vdwg.mxu0
      %v956 = vsel %vm873, %v859, 0
      %v959 = vsel %vm873, %v860, 0
      %961 = vmatprep.subr.mxu0 0.0
      %962 = vmatpush1.msra.mxu0 %v852
      %963 = vmatprep.subr.mxu0 0.0
      %964 = vmatpush1.msra.mxu0 %v853
      %965 = vmatprep.subr.mxu0 0.0
      %966 = vmatpush1.msra.mxu0 0.0
      %967 = vmatprep.subr.mxu0 0.0
      %968 = vmatpush1.msra.mxu0 0.0
      %969 = vmatprep.subr.mxu0 0.0
      %970 = vmatpush1.msra.mxu0 0.0
      %971 = vmatprep.subr.mxu0 0.0
      %972 = vmatpush1.msra.mxu0 0.0
      %973 = vmatprep.subr.mxu0 0.0
      %974 = vmatpush1.msra.mxu0 0.0
      %975 = vmatprep.subr.mxu0 0.0
      %976 = vmatpush1.msra.mxu0 0.0
      %977 = vmatprep.subr.mxu0 0.0
      %978 = vmatpush1.msra.mxu0 0.0
      %979 = vmatprep.subr.mxu0 0.0
      %980 = vmatpush1.msra.mxu0 0.0
      %981 = vmatprep.subr.mxu0 0.0
      %982 = vmatpush1.msra.mxu0 0.0
      %983 = vmatprep.subr.mxu0 0.0
      %984 = vmatpush1.msra.mxu0 0.0
      %985 = vmatprep.subr.mxu0 0.0
      %986 = vmatpush1.msra.mxu0 0.0
      %987 = vmatprep.subr.mxu0 0.0
      %988 = vmatpush1.msra.mxu0 0.0
      %989 = vmatprep.subr.mxu0 0.0
      %990 = vmatpush1.msra.mxu0 0.0
      %991 = vmatprep.subr.mxu0 0.0
      %992 = vmatpush1.msra.mxu0 0.0
      %993 = vmatprep.subr.mxu0 0.0
      %994 = vmatpush1.msra.mxu0 0.0
      %995 = vmatprep.subr.mxu0 0.0
      %996 = vmatpush1.msra.mxu0 0.0
      %997 = vmatprep.subr.mxu0 0.0
      %998 = vmatpush1.msra.mxu0 0.0
      %999 = vmatprep.subr.mxu0 0.0
      %1000 = vmatpush1.msra.mxu0 0.0
      %1001 = vmatprep.subr.mxu0 0.0
      %1002 = vmatpush1.msra.mxu0 0.0
      %1003 = vmatprep.subr.mxu0 0.0
      %1004 = vmatpush1.msra.mxu0 0.0
      %1005 = vmatprep.subr.mxu0 0.0
      %1006 = vmatpush1.msra.mxu0 0.0
      %1007 = vmatprep.subr.mxu0 0.0
      %1008 = vmatpush1.msra.mxu0 0.0
      %1009 = vmatprep.subr.mxu0 0.0
      %1010 = vmatpush1.msra.mxu0 0.0
      %1011 = vmatprep.subr.mxu0 0.0
      %1012 = vmatpush1.msra.mxu0 0.0
      %1013 = vmatprep.subr.mxu0 0.0
      %1014 = vmatpush1.msra.mxu0 0.0
      %1015 = vmatprep.subr.mxu0 0.0
      %1016 = vmatpush1.msra.mxu0 0.0
      %1017 = vmatprep.subr.mxu0 0.0
      %1018 = vmatpush1.msra.mxu0 0.0
      %1019 = vmatprep.subr.mxu0 0.0
      %1020 = vmatpush1.msra.mxu0 0.0
      %1021 = vmatprep.subr.mxu0 0.0
      %1022 = vmatpush1.msra.mxu0 0.0
      %1023 = vmatprep.subr.mxu0 0.0
      %1024 = vmatpush1.msra.mxu0 0.0
      %1025 = vmatprep.mubr.f32.mxu0 0.0
      %1026 = vmatmul.mubr.f32.gmra.mrb[0].mxu0 %v956
      %v1027 = vpop.f32.mrb[0].mxu0
      %v1028 = vadd.f32 0.0, %v1027
      %v1029 = vpop.f32.mrb[0].mxu0
      %1030 = vmatprep.mubr.f32.mxu0 0.0
      %1031 = vmatmul.mubr.f32.gmra.mrb[0].mxu0 %v959
      %v1032 = vpop.f32.mrb[0].mxu0
      %v1033 = vadd.f32 0.0, %v1032
      %v1034 = vpop.f32.mrb[0].mxu0
      %1035 = vdwg.mxu0
      %1038 = vrot.lane.b32.xlu0 %v852, 64
      %v1039 = vpop.permute.xlu0 %1038
      %1040 = vrot.lane.b32.xlu0 %v853, 64
      %v1041 = vpop.permute.xlu0 %1040
      %vm1044 = vcmask 523264
      %v1045 = vsel %vm1044, %v947, %v1039
      %v1046 = vsel %vm1044, %v952, %v1041
      %1047 = vmatprep.subr.mxu0 0.0
      %1048 = vmatpush1.msra.mxu0 %v854
      %1049 = vmatprep.subr.mxu0 0.0
      %1050 = vmatpush1.msra.mxu0 %v855
      %1051 = vmatprep.subr.mxu0 0.0
      %1052 = vmatpush1.msra.mxu0 0.0
      %1053 = vmatprep.subr.mxu0 0.0
      %1054 = vmatpush1.msra.mxu0 0.0
      %1055 = vmatprep.subr.mxu0 0.0
      %1056 = vmatpush1.msra.mxu0 0.0
      %1057 = vmatprep.subr.mxu0 0.0
      %1058 = vmatpush1.msra.mxu0 0.0
      %1059 = vmatprep.subr.mxu0 0.0
      %1060 = vmatpush1.msra.mxu0 0.0
      %1061 = vmatprep.subr.mxu0 0.0
      %1062 = vmatpush1.msra.mxu0 0.0
      %1063 = vmatprep.subr.mxu0 0.0
      %1064 = vmatpush1.msra.mxu0 0.0
      %1065 = vmatprep.subr.mxu0 0.0
      %1066 = vmatpush1.msra.mxu0 0.0
      %1067 = vmatprep.subr.mxu0 0.0
      %1068 = vmatpush1.msra.mxu0 0.0
      %1069 = vmatprep.subr.mxu0 0.0
      %1070 = vmatpush1.msra.mxu0 0.0
      %1071 = vmatprep.subr.mxu0 0.0
      %1072 = vmatpush1.msra.mxu0 0.0
      %1073 = vmatprep.subr.mxu0 0.0
      %1074 = vmatpush1.msra.mxu0 0.0
      %1075 = vmatprep.subr.mxu0 0.0
      %1076 = vmatpush1.msra.mxu0 0.0
      %1077 = vmatprep.subr.mxu0 0.0
      %1078 = vmatpush1.msra.mxu0 0.0
      %1079 = vmatprep.subr.mxu0 0.0
      %1080 = vmatpush1.msra.mxu0 0.0
      %1081 = vmatprep.subr.mxu0 0.0
      %1082 = vmatpush1.msra.mxu0 0.0
      %1083 = vmatprep.subr.mxu0 0.0
      %1084 = vmatpush1.msra.mxu0 0.0
      %1085 = vmatprep.subr.mxu0 0.0
      %1086 = vmatpush1.msra.mxu0 0.0
      %1087 = vmatprep.subr.mxu0 0.0
      %1088 = vmatpush1.msra.mxu0 0.0
      %1089 = vmatprep.subr.mxu0 0.0
      %1090 = vmatpush1.msra.mxu0 0.0
      %1091 = vmatprep.subr.mxu0 0.0
      %1092 = vmatpush1.msra.mxu0 0.0
      %1093 = vmatprep.subr.mxu0 0.0
      %1094 = vmatpush1.msra.mxu0 0.0
      %1095 = vmatprep.subr.mxu0 0.0
      %1096 = vmatpush1.msra.mxu0 0.0
      %1097 = vmatprep.subr.mxu0 0.0
      %1098 = vmatpush1.msra.mxu0 0.0
      %1099 = vmatprep.subr.mxu0 0.0
      %1100 = vmatpush1.msra.mxu0 0.0
      %1101 = vmatprep.subr.mxu0 0.0
      %1102 = vmatpush1.msra.mxu0 0.0
      %1103 = vmatprep.subr.mxu0 0.0
      %1104 = vmatpush1.msra.mxu0 0.0
      %1105 = vmatprep.subr.mxu0 0.0
      %1106 = vmatpush1.msra.mxu0 0.0
      %1107 = vmatprep.subr.mxu0 0.0
      %1108 = vmatpush1.msra.mxu0 0.0
      %1109 = vmatprep.subr.mxu0 0.0
      %1110 = vmatpush1.msra.mxu0 0.0
      %1111 = vmatprep.mubr.f32.mxu0 0.0
      %1112 = vmatmul.mubr.f32.gmra.mrb[0].mxu0 %v875
      %v1113 = vpop.f32.mrb[0].mxu0
      %v1114 = vadd.f32 0.0, %v1113
      %v1115 = vpop.f32.mrb[0].mxu0
      %1116 = vmatprep.mubr.f32.mxu0 0.0
      %1117 = vmatmul.mubr.f32.gmra.mrb[0].mxu0 %v878
      %v1118 = vpop.f32.mrb[0].mxu0
      %v1119 = vadd.f32 0.0, %v1118
      %v1120 = vpop.f32.mrb[0].mxu0
      %1121 = vdwg.mxu0
      %1122 = vmatprep.subr.mxu0 0.0
      %1123 = vmatpush1.msra.mxu0 %v854
      %1124 = vmatprep.subr.mxu0 0.0
      %1125 = vmatpush1.msra.mxu0 %v855
      %1126 = vmatprep.subr.mxu0 0.0
      %1127 = vmatpush1.msra.mxu0 0.0
      %1128 = vmatprep.subr.mxu0 0.0
      %1129 = vmatpush1.msra.mxu0 0.0
      %1130 = vmatprep.subr.mxu0 0.0
      %1131 = vmatpush1.msra.mxu0 0.0
      %1132 = vmatprep.subr.mxu0 0.0
      %1133 = vmatpush1.msra.mxu0 0.0
      %1134 = vmatprep.subr.mxu0 0.0
      %1135 = vmatpush1.msra.mxu0 0.0
      %1136 = vmatprep.subr.mxu0 0.0
      %1137 = vmatpush1.msra.mxu0 0.0
      %1138 = vmatprep.subr.mxu0 0.0
      %1139 = vmatpush1.msra.mxu0 0.0
      %1140 = vmatprep.subr.mxu0 0.0
      %1141 = vmatpush1.msra.mxu0 0.0
      %1142 = vmatprep.subr.mxu0 0.0
      %1143 = vmatpush1.msra.mxu0 0.0
      %1144 = vmatprep.subr.mxu0 0.0
      %1145 = vmatpush1.msra.mxu0 0.0
      %1146 = vmatprep.subr.mxu0 0.0
      %1147 = vmatpush1.msra.mxu0 0.0
      %1148 = vmatprep.subr.mxu0 0.0
      %1149 = vmatpush1.msra.mxu0 0.0
      %1150 = vmatprep.subr.mxu0 0.0
      %1151 = vmatpush1.msra.mxu0 0.0
      %1152 = vmatprep.subr.mxu0 0.0
      %1153 = vmatpush1.msra.mxu0 0.0
      %1154 = vmatprep.subr.mxu0 0.0
      %1155 = vmatpush1.msra.mxu0 0.0
      %1156 = vmatprep.subr.mxu0 0.0
      %1157 = vmatpush1.msra.mxu0 0.0
      %1158 = vmatprep.subr.mxu0 0.0
      %1159 = vmatpush1.msra.mxu0 0.0
      %1160 = vmatprep.subr.mxu0 0.0
      %1161 = vmatpush1.msra.mxu0 0.0
      %1162 = vmatprep.subr.mxu0 0.0
      %1163 = vmatpush1.msra.mxu0 0.0
      %1164 = vmatprep.subr.mxu0 0.0
      %1165 = vmatpush1.msra.mxu0 0.0
      %1166 = vmatprep.subr.mxu0 0.0
      %1167 = vmatpush1.msra.mxu0 0.0
      %1168 = vmatprep.subr.mxu0 0.0
      %1169 = vmatpush1.msra.mxu0 0.0
      %1170 = vmatprep.subr.mxu0 0.0
      %1171 = vmatpush1.msra.mxu0 0.0
      %1172 = vmatprep.subr.mxu0 0.0
      %1173 = vmatpush1.msra.mxu0 0.0
      %1174 = vmatprep.subr.mxu0 0.0
      %1175 = vmatpush1.msra.mxu0 0.0
      %1176 = vmatprep.subr.mxu0 0.0
      %1177 = vmatpush1.msra.mxu0 0.0
      %1178 = vmatprep.subr.mxu0 0.0
      %1179 = vmatpush1.msra.mxu0 0.0
      %1180 = vmatprep.subr.mxu0 0.0
      %1181 = vmatpush1.msra.mxu0 0.0
      %1182 = vmatprep.subr.mxu0 0.0
      %1183 = vmatpush1.msra.mxu0 0.0
      %1184 = vmatprep.subr.mxu0 0.0
      %1185 = vmatpush1.msra.mxu0 0.0
      %1186 = vmatprep.mubr.f32.mxu0 0.0
      %1187 = vmatmul.mubr.f32.gmra.mrb[0].mxu0 %v956
      %v1188 = vpop.f32.mrb[0].mxu0
      %v1189 = vadd.f32 0.0, %v1188
      %v1190 = vpop.f32.mrb[0].mxu0
      %1191 = vmatprep.mubr.f32.mxu0 0.0
      %1192 = vmatmul.mubr.f32.gmra.mrb[0].mxu0 %v959
      %v1193 = vpop.f32.mrb[0].mxu0
      %v1194 = vadd.f32 0.0, %v1193
      %v1195 = vpop.f32.mrb[0].mxu0
      %1196 = vdwg.mxu0
      %1199 = vrot.lane.b32.xlu0 %v854, 64
      %v1200 = vpop.permute.xlu0 %1199
      %1201 = vrot.lane.b32.xlu0 %v855, 64
      %v1202 = vpop.permute.xlu0 %1201
      %v1205 = vsel %vm1044, %v1114, %v1200
      %v1206 = vsel %vm1044, %v1119, %v1202
      %v1207 = vld [vmem:[%s3] sm:$0xff]
      %v1208 = vld [vmem:[%s3 + $0x8] sm:$0xff]
      %v1209 = vld [vmem:[%s3 + $0x10] sm:$0xff]
      %v1210 = vld [vmem:[%s3 + $0x18] sm:$0xff]
      %v1211 = vld [vmem:[%s3 + $0x20] sm:$0xff]
      %v1212 = vld [vmem:[%s3 + $0x28] sm:$0xff]
      %v1213 = vld [vmem:[%s3 + $0x30] sm:$0xff]
      %v1214 = vld [vmem:[%s3 + $0x38] sm:$0xff]
      %v1215 = vld [vmem:[%s3 + $0x40] sm:$0xff]
      %v1216 = vld [vmem:[%s3 + $0x48] sm:$0xff]
      %v1217 = vld [vmem:[%s3 + $0x50] sm:$0xff]
      %v1218 = vld [vmem:[%s3 + $0x58] sm:$0xff]
      %v1219 = vld [vmem:[%s3 + $0x60] sm:$0xff]
      %v1220 = vld [vmem:[%s3 + $0x68] sm:$0xff]
      %v1221 = vld [vmem:[%s3 + $0x70] sm:$0xff]
      %v1222 = vld [vmem:[%s3 + $0x78] sm:$0xff]
      %v1223 = vld [vmem:[%s3 + $0x80] sm:$0xff]
      %v1224 = vld [vmem:[%s3 + $0x88] sm:$0xff]
      %v1225 = vld [vmem:[%s3 + $0x90] sm:$0xff]
      %v1226 = vld [vmem:[%s3 + $0x98] sm:$0xff]
      %v1227 = vld [vmem:[%s3 + $0xa0] sm:$0xff]
      %v1228 = vld [vmem:[%s3 + $0xa8] sm:$0xff]
      %v1229 = vld [vmem:[%s3 + $0xb0] sm:$0xff]
      %v1230 = vld [vmem:[%s3 + $0xb8] sm:$0xff]
      %v1231 = vld [vmem:[%s4] sm:$0x1]
      %v1233 = vlaneseq
      %v1234 = vshrl.u32 %v1233, 7
      %v1235 = vsub.s32 0, %v1234
      %v1236 = vrot.slane %v1231, %v1235
      %v1239 = vsel %vm1044, %v1028, 0
      %v1242 = vsel %vm1044, %v1033, 0
      %1244 = vmatprep.subr.mxu0 0.0
      %1245 = vmatpush1.msra.mxu0 %v1207
      %1246 = vmatprep.subr.mxu0 0.0
      %1247 = vmatpush1.msra.mxu0 %v1208
      %1248 = vmatprep.subr.mxu0 0.0
      %1249 = vmatpush1.msra.mxu0 %v1209
      %1250 = vmatprep.subr.mxu0 0.0
      %1251 = vmatpush1.msra.mxu0 %v1210
      %1252 = vmatprep.subr.mxu0 0.0
      %1253 = vmatpush1.msra.mxu0 %v1211
      %1254 = vmatprep.subr.mxu0 0.0
      %1255 = vmatpush1.msra.mxu0 %v1212
      %1256 = vmatprep.subr.mxu0 0.0
      %1257 = vmatpush1.msra.mxu0 %v1213
      %1258 = vmatprep.subr.mxu0 0.0
      %1259 = vmatpush1.msra.mxu0 %v1214
      %1260 = vmatprep.subr.mxu0 0.0
      %1261 = vmatpush1.msra.mxu0 %v1215
      %1262 = vmatprep.subr.mxu0 0.0
      %1263 = vmatpush1.msra.mxu0 %v1216
      %1264 = vmatprep.subr.mxu0 0.0
      %1265 = vmatpush1.msra.mxu0 %v1217
      %1266 = vmatprep.subr.mxu0 0.0
      %1267 = vmatpush1.msra.mxu0 %v1218
      %1268 = vmatprep.subr.mxu0 0.0
      %1269 = vmatpush1.msra.mxu0 %v1219
      %1270 = vmatprep.subr.mxu0 0.0
      %1271 = vmatpush1.msra.mxu0 %v1220
      %1272 = vmatprep.subr.mxu0 0.0
      %1273 = vmatpush1.msra.mxu0 %v1221
      %1274 = vmatprep.subr.mxu0 0.0
      %1275 = vmatpush1.msra.mxu0 %v1222
      %1276 = vmatprep.subr.mxu0 0.0
      %1277 = vmatpush1.msra.mxu0 %v1223
      %1278 = vmatprep.subr.mxu0 0.0
      %1279 = vmatpush1.msra.mxu0 %v1224
      %1280 = vmatprep.subr.mxu0 0.0
      %1281 = vmatpush1.msra.mxu0 %v1225
      %1282 = vmatprep.subr.mxu0 0.0
      %1283 = vmatpush1.msra.mxu0 %v1226
      %1284 = vmatprep.subr.mxu0 0.0
      %1285 = vmatpush1.msra.mxu0 %v1227
      %1286 = vmatprep.subr.mxu0 0.0
      %1287 = vmatpush1.msra.mxu0 %v1228
      %1288 = vmatprep.subr.mxu0 0.0
      %1289 = vmatpush1.msra.mxu0 %v1229
      %1290 = vmatprep.subr.mxu0 0.0
      %1291 = vmatpush1.msra.mxu0 %v1230
      %1292 = vmatprep.subr.mxu0 0.0
      %1293 = vmatpush1.msra.mxu0 0.0
      %1294 = vmatprep.subr.mxu0 0.0
      %1295 = vmatpush1.msra.mxu0 0.0
      %1296 = vmatprep.subr.mxu0 0.0
      %1297 = vmatpush1.msra.mxu0 0.0
      %1298 = vmatprep.subr.mxu0 0.0
      %1299 = vmatpush1.msra.mxu0 0.0
      %1300 = vmatprep.subr.mxu0 0.0
      %1301 = vmatpush1.msra.mxu0 0.0
      %1302 = vmatprep.subr.mxu0 0.0
      %1303 = vmatpush1.msra.mxu0 0.0
      %1304 = vmatprep.subr.mxu0 0.0
      %1305 = vmatpush1.msra.mxu0 0.0
      %1306 = vmatprep.subr.mxu0 0.0
      %1307 = vmatpush1.msra.mxu0 0.0
      %1308 = vmatprep.mubr.f32.mxu0 %v1239
      %1309 = vmatmul.mubr.f32.gmra.mrb[0].mxu0 %v1045
      %v1310 = vpop.f32.mrb[0].mxu0
      %v1311 = vadd.f32 %v1236, %v1310
      %v1312 = vpop.f32.mrb[0].mxu0
      %1313 = vmatprep.mubr.f32.mxu0 %v1242
      %1314 = vmatmul.mubr.f32.gmra.mrb[0].mxu0 %v1046
      %v1315 = vpop.f32.mrb[0].mxu0
      %v1316 = vadd.f32 %v1236, %v1315
      %v1317 = vpop.f32.mrb[0].mxu0
      %1318 = vdwg.mxu0
      %v1319 = vld [vmem:[%s5] sm:$0xff]
      %v1320 = vld [vmem:[%s5 + $0x8] sm:$0xff]
      %v1321 = vld [vmem:[%s5 + $0x10] sm:$0xff]
      %v1322 = vld [vmem:[%s5 + $0x18] sm:$0xff]
      %v1323 = vld [vmem:[%s5 + $0x20] sm:$0xff]
      %v1324 = vld [vmem:[%s5 + $0x28] sm:$0xff]
      %v1325 = vld [vmem:[%s5 + $0x30] sm:$0xff]
      %v1326 = vld [vmem:[%s5 + $0x38] sm:$0xff]
      %v1327 = vld [vmem:[%s5 + $0x40] sm:$0xff]
      %v1328 = vld [vmem:[%s5 + $0x48] sm:$0xff]
      %v1329 = vld [vmem:[%s5 + $0x50] sm:$0xff]
      %v1330 = vld [vmem:[%s5 + $0x58] sm:$0xff]
      %v1331 = vld [vmem:[%s5 + $0x60] sm:$0xff]
      %v1332 = vld [vmem:[%s5 + $0x68] sm:$0xff]
      %v1333 = vld [vmem:[%s5 + $0x70] sm:$0xff]
      %v1334 = vld [vmem:[%s5 + $0x78] sm:$0xff]
      %v1335 = vld [vmem:[%s5 + $0x80] sm:$0xff]
      %v1336 = vld [vmem:[%s5 + $0x88] sm:$0xff]
      %v1337 = vld [vmem:[%s5 + $0x90] sm:$0xff]
      %v1338 = vld [vmem:[%s5 + $0x98] sm:$0xff]
      %v1339 = vld [vmem:[%s5 + $0xa0] sm:$0xff]
      %v1340 = vld [vmem:[%s5 + $0xa8] sm:$0xff]
      %v1341 = vld [vmem:[%s5 + $0xb0] sm:$0xff]
      %v1342 = vld [vmem:[%s5 + $0xb8] sm:$0xff]
      %v1343 = vld [vmem:[%s6] sm:$0x1]
      %v1345 = vlaneseq
      %v1346 = vshrl.u32 %v1345, 7
      %v1347 = vsub.s32 0, %v1346
      %v1348 = vrot.slane %v1343, %v1347
      %v1351 = vsel %vm1044, %v1189, 0
      %v1354 = vsel %vm1044, %v1194, 0
      %1356 = vmatprep.subr.mxu0 0.0
      %1357 = vmatpush1.msra.mxu0 %v1319
      %1358 = vmatprep.subr.mxu0 0.0
      %1359 = vmatpush1.msra.mxu0 %v1320
      %1360 = vmatprep.subr.mxu0 0.0
      %1361 = vmatpush1.msra.mxu0 %v1321
      %1362 = vmatprep.subr.mxu0 0.0
      %1363 = vmatpush1.msra.mxu0 %v1322
      %1364 = vmatprep.subr.mxu0 0.0
      %1365 = vmatpush1.msra.mxu0 %v1323
      %1366 = vmatprep.subr.mxu0 0.0
      %1367 = vmatpush1.msra.mxu0 %v1324
      %1368 = vmatprep.subr.mxu0 0.0
      %1369 = vmatpush1.msra.mxu0 %v1325
      %1370 = vmatprep.subr.mxu0 0.0
      %1371 = vmatpush1.msra.mxu0 %v1326
      %1372 = vmatprep.subr.mxu0 0.0
      %1373 = vmatpush1.msra.mxu0 %v1327
      %1374 = vmatprep.subr.mxu0 0.0
      %1375 = vmatpush1.msra.mxu0 %v1328
      %1376 = vmatprep.subr.mxu0 0.0
      %1377 = vmatpush1.msra.mxu0 %v1329
      %1378 = vmatprep.subr.mxu0 0.0
      %1379 = vmatpush1.msra.mxu0 %v1330
      %1380 = vmatprep.subr.mxu0 0.0
      %1381 = vmatpush1.msra.mxu0 %v1331
      %1382 = vmatprep.subr.mxu0 0.0
      %1383 = vmatpush1.msra.mxu0 %v1332
      %1384 = vmatprep.subr.mxu0 0.0
      %1385 = vmatpush1.msra.mxu0 %v1333
      %1386 = vmatprep.subr.mxu0 0.0
      %1387 = vmatpush1.msra.mxu0 %v1334
      %1388 = vmatprep.subr.mxu0 0.0
      %1389 = vmatpush1.msra.mxu0 %v1335
      %1390 = vmatprep.subr.mxu0 0.0
      %1391 = vmatpush1.msra.mxu0 %v1336
      %1392 = vmatprep.subr.mxu0 0.0
      %1393 = vmatpush1.msra.mxu0 %v1337
      %1394 = vmatprep.subr.mxu0 0.0
      %1395 = vmatpush1.msra.mxu0 %v1338
      %1396 = vmatprep.subr.mxu0 0.0
      %1397 = vmatpush1.msra.mxu0 %v1339
      %1398 = vmatprep.subr.mxu0 0.0
      %1399 = vmatpush1.msra.mxu0 %v1340
      %1400 = vmatprep.subr.mxu0 0.0
      %1401 = vmatpush1.msra.mxu0 %v1341
      %1402 = vmatprep.subr.mxu0 0.0
      %1403 = vmatpush1.msra.mxu0 %v1342
      %1404 = vmatprep.subr.mxu0 0.0
      %1405 = vmatpush1.msra.mxu0 0.0
      %1406 = vmatprep.subr.mxu0 0.0
      %1407 = vmatpush1.msra.mxu0 0.0
      %1408 = vmatprep.subr.mxu0 0.0
      %1409 = vmatpush1.msra.mxu0 0.0
      %1410 = vmatprep.subr.mxu0 0.0
      %1411 = vmatpush1.msra.mxu0 0.0
      %1412 = vmatprep.subr.mxu0 0.0
      %1413 = vmatpush1.msra.mxu0 0.0
      %1414 = vmatprep.subr.mxu0 0.0
      %1415 = vmatpush1.msra.mxu0 0.0
      %1416 = vmatprep.subr.mxu0 0.0
      %1417 = vmatpush1.msra.mxu0 0.0
      %1418 = vmatprep.subr.mxu0 0.0
      %1419 = vmatpush1.msra.mxu0 0.0
      %1420 = vmatprep.mubr.f32.mxu0 %v1351
      %1421 = vmatmul.mubr.f32.gmra.mrb[0].mxu0 %v1205
      %v1422 = vpop.f32.mrb[0].mxu0
      %v1423 = vadd.f32 %v1348, %v1422
      %v1424 = vpop.f32.mrb[0].mxu0
      %1425 = vmatprep.mubr.f32.mxu0 %v1354
      %1426 = vmatmul.mubr.f32.gmra.mrb[0].mxu0 %v1206
      %v1427 = vpop.f32.mrb[0].mxu0
      %v1428 = vadd.f32 %v1348, %v1427
      %v1429 = vpop.f32.mrb[0].mxu0
      %1430 = vdwg.mxu0
      %v1431 = vadd.f32 %v1311, %v1423
      %v1432 = vadd.f32 %v1316, %v1428
      %v1433 = vld [vmem:[%s7] sm:$0x1]
      %v1435 = vlaneseq
      %v1436 = vshrl.u32 %v1435, 7
      %v1437 = vsub.s32 0, %v1436
      %v1438 = vrot.slane %v1433, %v1437
      %v1440 = vmul.f32 %v1431, %v1438
      %v1441 = vmul.f32 %v1432, %v1438
      %v1442 = vld [vmem:[%s8] sm:$0x1]
      %v1444 = vlaneseq
      %v1445 = vshrl.u32 %v1444, 7
      %v1446 = vsub.s32 0, %v1445
      %v1447 = vrot.slane %v1442, %v1446
      %v1449 = vadd.f32 %v1440, %v1447
      %v1450 = vadd.f32 %v1441, %v1447
      %v1451 = vld [vmem:[%s9] sm:$0x1]
      %vm1452 = vcmp.ge.f32.partialorder %v1449, 0.0
      %vm1453 = vcmp.ge.f32.partialorder %v1450, 0.0
      %v1455 = vlaneseq
      %v1456 = vshrl.u32 %v1455, 7
      %v1457 = vsub.s32 0, %v1456
      %v1458 = vrot.slane %v1451, %v1457
      %v1460 = vmul.f32 %v1458, %v1449
      %v1461 = vmul.f32 %v1458, %v1450
      %v1462 = vsel %vm1452, %v1449, %v1460
      %v1463 = vsel %vm1453, %v1450, %v1461
      %v1464 = vadd.f32 %v1462, %v852
      %v1465 = vadd.f32 %v1463, %v853
      %v1466 = vld [vmem:[%s10] sm:$0xff]
      %v1467 = vld [vmem:[%s10 + $0x8] sm:$0xff]
      %v1468 = vld [vmem:[%s10 + $0x10] sm:$0xff]
      %v1469 = vld [vmem:[%s10 + $0x18] sm:$0xff]
      %v1470 = vld [vmem:[%s10 + $0x20] sm:$0xff]
      %v1471 = vld [vmem:[%s10 + $0x28] sm:$0xff]
      %v1472 = vld [vmem:[%s10 + $0x30] sm:$0xff]
      %v1473 = vld [vmem:[%s10 + $0x38] sm:$0xff]
      %v1474 = vld [vmem:[%s11] sm:$0x1]
      %v1476 = vlaneseq
      %v1477 = vshrl.u32 %v1476, 7
      %v1478 = vsub.s32 0, %v1477
      %v1479 = vrot.slane %v1474, %v1478
      %v1481 = vsel %vm1044, %v854, 0
      %v1483 = vsel %vm1044, %v855, 0
      %1485 = vmatprep.subr.mxu0 0.0
      %1486 = vmatpush1.msra.mxu0 %v1466
      %1487 = vmatprep.subr.mxu0 0.0
      %1488 = vmatpush1.msra.mxu0 %v1467
      %1489 = vmatprep.subr.mxu0 0.0
      %1490 = vmatpush1.msra.mxu0 %v1468
      %1491 = vmatprep.subr.mxu0 0.0
      %1492 = vmatpush1.msra.mxu0 %v1469
      %1493 = vmatprep.subr.mxu0 0.0
      %1494 = vmatpush1.msra.mxu0 %v1470
      %1495 = vmatprep.subr.mxu0 0.0
      %1496 = vmatpush1.msra.mxu0 %v1471
      %1497 = vmatprep.subr.mxu0 0.0
      %1498 = vmatpush1.msra.mxu0 %v1472
      %1499 = vmatprep.subr.mxu0 0.0
      %1500 = vmatpush1.msra.mxu0 %v1473
      %1501 = vmatprep.subr.mxu0 0.0
      %1502 = vmatpush1.msra.mxu0 0.0
      %1503 = vmatprep.subr.mxu0 0.0
      %1504 = vmatpush1.msra.mxu0 0.0
      %1505 = vmatprep.subr.mxu0 0.0
      %1506 = vmatpush1.msra.mxu0 0.0
      %1507 = vmatprep.subr.mxu0 0.0
      %1508 = vmatpush1.msra.mxu0 0.0
      %1509 = vmatprep.subr.mxu0 0.0
      %1510 = vmatpush1.msra.mxu0 0.0
      %1511 = vmatprep.subr.mxu0 0.0
      %1512 = vmatpush1.msra.mxu0 0.0
      %1513 = vmatprep.subr.mxu0 0.0
      %1514 = vmatpush1.msra.mxu0 0.0
      %1515 = vmatprep.subr.mxu0 0.0
      %1516 = vmatpush1.msra.mxu0 0.0
      %1517 = vmatprep.subr.mxu0 0.0
      %1518 = vmatpush1.msra.mxu0 0.0
      %1519 = vmatprep.subr.mxu0 0.0
      %1520 = vmatpush1.msra.mxu0 0.0
      %1521 = vmatprep.subr.mxu0 0.0
      %1522 = vmatpush1.msra.mxu0 0.0
      %1523 = vmatprep.subr.mxu0 0.0
      %1524 = vmatpush1.msra.mxu0 0.0
      %1525 = vmatprep.subr.mxu0 0.0
      %1526 = vmatpush1.msra.mxu0 0.0
      %1527 = vmatprep.subr.mxu0 0.0
      %1528 = vmatpush1.msra.mxu0 0.0
      %1529 = vmatprep.subr.mxu0 0.0
      %1530 = vmatpush1.msra.mxu0 0.0
      %1531 = vmatprep.subr.mxu0 0.0
      %1532 = vmatpush1.msra.mxu0 0.0
      %1533 = vmatprep.subr.mxu0 0.0
      %1534 = vmatpush1.msra.mxu0 0.0
      %1535 = vmatprep.subr.mxu0 0.0
      %1536 = vmatpush1.msra.mxu0 0.0
      %1537 = vmatprep.subr.mxu0 0.0
      %1538 = vmatpush1.msra.mxu0 0.0
      %1539 = vmatprep.subr.mxu0 0.0
      %1540 = vmatpush1.msra.mxu0 0.0
      %1541 = vmatprep.subr.mxu0 0.0
      %1542 = vmatpush1.msra.mxu0 0.0
      %1543 = vmatprep.subr.mxu0 0.0
      %1544 = vmatpush1.msra.mxu0 0.0
      %1545 = vmatprep.subr.mxu0 0.0
      %1546 = vmatpush1.msra.mxu0 0.0
      %1547 = vmatprep.subr.mxu0 0.0
      %1548 = vmatpush1.msra.mxu0 0.0
      %1549 = vmatprep.mubr.f32.mxu0 0.0
      %1550 = vmatmul.mubr.f32.gmra.mrb[0].mxu0 %v1481
      %v1551 = vpop.f32.mrb[0].mxu0
      %v1552 = vadd.f32 %v1479, %v1551
      %v1553 = vpop.f32.mrb[0].mxu0
      %1554 = vmatprep.mubr.f32.mxu0 0.0
      %1555 = vmatmul.mubr.f32.gmra.mrb[0].mxu0 %v1483
      %v1556 = vpop.f32.mrb[0].mxu0
      %v1557 = vadd.f32 %v1479, %v1556
      %v1558 = vpop.f32.mrb[0].mxu0
      %1559 = vdwg.mxu0
      %v1560 = vld [vmem:[%s12] sm:$0x1]
      %vm1561 = vcmp.ge.f32.partialorder %v1552, 0.0
      %vm1562 = vcmp.ge.f32.partialorder %v1557, 0.0
      %v1564 = vlaneseq
      %v1565 = vshrl.u32 %v1564, 7
      %v1566 = vsub.s32 0, %v1565
      %v1567 = vrot.slane %v1560, %v1566
      %v1569 = vmul.f32 %v1567, %v1552
      %v1570 = vmul.f32 %v1567, %v1557
      %v1571 = vsel %vm1561, %v1552, %v1569
      %v1572 = vsel %vm1562, %v1557, %v1570
      %v1573 = vld [vmem:[%s13] sm:$0xff]
      %v1574 = vld [vmem:[%s13 + $0x8] sm:$0xff]
      %v1575 = vld [vmem:[%s13 + $0x10] sm:$0xff]
      %v1576 = vld [vmem:[%s13 + $0x18] sm:$0xff]
      %vm1577 = vcmask 261120
      %v1579 = vsel %vm1577, %v1571, 0
      %v1582 = vsel %vm1577, %v1572, 0
      %1584 = vmatprep.subr.mxu0 0.0
      %1585 = vmatpush1.msra.mxu0 %v1573
      %1586 = vmatprep.subr.mxu0 0.0
      %1587 = vmatpush1.msra.mxu0 %v1574
      %1588 = vmatprep.subr.mxu0 0.0
      %1589 = vmatpush1.msra.mxu0 %v1575
      %1590 = vmatprep.subr.mxu0 0.0
      %1591 = vmatpush1.msra.mxu0 %v1576
      %1592 = vmatprep.subr.mxu0 0.0
      %1593 = vmatpush1.msra.mxu0 0.0
      %1594 = vmatprep.subr.mxu0 0.0
      %1595 = vmatpush1.msra.mxu0 0.0
      %1596 = vmatprep.subr.mxu0 0.0
      %1597 = vmatpush1.msra.mxu0 0.0
      %1598 = vmatprep.subr.mxu0 0.0
      %1599 = vmatpush1.msra.mxu0 0.0
      %1600 = vmatprep.subr.mxu0 0.0
      %1601 = vmatpush1.msra.mxu0 0.0
      %1602 = vmatprep.subr.mxu0 0.0
      %1603 = vmatpush1.msra.mxu0 0.0
      %1604 = vmatprep.subr.mxu0 0.0
      %1605 = vmatpush1.msra.mxu0 0.0
      %1606 = vmatprep.subr.mxu0 0.0
      %1607 = vmatpush1.msra.mxu0 0.0
      %1608 = vmatprep.subr.mxu0 0.0
      %1609 = vmatpush1.msra.mxu0 0.0
      %1610 = vmatprep.subr.mxu0 0.0
      %1611 = vmatpush1.msra.mxu0 0.0
      %1612 = vmatprep.subr.mxu0 0.0
      %1613 = vmatpush1.msra.mxu0 0.0
      %1614 = vmatprep.subr.mxu0 0.0
      %1615 = vmatpush1.msra.mxu0 0.0
      %1616 = vmatprep.subr.mxu0 0.0
      %1617 = vmatpush1.msra.mxu0 0.0
      %1618 = vmatprep.subr.mxu0 0.0
      %1619 = vmatpush1.msra.mxu0 0.0
      %1620 = vmatprep.subr.mxu0 0.0
      %1621 = vmatpush1.msra.mxu0 0.0
      %1622 = vmatprep.subr.mxu0 0.0
      %1623 = vmatpush1.msra.mxu0 0.0
      %1624 = vmatprep.subr.mxu0 0.0
      %1625 = vmatpush1.msra.mxu0 0.0
      %1626 = vmatprep.subr.mxu0 0.0
      %1627 = vmatpush1.msra.mxu0 0.0
      %1628 = vmatprep.subr.mxu0 0.0
      %1629 = vmatpush1.msra.mxu0 0.0
      %1630 = vmatprep.subr.mxu0 0.0
      %1631 = vmatpush1.msra.mxu0 0.0
      %1632 = vmatprep.subr.mxu0 0.0
      %1633 = vmatpush1.msra.mxu0 0.0
      %1634 = vmatprep.subr.mxu0 0.0
      %1635 = vmatpush1.msra.mxu0 0.0
      %1636 = vmatprep.subr.mxu0 0.0
      %1637 = vmatpush1.msra.mxu0 0.0
      %1638 = vmatprep.subr.mxu0 0.0
      %1639 = vmatpush1.msra.mxu0 0.0
      %1640 = vmatprep.subr.mxu0 0.0
      %1641 = vmatpush1.msra.mxu0 0.0
      %1642 = vmatprep.subr.mxu0 0.0
      %1643 = vmatpush1.msra.mxu0 0.0
      %1644 = vmatprep.subr.mxu0 0.0
      %1645 = vmatpush1.msra.mxu0 0.0
      %1646 = vmatprep.subr.mxu0 0.0
      %1647 = vmatpush1.msra.mxu0 0.0
      %1648 = vmatprep.mubr.f32.mxu0 0.0
      %1649 = vmatmul.mubr.f32.gmra.mrb[0].mxu0 %v1579
      %v1650 = vpop.f32.mrb[0].mxu0
      %v1651 = vadd.f32 0.0, %v1650
      %v1652 = vpop.f32.mrb[0].mxu0
      %1653 = vmatprep.mubr.f32.mxu0 0.0
      %1654 = vmatmul.mubr.f32.gmra.mrb[0].mxu0 %v1582
      %v1655 = vpop.f32.mrb[0].mxu0
      %v1656 = vadd.f32 0.0, %v1655
      %v1657 = vpop.f32.mrb[0].mxu0
      %1658 = vdwg.mxu0
      %s1659 = scalar_lea.vmem %s13, 32
      %v1660 = vld [vmem:[%s1659] sm:$0xff]
      %v1661 = vld [vmem:[%s1659 + $0x8] sm:$0xff]
      %v1662 = vld [vmem:[%s1659 + $0x10] sm:$0xff]
      %v1663 = vld [vmem:[%s1659 + $0x18] sm:$0xff]
      %1664 = vmatprep.subr.mxu0 0.0
      %1665 = vmatpush1.msra.mxu0 %v1660
      %1666 = vmatprep.subr.mxu0 0.0
      %1667 = vmatpush1.msra.mxu0 %v1661
      %1668 = vmatprep.subr.mxu0 0.0
      %1669 = vmatpush1.msra.mxu0 %v1662
      %1670 = vmatprep.subr.mxu0 0.0
      %1671 = vmatpush1.msra.mxu0 %v1663
      %1672 = vmatprep.subr.mxu0 0.0
      %1673 = vmatpush1.msra.mxu0 0.0
      %1674 = vmatprep.subr.mxu0 0.0
      %1675 = vmatpush1.msra.mxu0 0.0
      %1676 = vmatprep.subr.mxu0 0.0
      %1677 = vmatpush1.msra.mxu0 0.0
      %1678 = vmatprep.subr.mxu0 0.0
      %1679 = vmatpush1.msra.mxu0 0.0
      %1680 = vmatprep.subr.mxu0 0.0
      %1681 = vmatpush1.msra.mxu0 0.0
      %1682 = vmatprep.subr.mxu0 0.0
      %1683 = vmatpush1.msra.mxu0 0.0
      %1684 = vmatprep.subr.mxu0 0.0
      %1685 = vmatpush1.msra.mxu0 0.0
      %1686 = vmatprep.subr.mxu0 0.0
      %1687 = vmatpush1.msra.mxu0 0.0
      %1688 = vmatprep.subr.mxu0 0.0
      %1689 = vmatpush1.msra.mxu0 0.0
      %1690 = vmatprep.subr.mxu0 0.0
      %1691 = vmatpush1.msra.mxu0 0.0
      %1692 = vmatprep.subr.mxu0 0.0
      %1693 = vmatpush1.msra.mxu0 0.0
      %1694 = vmatprep.subr.mxu0 0.0
      %1695 = vmatpush1.msra.mxu0 0.0
      %1696 = vmatprep.subr.mxu0 0.0
      %1697 = vmatpush1.msra.mxu0 0.0
      %1698 = vmatprep.subr.mxu0 0.0
      %1699 = vmatpush1.msra.mxu0 0.0
      %1700 = vmatprep.subr.mxu0 0.0
      %1701 = vmatpush1.msra.mxu0 0.0
      %1702 = vmatprep.subr.mxu0 0.0
      %1703 = vmatpush1.msra.mxu0 0.0
      %1704 = vmatprep.subr.mxu0 0.0
      %1705 = vmatpush1.msra.mxu0 0.0
      %1706 = vmatprep.subr.mxu0 0.0
      %1707 = vmatpush1.msra.mxu0 0.0
      %1708 = vmatprep.subr.mxu0 0.0
      %1709 = vmatpush1.msra.mxu0 0.0
      %1710 = vmatprep.subr.mxu0 0.0
      %1711 = vmatpush1.msra.mxu0 0.0
      %1712 = vmatprep.subr.mxu0 0.0
      %1713 = vmatpush1.msra.mxu0 0.0
      %1714 = vmatprep.subr.mxu0 0.0
      %1715 = vmatpush1.msra.mxu0 0.0
      %1716 = vmatprep.subr.mxu0 0.0
      %1717 = vmatpush1.msra.mxu0 0.0
      %1718 = vmatprep.subr.mxu0 0.0
      %1719 = vmatpush1.msra.mxu0 0.0
      %1720 = vmatprep.subr.mxu0 0.0
      %1721 = vmatpush1.msra.mxu0 0.0
      %1722 = vmatprep.subr.mxu0 0.0
      %1723 = vmatpush1.msra.mxu0 0.0
      %1724 = vmatprep.subr.mxu0 0.0
      %1725 = vmatpush1.msra.mxu0 0.0
      %1726 = vmatprep.subr.mxu0 0.0
      %1727 = vmatpush1.msra.mxu0 0.0
      %1728 = vmatprep.mubr.f32.mxu0 0.0
      %1729 = vmatmul.mubr.f32.gmra.mrb[0].mxu0 %v1579
      %v1730 = vpop.f32.mrb[0].mxu0
      %v1731 = vadd.f32 0.0, %v1730
      %v1732 = vpop.f32.mrb[0].mxu0
      %1733 = vmatprep.mubr.f32.mxu0 0.0
      %1734 = vmatmul.mubr.f32.gmra.mrb[0].mxu0 %v1582
      %v1735 = vpop.f32.mrb[0].mxu0
      %v1736 = vadd.f32 0.0, %v1735
      %v1737 = vpop.f32.mrb[0].mxu0
      %1738 = vdwg.mxu0
      %v1740 = vsel %vm873, %v862, 0
      %v1743 = vsel %vm873, %v863, 0
      %1745 = vmatprep.subr.mxu0 0.0
      %1746 = vmatpush1.msra.mxu0 %v1651
      %1747 = vmatprep.subr.mxu0 0.0
      %1748 = vmatpush1.msra.mxu0 %v1656
      %1749 = vmatprep.subr.mxu0 0.0
      %1750 = vmatpush1.msra.mxu0 0.0
      %1751 = vmatprep.subr.mxu0 0.0
      %1752 = vmatpush1.msra.mxu0 0.0
      %1753 = vmatprep.subr.mxu0 0.0
      %1754 = vmatpush1.msra.mxu0 0.0
      %1755 = vmatprep.subr.mxu0 0.0
      %1756 = vmatpush1.msra.mxu0 0.0
      %1757 = vmatprep.subr.mxu0 0.0
      %1758 = vmatpush1.msra.mxu0 0.0
      %1759 = vmatprep.subr.mxu0 0.0
      %1760 = vmatpush1.msra.mxu0 0.0
      %1761 = vmatprep.subr.mxu0 0.0
      %1762 = vmatpush1.msra.mxu0 0.0
      %1763 = vmatprep.subr.mxu0 0.0
      %1764 = vmatpush1.msra.mxu0 0.0
      %1765 = vmatprep.subr.mxu0 0.0
      %1766 = vmatpush1.msra.mxu0 0.0
      %1767 = vmatprep.subr.mxu0 0.0
      %1768 = vmatpush1.msra.mxu0 0.0
      %1769 = vmatprep.subr.mxu0 0.0
      %1770 = vmatpush1.msra.mxu0 0.0
      %1771 = vmatprep.subr.mxu0 0.0
      %1772 = vmatpush1.msra.mxu0 0.0
      %1773 = vmatprep.subr.mxu0 0.0
      %1774 = vmatpush1.msra.mxu0 0.0
      %1775 = vmatprep.subr.mxu0 0.0
      %1776 = vmatpush1.msra.mxu0 0.0
      %1777 = vmatprep.subr.mxu0 0.0
      %1778 = vmatpush1.msra.mxu0 0.0
      %1779 = vmatprep.subr.mxu0 0.0
      %1780 = vmatpush1.msra.mxu0 0.0
      %1781 = vmatprep.subr.mxu0 0.0
      %1782 = vmatpush1.msra.mxu0 0.0
      %1783 = vmatprep.subr.mxu0 0.0
      %1784 = vmatpush1.msra.mxu0 0.0
      %1785 = vmatprep.subr.mxu0 0.0
      %1786 = vmatpush1.msra.mxu0 0.0
      %1787 = vmatprep.subr.mxu0 0.0
      %1788 = vmatpush1.msra.mxu0 0.0
      %1789 = vmatprep.subr.mxu0 0.0
      %1790 = vmatpush1.msra.mxu0 0.0
      %1791 = vmatprep.subr.mxu0 0.0
      %1792 = vmatpush1.msra.mxu0 0.0
      %1793 = vmatprep.subr.mxu0 0.0
      %1794 = vmatpush1.msra.mxu0 0.0
      %1795 = vmatprep.subr.mxu0 0.0
      %1796 = vmatpush1.msra.mxu0 0.0
      %1797 = vmatprep.subr.mxu0 0.0
      %1798 = vmatpush1.msra.mxu0 0.0
      %1799 = vmatprep.subr.mxu0 0.0
      %1800 = vmatpush1.msra.mxu0 0.0
      %1801 = vmatprep.subr.mxu0 0.0
      %1802 = vmatpush1.msra.mxu0 0.0
      %1803 = vmatprep.subr.mxu0 0.0
      %1804 = vmatpush1.msra.mxu0 0.0
      %1805 = vmatprep.subr.mxu0 0.0
      %1806 = vmatpush1.msra.mxu0 0.0
      %1807 = vmatprep.subr.mxu0 0.0
      %1808 = vmatpush1.msra.mxu0 0.0
      %1809 = vmatprep.mubr.f32.mxu0 0.0
      %1810 = vmatmul.mubr.f32.gmra.mrb[0].mxu0 %v1740
      %v1811 = vpop.f32.mrb[0].mxu0
      %v1812 = vadd.f32 0.0, %v1811
      %v1813 = vpop.f32.mrb[0].mxu0
      %1814 = vmatprep.mubr.f32.mxu0 0.0
      %1815 = vmatmul.mubr.f32.gmra.mrb[0].mxu0 %v1743
      %v1816 = vpop.f32.mrb[0].mxu0
      %v1817 = vadd.f32 0.0, %v1816
      %v1818 = vpop.f32.mrb[0].mxu0
      %1819 = vdwg.mxu0
      %v1821 = vsel %vm873, %v865, 0
      %v1824 = vsel %vm873, %v866, 0
      %1826 = vmatprep.subr.mxu0 0.0
      %1827 = vmatpush1.msra.mxu0 %v1731
      %1828 = vmatprep.subr.mxu0 0.0
      %1829 = vmatpush1.msra.mxu0 %v1736
      %1830 = vmatprep.subr.mxu0 0.0
      %1831 = vmatpush1.msra.mxu0 0.0
      %1832 = vmatprep.subr.mxu0 0.0
      %1833 = vmatpush1.msra.mxu0 0.0
      %1834 = vmatprep.subr.mxu0 0.0
      %1835 = vmatpush1.msra.mxu0 0.0
      %1836 = vmatprep.subr.mxu0 0.0
      %1837 = vmatpush1.msra.mxu0 0.0
      %1838 = vmatprep.subr.mxu0 0.0
      %1839 = vmatpush1.msra.mxu0 0.0
      %1840 = vmatprep.subr.mxu0 0.0
      %1841 = vmatpush1.msra.mxu0 0.0
      %1842 = vmatprep.subr.mxu0 0.0
      %1843 = vmatpush1.msra.mxu0 0.0
      %1844 = vmatprep.subr.mxu0 0.0
      %1845 = vmatpush1.msra.mxu0 0.0
      %1846 = vmatprep.subr.mxu0 0.0
      %1847 = vmatpush1.msra.mxu0 0.0
      %1848 = vmatprep.subr.mxu0 0.0
      %1849 = vmatpush1.msra.mxu0 0.0
      %1850 = vmatprep.subr.mxu0 0.0
      %1851 = vmatpush1.msra.mxu0 0.0
      %1852 = vmatprep.subr.mxu0 0.0
      %1853 = vmatpush1.msra.mxu0 0.0
      %1854 = vmatprep.subr.mxu0 0.0
      %1855 = vmatpush1.msra.mxu0 0.0
      %1856 = vmatprep.subr.mxu0 0.0
      %1857 = vmatpush1.msra.mxu0 0.0
      %1858 = vmatprep.subr.mxu0 0.0
      %1859 = vmatpush1.msra.mxu0 0.0
      %1860 = vmatprep.subr.mxu0 0.0
      %1861 = vmatpush1.msra.mxu0 0.0
      %1862 = vmatprep.subr.mxu0 0.0
      %1863 = vmatpush1.msra.mxu0 0.0
      %1864 = vmatprep.subr.mxu0 0.0
      %1865 = vmatpush1.msra.mxu0 0.0
      %1866 = vmatprep.subr.mxu0 0.0
      %1867 = vmatpush1.msra.mxu0 0.0
      %1868 = vmatprep.subr.mxu0 0.0
      %1869 = vmatpush1.msra.mxu0 0.0
      %1870 = vmatprep.subr.mxu0 0.0
      %1871 = vmatpush1.msra.mxu0 0.0
      %1872 = vmatprep.subr.mxu0 0.0
      %1873 = vmatpush1.msra.mxu0 0.0
      %1874 = vmatprep.subr.mxu0 0.0
      %1875 = vmatpush1.msra.mxu0 0.0
      %1876 = vmatprep.subr.mxu0 0.0
      %1877 = vmatpush1.msra.mxu0 0.0
      %1878 = vmatprep.subr.mxu0 0.0
      %1879 = vmatpush1.msra.mxu0 0.0
      %1880 = vmatprep.subr.mxu0 0.0
      %1881 = vmatpush1.msra.mxu0 0.0
      %1882 = vmatprep.subr.mxu0 0.0
      %1883 = vmatpush1.msra.mxu0 0.0
      %1884 = vmatprep.subr.mxu0 0.0
      %1885 = vmatpush1.msra.mxu0 0.0
      %1886 = vmatprep.subr.mxu0 0.0
      %1887 = vmatpush1.msra.mxu0 0.0
      %1888 = vmatprep.subr.mxu0 0.0
      %1889 = vmatpush1.msra.mxu0 0.0
      %1890 = vmatprep.mubr.f32.mxu0 0.0
      %1891 = vmatmul.mubr.f32.gmra.mrb[0].mxu0 %v1821
      %v1892 = vpop.f32.mrb[0].mxu0
      %v1893 = vadd.f32 0.0, %v1892
      %v1894 = vpop.f32.mrb[0].mxu0
      %1895 = vmatprep.mubr.f32.mxu0 0.0
      %1896 = vmatmul.mubr.f32.gmra.mrb[0].mxu0 %v1824
      %v1897 = vpop.f32.mrb[0].mxu0
      %v1898 = vadd.f32 0.0, %v1897
      %v1899 = vpop.f32.mrb[0].mxu0
      %1900 = vdwg.mxu0
      %v1901 = vsub.f32 %v1812, %v1893
      %v1902 = vsub.f32 %v1817, %v1898
      %1903 = vmatprep.subr.mxu0 0.0
      %1904 = vmatpush1.msra.mxu0 %v1651
      %1905 = vmatprep.subr.mxu0 0.0
      %1906 = vmatpush1.msra.mxu0 %v1656
      %1907 = vmatprep.subr.mxu0 0.0
      %1908 = vmatpush1.msra.mxu0 0.0
      %1909 = vmatprep.subr.mxu0 0.0
      %1910 = vmatpush1.msra.mxu0 0.0
      %1911 = vmatprep.subr.mxu0 0.0
      %1912 = vmatpush1.msra.mxu0 0.0
      %1913 = vmatprep.subr.mxu0 0.0
      %1914 = vmatpush1.msra.mxu0 0.0
      %1915 = vmatprep.subr.mxu0 0.0
      %1916 = vmatpush1.msra.mxu0 0.0
      %1917 = vmatprep.subr.mxu0 0.0
      %1918 = vmatpush1.msra.mxu0 0.0
      %1919 = vmatprep.subr.mxu0 0.0
      %1920 = vmatpush1.msra.mxu0 0.0
      %1921 = vmatprep.subr.mxu0 0.0
      %1922 = vmatpush1.msra.mxu0 0.0
      %1923 = vmatprep.subr.mxu0 0.0
      %1924 = vmatpush1.msra.mxu0 0.0
      %1925 = vmatprep.subr.mxu0 0.0
      %1926 = vmatpush1.msra.mxu0 0.0
      %1927 = vmatprep.subr.mxu0 0.0
      %1928 = vmatpush1.msra.mxu0 0.0
      %1929 = vmatprep.subr.mxu0 0.0
      %1930 = vmatpush1.msra.mxu0 0.0
      %1931 = vmatprep.subr.mxu0 0.0
      %1932 = vmatpush1.msra.mxu0 0.0
      %1933 = vmatprep.subr.mxu0 0.0
      %1934 = vmatpush1.msra.mxu0 0.0
      %1935 = vmatprep.subr.mxu0 0.0
      %1936 = vmatpush1.msra.mxu0 0.0
      %1937 = vmatprep.subr.mxu0 0.0
      %1938 = vmatpush1.msra.mxu0 0.0
      %1939 = vmatprep.subr.mxu0 0.0
      %1940 = vmatpush1.msra.mxu0 0.0
      %1941 = vmatprep.subr.mxu0 0.0
      %1942 = vmatpush1.msra.mxu0 0.0
      %1943 = vmatprep.subr.mxu0 0.0
      %1944 = vmatpush1.msra.mxu0 0.0
      %1945 = vmatprep.subr.mxu0 0.0
      %1946 = vmatpush1.msra.mxu0 0.0
      %1947 = vmatprep.subr.mxu0 0.0
      %1948 = vmatpush1.msra.mxu0 0.0
      %1949 = vmatprep.subr.mxu0 0.0
      %1950 = vmatpush1.msra.mxu0 0.0
      %1951 = vmatprep.subr.mxu0 0.0
      %1952 = vmatpush1.msra.mxu0 0.0
      %1953 = vmatprep.subr.mxu0 0.0
      %1954 = vmatpush1.msra.mxu0 0.0
      %1955 = vmatprep.subr.mxu0 0.0
      %1956 = vmatpush1.msra.mxu0 0.0
      %1957 = vmatprep.subr.mxu0 0.0
      %1958 = vmatpush1.msra.mxu0 0.0
      %1959 = vmatprep.subr.mxu0 0.0
      %1960 = vmatpush1.msra.mxu0 0.0
      %1961 = vmatprep.subr.mxu0 0.0
      %1962 = vmatpush1.msra.mxu0 0.0
      %1963 = vmatprep.subr.mxu0 0.0
      %1964 = vmatpush1.msra.mxu0 0.0
      %1965 = vmatprep.subr.mxu0 0.0
      %1966 = vmatpush1.msra.mxu0 0.0
      %1967 = vmatprep.mubr.f32.mxu0 0.0
      %1968 = vmatmul.mubr.f32.gmra.mrb[0].mxu0 %v1821
      %v1969 = vpop.f32.mrb[0].mxu0
      %v1970 = vadd.f32 0.0, %v1969
      %v1971 = vpop.f32.mrb[0].mxu0
      %1972 = vmatprep.mubr.f32.mxu0 0.0
      %1973 = vmatmul.mubr.f32.gmra.mrb[0].mxu0 %v1824
      %v1974 = vpop.f32.mrb[0].mxu0
      %v1975 = vadd.f32 0.0, %v1974
      %v1976 = vpop.f32.mrb[0].mxu0
      %1977 = vdwg.mxu0
      %1978 = vmatprep.subr.mxu0 0.0
      %1979 = vmatpush1.msra.mxu0 %v1731
      %1980 = vmatprep.subr.mxu0 0.0
      %1981 = vmatpush1.msra.mxu0 %v1736
      %1982 = vmatprep.subr.mxu0 0.0
      %1983 = vmatpush1.msra.mxu0 0.0
      %1984 = vmatprep.subr.mxu0 0.0
      %1985 = vmatpush1.msra.mxu0 0.0
      %1986 = vmatprep.subr.mxu0 0.0
      %1987 = vmatpush1.msra.mxu0 0.0
      %1988 = vmatprep.subr.mxu0 0.0
      %1989 = vmatpush1.msra.mxu0 0.0
      %1990 = vmatprep.subr.mxu0 0.0
      %1991 = vmatpush1.msra.mxu0 0.0
      %1992 = vmatprep.subr.mxu0 0.0
      %1993 = vmatpush1.msra.mxu0 0.0
      %1994 = vmatprep.subr.mxu0 0.0
      %1995 = vmatpush1.msra.mxu0 0.0
      %1996 = vmatprep.subr.mxu0 0.0
      %1997 = vmatpush1.msra.mxu0 0.0
      %1998 = vmatprep.subr.mxu0 0.0
      %1999 = vmatpush1.msra.mxu0 0.0
      %2000 = vmatprep.subr.mxu0 0.0
      %2001 = vmatpush1.msra.mxu0 0.0
      %2002 = vmatprep.subr.mxu0 0.0
      %2003 = vmatpush1.msra.mxu0 0.0
      %2004 = vmatprep.subr.mxu0 0.0
      %2005 = vmatpush1.msra.mxu0 0.0
      %2006 = vmatprep.subr.mxu0 0.0
      %2007 = vmatpush1.msra.mxu0 0.0
      %2008 = vmatprep.subr.mxu0 0.0
      %2009 = vmatpush1.msra.mxu0 0.0
      %2010 = vmatprep.subr.mxu0 0.0
      %2011 = vmatpush1.msra.mxu0 0.0
      %2012 = vmatprep.subr.mxu0 0.0
      %2013 = vmatpush1.msra.mxu0 0.0
      %2014 = vmatprep.subr.mxu0 0.0
      %2015 = vmatpush1.msra.mxu0 0.0
      %2016 = vmatprep.subr.mxu0 0.0
      %2017 = vmatpush1.msra.mxu0 0.0
      %2018 = vmatprep.subr.mxu0 0.0
      %2019 = vmatpush1.msra.mxu0 0.0
      %2020 = vmatprep.subr.mxu0 0.0
      %2021 = vmatpush1.msra.mxu0 0.0
      %2022 = vmatprep.subr.mxu0 0.0
      %2023 = vmatpush1.msra.mxu0 0.0
      %2024 = vmatprep.subr.mxu0 0.0
      %2025 = vmatpush1.msra.mxu0 0.0
      %2026 = vmatprep.subr.mxu0 0.0
      %2027 = vmatpush1.msra.mxu0 0.0
      %2028 = vmatprep.subr.mxu0 0.0
      %2029 = vmatpush1.msra.mxu0 0.0
      %2030 = vmatprep.subr.mxu0 0.0
      %2031 = vmatpush1.msra.mxu0 0.0
      %2032 = vmatprep.subr.mxu0 0.0
      %2033 = vmatpush1.msra.mxu0 0.0
      %2034 = vmatprep.subr.mxu0 0.0
      %2035 = vmatpush1.msra.mxu0 0.0
      %2036 = vmatprep.subr.mxu0 0.0
      %2037 = vmatpush1.msra.mxu0 0.0
      %2038 = vmatprep.subr.mxu0 0.0
      %2039 = vmatpush1.msra.mxu0 0.0
      %2040 = vmatprep.subr.mxu0 0.0
      %2041 = vmatpush1.msra.mxu0 0.0
      %2042 = vmatprep.mubr.f32.mxu0 0.0
      %2043 = vmatmul.mubr.f32.gmra.mrb[0].mxu0 %v1740
      %v2044 = vpop.f32.mrb[0].mxu0
      %v2045 = vadd.f32 %v1970, %v2044
      %v2046 = vpop.f32.mrb[0].mxu0
      %2047 = vmatprep.mubr.f32.mxu0 0.0
      %2048 = vmatmul.mubr.f32.gmra.mrb[0].mxu0 %v1743
      %v2049 = vpop.f32.mrb[0].mxu0
      %v2050 = vadd.f32 %v1975, %v2049
      %v2051 = vpop.f32.mrb[0].mxu0
      %2052 = vdwg.mxu0
      %v2053 = vld [vmem:[%s14] sm:$0xff]
      %v2054 = vld [vmem:[%s14 + $0x8] sm:$0xff]
      %v2055 = vld [vmem:[%s14 + $0x10] sm:$0x3]
      %v2056 = vld [vmem:[%s15] sm:$0x1]
      %v2058 = vlaneseq
      %v2059 = vshrl.u32 %v2058, 7
      %v2060 = vsub.s32 0, %v2059
      %v2061 = vrot.slane %v2056, %v2060
      %vm2063 = vcmask 146432
      %v2065 = vsel %vm2063, %v1901, 0
      %v2068 = vsel %vm2063, %v1902, 0
      %vm2070 = vcmask 1041408
      %v2072 = vsel %vm2070, %v2055, 0
      %2074 = vmatprep.subr.mxu0 0.0
      %2075 = vmatpush1.msra.mxu0 %v2053
      %2076 = vmatprep.subr.mxu0 0.0
      %2077 = vmatpush1.msra.mxu0 %v2054
      %2078 = vmatprep.subr.mxu0 0.0
      %2079 = vmatpush1.msra.mxu0 %v2072
      %2080 = vmatprep.subr.mxu0 0.0
      %2081 = vmatpush1.msra.mxu0 0.0
      %2082 = vmatprep.subr.mxu0 0.0
      %2083 = vmatpush1.msra.mxu0 0.0
      %2084 = vmatprep.subr.mxu0 0.0
      %2085 = vmatpush1.msra.mxu0 0.0
      %2086 = vmatprep.subr.mxu0 0.0
      %2087 = vmatpush1.msra.mxu0 0.0
      %2088 = vmatprep.subr.mxu0 0.0
      %2089 = vmatpush1.msra.mxu0 0.0
      %2090 = vmatprep.subr.mxu0 0.0
      %2091 = vmatpush1.msra.mxu0 0.0
      %2092 = vmatprep.subr.mxu0 0.0
      %2093 = vmatpush1.msra.mxu0 0.0
      %2094 = vmatprep.subr.mxu0 0.0
      %2095 = vmatpush1.msra.mxu0 0.0
      %2096 = vmatprep.subr.mxu0 0.0
      %2097 = vmatpush1.msra.mxu0 0.0
      %2098 = vmatprep.subr.mxu0 0.0
      %2099 = vmatpush1.msra.mxu0 0.0
      %2100 = vmatprep.subr.mxu0 0.0
      %2101 = vmatpush1.msra.mxu0 0.0
      %2102 = vmatprep.subr.mxu0 0.0
      %2103 = vmatpush1.msra.mxu0 0.0
      %2104 = vmatprep.subr.mxu0 0.0
      %2105 = vmatpush1.msra.mxu0 0.0
      %2106 = vmatprep.subr.mxu0 0.0
      %2107 = vmatpush1.msra.mxu0 0.0
      %2108 = vmatprep.subr.mxu0 0.0
      %2109 = vmatpush1.msra.mxu0 0.0
      %2110 = vmatprep.subr.mxu0 0.0
      %2111 = vmatpush1.msra.mxu0 0.0
      %2112 = vmatprep.subr.mxu0 0.0
      %2113 = vmatpush1.msra.mxu0 0.0
      %2114 = vmatprep.subr.mxu0 0.0
      %2115 = vmatpush1.msra.mxu0 0.0
      %2116 = vmatprep.subr.mxu0 0.0
      %2117 = vmatpush1.msra.mxu0 0.0
      %2118 = vmatprep.subr.mxu0 0.0
      %2119 = vmatpush1.msra.mxu0 0.0
      %2120 = vmatprep.subr.mxu0 0.0
      %2121 = vmatpush1.msra.mxu0 0.0
      %2122 = vmatprep.subr.mxu0 0.0
      %2123 = vmatpush1.msra.mxu0 0.0
      %2124 = vmatprep.subr.mxu0 0.0
      %2125 = vmatpush1.msra.mxu0 0.0
      %2126 = vmatprep.subr.mxu0 0.0
      %2127 = vmatpush1.msra.mxu0 0.0
      %2128 = vmatprep.subr.mxu0 0.0
      %2129 = vmatpush1.msra.mxu0 0.0
      %2130 = vmatprep.subr.mxu0 0.0
      %2131 = vmatpush1.msra.mxu0 0.0
      %2132 = vmatprep.subr.mxu0 0.0
      %2133 = vmatpush1.msra.mxu0 0.0
      %2134 = vmatprep.subr.mxu0 0.0
      %2135 = vmatpush1.msra.mxu0 0.0
      %2136 = vmatprep.subr.mxu0 0.0
      %2137 = vmatpush1.msra.mxu0 0.0
      %2138 = vmatprep.mubr.f32.mxu0 0.0
      %2139 = vmatmul.mubr.f32.gmra.mrb[0].mxu0 %v2065
      %v2140 = vpop.f32.mrb[0].mxu0
      %v2141 = vadd.f32 %v2061, %v2140
      %v2142 = vpop.f32.mrb[0].mxu0
      %2143 = vmatprep.mubr.f32.mxu0 0.0
      %2144 = vmatmul.mubr.f32.gmra.mrb[0].mxu0 %v2068
      %v2145 = vpop.f32.mrb[0].mxu0
      %v2146 = vadd.f32 %v2061, %v2145
      %v2147 = vpop.f32.mrb[0].mxu0
      %2148 = vdwg.mxu0
      %v2149 = vld [vmem:[%s16] sm:$0x1]
      %vm2150 = vcmp.ge.f32.partialorder %v2141, 0.0
      %vm2151 = vcmp.ge.f32.partialorder %v2146, 0.0
      %v2153 = vlaneseq
      %v2154 = vshrl.u32 %v2153, 7
      %v2155 = vsub.s32 0, %v2154
      %v2156 = vrot.slane %v2149, %v2155
      %v2158 = vmul.f32 %v2156, %v2141
      %v2159 = vmul.f32 %v2156, %v2146
      %v2160 = vsel %vm2150, %v2141, %v2158
      %v2161 = vsel %vm2151, %v2146, %v2159
      %v2163 = vsel %vm2063, %v2045, 0
      %v2166 = vsel %vm2063, %v2050, 0
      %2168 = vmatprep.subr.mxu0 0.0
      %2169 = vmatpush1.msra.mxu0 %v2053
      %2170 = vmatprep.subr.mxu0 0.0
      %2171 = vmatpush1.msra.mxu0 %v2054
      %2172 = vmatprep.subr.mxu0 0.0
      %2173 = vmatpush1.msra.mxu0 %v2072
      %2174 = vmatprep.subr.mxu0 0.0
      %2175 = vmatpush1.msra.mxu0 0.0
      %2176 = vmatprep.subr.mxu0 0.0
      %2177 = vmatpush1.msra.mxu0 0.0
      %2178 = vmatprep.subr.mxu0 0.0
      %2179 = vmatpush1.msra.mxu0 0.0
      %2180 = vmatprep.subr.mxu0 0.0
      %2181 = vmatpush1.msra.mxu0 0.0
      %2182 = vmatprep.subr.mxu0 0.0
      %2183 = vmatpush1.msra.mxu0 0.0
      %2184 = vmatprep.subr.mxu0 0.0
      %2185 = vmatpush1.msra.mxu0 0.0
      %2186 = vmatprep.subr.mxu0 0.0
      %2187 = vmatpush1.msra.mxu0 0.0
      %2188 = vmatprep.subr.mxu0 0.0
      %2189 = vmatpush1.msra.mxu0 0.0
      %2190 = vmatprep.subr.mxu0 0.0
      %2191 = vmatpush1.msra.mxu0 0.0
      %2192 = vmatprep.subr.mxu0 0.0
      %2193 = vmatpush1.msra.mxu0 0.0
      %2194 = vmatprep.subr.mxu0 0.0
      %2195 = vmatpush1.msra.mxu0 0.0
      %2196 = vmatprep.subr.mxu0 0.0
      %2197 = vmatpush1.msra.mxu0 0.0
      %2198 = vmatprep.subr.mxu0 0.0
      %2199 = vmatpush1.msra.mxu0 0.0
      %2200 = vmatprep.subr.mxu0 0.0
      %2201 = vmatpush1.msra.mxu0 0.0
      %2202 = vmatprep.subr.mxu0 0.0
      %2203 = vmatpush1.msra.mxu0 0.0
      %2204 = vmatprep.subr.mxu0 0.0
      %2205 = vmatpush1.msra.mxu0 0.0
      %2206 = vmatprep.subr.mxu0 0.0
      %2207 = vmatpush1.msra.mxu0 0.0
      %2208 = vmatprep.subr.mxu0 0.0
      %2209 = vmatpush1.msra.mxu0 0.0
      %2210 = vmatprep.subr.mxu0 0.0
      %2211 = vmatpush1.msra.mxu0 0.0
      %2212 = vmatprep.subr.mxu0 0.0
      %2213 = vmatpush1.msra.mxu0 0.0
      %2214 = vmatprep.subr.mxu0 0.0
      %2215 = vmatpush1.msra.mxu0 0.0
      %2216 = vmatprep.subr.mxu0 0.0
      %2217 = vmatpush1.msra.mxu0 0.0
      %2218 = vmatprep.subr.mxu0 0.0
      %2219 = vmatpush1.msra.mxu0 0.0
      %2220 = vmatprep.subr.mxu0 0.0
      %2221 = vmatpush1.msra.mxu0 0.0
      %2222 = vmatprep.subr.mxu0 0.0
      %2223 = vmatpush1.msra.mxu0 0.0
      %2224 = vmatprep.subr.mxu0 0.0
      %2225 = vmatpush1.msra.mxu0 0.0
      %2226 = vmatprep.subr.mxu0 0.0
      %2227 = vmatpush1.msra.mxu0 0.0
      %2228 = vmatprep.subr.mxu0 0.0
      %2229 = vmatpush1.msra.mxu0 0.0
      %2230 = vmatprep.subr.mxu0 0.0
      %2231 = vmatpush1.msra.mxu0 0.0
      %2232 = vmatprep.mubr.f32.mxu0 0.0
      %2233 = vmatmul.mubr.f32.gmra.mrb[0].mxu0 %v2163
      %v2234 = vpop.f32.mrb[0].mxu0
      %v2235 = vadd.f32 %v2061, %v2234
      %v2236 = vpop.f32.mrb[0].mxu0
      %2237 = vmatprep.mubr.f32.mxu0 0.0
      %2238 = vmatmul.mubr.f32.gmra.mrb[0].mxu0 %v2166
      %v2239 = vpop.f32.mrb[0].mxu0
      %v2240 = vadd.f32 %v2061, %v2239
      %v2241 = vpop.f32.mrb[0].mxu0
      %2242 = vdwg.mxu0
      %vm2243 = vcmp.ge.f32.partialorder %v2235, 0.0
      %vm2244 = vcmp.ge.f32.partialorder %v2240, 0.0
      %v2245 = vmul.f32 %v2156, %v2235
      %v2246 = vmul.f32 %v2156, %v2240
      %v2247 = vsel %vm2243, %v2235, %v2245
      %v2248 = vsel %vm2244, %v2240, %v2246
      %v2250 = vsel %vm873, %v868, 0
      %v2253 = vsel %vm873, %v869, 0
      %2255 = vmatprep.subr.mxu0 0.0
      %2256 = vmatpush1.msra.mxu0 %v2160
      %2257 = vmatprep.subr.mxu0 0.0
      %2258 = vmatpush1.msra.mxu0 %v2161
      %2259 = vmatprep.subr.mxu0 0.0
      %2260 = vmatpush1.msra.mxu0 0.0
      %2261 = vmatprep.subr.mxu0 0.0
      %2262 = vmatpush1.msra.mxu0 0.0
      %2263 = vmatprep.subr.mxu0 0.0
      %2264 = vmatpush1.msra.mxu0 0.0
      %2265 = vmatprep.subr.mxu0 0.0
      %2266 = vmatpush1.msra.mxu0 0.0
      %2267 = vmatprep.subr.mxu0 0.0
      %2268 = vmatpush1.msra.mxu0 0.0
      %2269 = vmatprep.subr.mxu0 0.0
      %2270 = vmatpush1.msra.mxu0 0.0
      %2271 = vmatprep.subr.mxu0 0.0
      %2272 = vmatpush1.msra.mxu0 0.0
      %2273 = vmatprep.subr.mxu0 0.0
      %2274 = vmatpush1.msra.mxu0 0.0
      %2275 = vmatprep.subr.mxu0 0.0
      %2276 = vmatpush1.msra.mxu0 0.0
      %2277 = vmatprep.subr.mxu0 0.0
      %2278 = vmatpush1.msra.mxu0 0.0
      %2279 = vmatprep.subr.mxu0 0.0
      %2280 = vmatpush1.msra.mxu0 0.0
      %2281 = vmatprep.subr.mxu0 0.0
      %2282 = vmatpush1.msra.mxu0 0.0
      %2283 = vmatprep.subr.mxu0 0.0
      %2284 = vmatpush1.msra.mxu0 0.0
      %2285 = vmatprep.subr.mxu0 0.0
      %2286 = vmatpush1.msra.mxu0 0.0
      %2287 = vmatprep.subr.mxu0 0.0
      %2288 = vmatpush1.msra.mxu0 0.0
      %2289 = vmatprep.subr.mxu0 0.0
      %2290 = vmatpush1.msra.mxu0 0.0
      %2291 = vmatprep.subr.mxu0 0.0
      %2292 = vmatpush1.msra.mxu0 0.0
      %2293 = vmatprep.subr.mxu0 0.0
      %2294 = vmatpush1.msra.mxu0 0.0
      %2295 = vmatprep.subr.mxu0 0.0
      %2296 = vmatpush1.msra.mxu0 0.0
      %2297 = vmatprep.subr.mxu0 0.0
      %2298 = vmatpush1.msra.mxu0 0.0
      %2299 = vmatprep.subr.mxu0 0.0
      %2300 = vmatpush1.msra.mxu0 0.0
      %2301 = vmatprep.subr.mxu0 0.0
      %2302 = vmatpush1.msra.mxu0 0.0
      %2303 = vmatprep.subr.mxu0 0.0
      %2304 = vmatpush1.msra.mxu0 0.0
      %2305 = vmatprep.subr.mxu0 0.0
      %2306 = vmatpush1.msra.mxu0 0.0
      %2307 = vmatprep.subr.mxu0 0.0
      %2308 = vmatpush1.msra.mxu0 0.0
      %2309 = vmatprep.subr.mxu0 0.0
      %2310 = vmatpush1.msra.mxu0 0.0
      %2311 = vmatprep.subr.mxu0 0.0
      %2312 = vmatpush1.msra.mxu0 0.0
      %2313 = vmatprep.subr.mxu0 0.0
      %2314 = vmatpush1.msra.mxu0 0.0
      %2315 = vmatprep.subr.mxu0 0.0
      %2316 = vmatpush1.msra.mxu0 0.0
      %2317 = vmatprep.subr.mxu0 0.0
      %2318 = vmatpush1.msra.mxu0 0.0
      %2319 = vmatprep.mubr.f32.mxu0 0.0
      %2320 = vmatmul.mubr.f32.gmra.mrb[0].mxu0 %v2250
      %v2321 = vpop.f32.mrb[0].mxu0
      %v2322 = vadd.f32 0.0, %v2321
      %v2323 = vpop.f32.mrb[0].mxu0
      %2324 = vmatprep.mubr.f32.mxu0 0.0
      %2325 = vmatmul.mubr.f32.gmra.mrb[0].mxu0 %v2253
      %v2326 = vpop.f32.mrb[0].mxu0
      %v2327 = vadd.f32 0.0, %v2326
      %v2328 = vpop.f32.mrb[0].mxu0
      %2329 = vdwg.mxu0
      %v2331 = vsel %vm873, %v871, 0
      %v2334 = vsel %vm873, %v872, 0
      %2336 = vmatprep.subr.mxu0 0.0
      %2337 = vmatpush1.msra.mxu0 %v2247
      %2338 = vmatprep.subr.mxu0 0.0
      %2339 = vmatpush1.msra.mxu0 %v2248
      %2340 = vmatprep.subr.mxu0 0.0
      %2341 = vmatpush1.msra.mxu0 0.0
      %2342 = vmatprep.subr.mxu0 0.0
      %2343 = vmatpush1.msra.mxu0 0.0
      %2344 = vmatprep.subr.mxu0 0.0
      %2345 = vmatpush1.msra.mxu0 0.0
      %2346 = vmatprep.subr.mxu0 0.0
      %2347 = vmatpush1.msra.mxu0 0.0
      %2348 = vmatprep.subr.mxu0 0.0
      %2349 = vmatpush1.msra.mxu0 0.0
      %2350 = vmatprep.subr.mxu0 0.0
      %2351 = vmatpush1.msra.mxu0 0.0
      %2352 = vmatprep.subr.mxu0 0.0
      %2353 = vmatpush1.msra.mxu0 0.0
      %2354 = vmatprep.subr.mxu0 0.0
      %2355 = vmatpush1.msra.mxu0 0.0
      %2356 = vmatprep.subr.mxu0 0.0
      %2357 = vmatpush1.msra.mxu0 0.0
      %2358 = vmatprep.subr.mxu0 0.0
      %2359 = vmatpush1.msra.mxu0 0.0
      %2360 = vmatprep.subr.mxu0 0.0
      %2361 = vmatpush1.msra.mxu0 0.0
      %2362 = vmatprep.subr.mxu0 0.0
      %2363 = vmatpush1.msra.mxu0 0.0
      %2364 = vmatprep.subr.mxu0 0.0
      %2365 = vmatpush1.msra.mxu0 0.0
      %2366 = vmatprep.subr.mxu0 0.0
      %2367 = vmatpush1.msra.mxu0 0.0
      %2368 = vmatprep.subr.mxu0 0.0
      %2369 = vmatpush1.msra.mxu0 0.0
      %2370 = vmatprep.subr.mxu0 0.0
      %2371 = vmatpush1.msra.mxu0 0.0
      %2372 = vmatprep.subr.mxu0 0.0
      %2373 = vmatpush1.msra.mxu0 0.0
      %2374 = vmatprep.subr.mxu0 0.0
      %2375 = vmatpush1.msra.mxu0 0.0
      %2376 = vmatprep.subr.mxu0 0.0
      %2377 = vmatpush1.msra.mxu0 0.0
      %2378 = vmatprep.subr.mxu0 0.0
      %2379 = vmatpush1.msra.mxu0 0.0
      %2380 = vmatprep.subr.mxu0 0.0
      %2381 = vmatpush1.msra.mxu0 0.0
      %2382 = vmatprep.subr.mxu0 0.0
      %2383 = vmatpush1.msra.mxu0 0.0
      %2384 = vmatprep.subr.mxu0 0.0
      %2385 = vmatpush1.msra.mxu0 0.0
      %2386 = vmatprep.subr.mxu0 0.0
      %2387 = vmatpush1.msra.mxu0 0.0
      %2388 = vmatprep.subr.mxu0 0.0
      %2389 = vmatpush1.msra.mxu0 0.0
      %2390 = vmatprep.subr.mxu0 0.0
      %2391 = vmatpush1.msra.mxu0 0.0
      %2392 = vmatprep.subr.mxu0 0.0
      %2393 = vmatpush1.msra.mxu0 0.0
      %2394 = vmatprep.subr.mxu0 0.0
      %2395 = vmatpush1.msra.mxu0 0.0
      %2396 = vmatprep.subr.mxu0 0.0
      %2397 = vmatpush1.msra.mxu0 0.0
      %2398 = vmatprep.subr.mxu0 0.0
      %2399 = vmatpush1.msra.mxu0 0.0
      %2400 = vmatprep.mubr.f32.mxu0 0.0
      %2401 = vmatmul.mubr.f32.gmra.mrb[0].mxu0 %v2331
      %v2402 = vpop.f32.mrb[0].mxu0
      %v2403 = vadd.f32 0.0, %v2402
      %v2404 = vpop.f32.mrb[0].mxu0
      %2405 = vmatprep.mubr.f32.mxu0 0.0
      %2406 = vmatmul.mubr.f32.gmra.mrb[0].mxu0 %v2334
      %v2407 = vpop.f32.mrb[0].mxu0
      %v2408 = vadd.f32 0.0, %v2407
      %v2409 = vpop.f32.mrb[0].mxu0
      %2410 = vdwg.mxu0
      %v2411 = vsub.f32 %v2322, %v2403
      %v2412 = vsub.f32 %v2327, %v2408
      %2413 = vmatprep.subr.mxu0 0.0
      %2414 = vmatpush1.msra.mxu0 %v2160
      %2415 = vmatprep.subr.mxu0 0.0
      %2416 = vmatpush1.msra.mxu0 %v2161
      %2417 = vmatprep.subr.mxu0 0.0
      %2418 = vmatpush1.msra.mxu0 0.0
      %2419 = vmatprep.subr.mxu0 0.0
      %2420 = vmatpush1.msra.mxu0 0.0
      %2421 = vmatprep.subr.mxu0 0.0
      %2422 = vmatpush1.msra.mxu0 0.0
      %2423 = vmatprep.subr.mxu0 0.0
      %2424 = vmatpush1.msra.mxu0 0.0
      %2425 = vmatprep.subr.mxu0 0.0
      %2426 = vmatpush1.msra.mxu0 0.0
      %2427 = vmatprep.subr.mxu0 0.0
      %2428 = vmatpush1.msra.mxu0 0.0
      %2429 = vmatprep.subr.mxu0 0.0
      %2430 = vmatpush1.msra.mxu0 0.0
      %2431 = vmatprep.subr.mxu0 0.0
      %2432 = vmatpush1.msra.mxu0 0.0
      %2433 = vmatprep.subr.mxu0 0.0
      %2434 = vmatpush1.msra.mxu0 0.0
      %2435 = vmatprep.subr.mxu0 0.0
      %2436 = vmatpush1.msra.mxu0 0.0
      %2437 = vmatprep.subr.mxu0 0.0
      %2438 = vmatpush1.msra.mxu0 0.0
      %2439 = vmatprep.subr.mxu0 0.0
      %2440 = vmatpush1.msra.mxu0 0.0
      %2441 = vmatprep.subr.mxu0 0.0
      %2442 = vmatpush1.msra.mxu0 0.0
      %2443 = vmatprep.subr.mxu0 0.0
      %2444 = vmatpush1.msra.mxu0 0.0
      %2445 = vmatprep.subr.mxu0 0.0
      %2446 = vmatpush1.msra.mxu0 0.0
      %2447 = vmatprep.subr.mxu0 0.0
      %2448 = vmatpush1.msra.mxu0 0.0
      %2449 = vmatprep.subr.mxu0 0.0
      %2450 = vmatpush1.msra.mxu0 0.0
      %2451 = vmatprep.subr.mxu0 0.0
      %2452 = vmatpush1.msra.mxu0 0.0
      %2453 = vmatprep.subr.mxu0 0.0
      %2454 = vmatpush1.msra.mxu0 0.0
      %2455 = vmatprep.subr.mxu0 0.0
      %2456 = vmatpush1.msra.mxu0 0.0
      %2457 = vmatprep.subr.mxu0 0.0
      %2458 = vmatpush1.msra.mxu0 0.0
      %2459 = vmatprep.subr.mxu0 0.0
      %2460 = vmatpush1.msra.mxu0 0.0
      %2461 = vmatprep.subr.mxu0 0.0
      %2462 = vmatpush1.msra.mxu0 0.0
      %2463 = vmatprep.subr.mxu0 0.0
      %2464 = vmatpush1.msra.mxu0 0.0
      %2465 = vmatprep.subr.mxu0 0.0
      %2466 = vmatpush1.msra.mxu0 0.0
      %2467 = vmatprep.subr.mxu0 0.0
      %2468 = vmatpush1.msra.mxu0 0.0
      %2469 = vmatprep.subr.mxu0 0.0
      %2470 = vmatpush1.msra.mxu0 0.0
      %2471 = vmatprep.subr.mxu0 0.0
      %2472 = vmatpush1.msra.mxu0 0.0
      %2473 = vmatprep.subr.mxu0 0.0
      %2474 = vmatpush1.msra.mxu0 0.0
      %2475 = vmatprep.subr.mxu0 0.0
      %2476 = vmatpush1.msra.mxu0 0.0
      %2477 = vmatprep.mubr.f32.mxu0 0.0
      %2478 = vmatmul.mubr.f32.gmra.mrb[0].mxu0 %v2331
      %v2479 = vpop.f32.mrb[0].mxu0
      %v2480 = vadd.f32 0.0, %v2479
      %v2481 = vpop.f32.mrb[0].mxu0
      %2482 = vmatprep.mubr.f32.mxu0 0.0
      %2483 = vmatmul.mubr.f32.gmra.mrb[0].mxu0 %v2334
      %v2484 = vpop.f32.mrb[0].mxu0
      %v2485 = vadd.f32 0.0, %v2484
      %v2486 = vpop.f32.mrb[0].mxu0
      %2487 = vdwg.mxu0
      %2488 = vmatprep.subr.mxu0 0.0
      %2489 = vmatpush1.msra.mxu0 %v2247
      %2490 = vmatprep.subr.mxu0 0.0
      %2491 = vmatpush1.msra.mxu0 %v2248
      %2492 = vmatprep.subr.mxu0 0.0
      %2493 = vmatpush1.msra.mxu0 0.0
      %2494 = vmatprep.subr.mxu0 0.0
      %2495 = vmatpush1.msra.mxu0 0.0
      %2496 = vmatprep.subr.mxu0 0.0
      %2497 = vmatpush1.msra.mxu0 0.0
      %2498 = vmatprep.subr.mxu0 0.0
      %2499 = vmatpush1.msra.mxu0 0.0
      %2500 = vmatprep.subr.mxu0 0.0
      %2501 = vmatpush1.msra.mxu0 0.0
      %2502 = vmatprep.subr.mxu0 0.0
      %2503 = vmatpush1.msra.mxu0 0.0
      %2504 = vmatprep.subr.mxu0 0.0
      %2505 = vmatpush1.msra.mxu0 0.0
      %2506 = vmatprep.subr.mxu0 0.0
      %2507 = vmatpush1.msra.mxu0 0.0
      %2508 = vmatprep.subr.mxu0 0.0
      %2509 = vmatpush1.msra.mxu0 0.0
      %2510 = vmatprep.subr.mxu0 0.0
      %2511 = vmatpush1.msra.mxu0 0.0
      %2512 = vmatprep.subr.mxu0 0.0
      %2513 = vmatpush1.msra.mxu0 0.0
      %2514 = vmatprep.subr.mxu0 0.0
      %2515 = vmatpush1.msra.mxu0 0.0
      %2516 = vmatprep.subr.mxu0 0.0
      %2517 = vmatpush1.msra.mxu0 0.0
      %2518 = vmatprep.subr.mxu0 0.0
      %2519 = vmatpush1.msra.mxu0 0.0
      %2520 = vmatprep.subr.mxu0 0.0
      %2521 = vmatpush1.msra.mxu0 0.0
      %2522 = vmatprep.subr.mxu0 0.0
      %2523 = vmatpush1.msra.mxu0 0.0
      %2524 = vmatprep.subr.mxu0 0.0
      %2525 = vmatpush1.msra.mxu0 0.0
      %2526 = vmatprep.subr.mxu0 0.0
      %2527 = vmatpush1.msra.mxu0 0.0
      %2528 = vmatprep.subr.mxu0 0.0
      %2529 = vmatpush1.msra.mxu0 0.0
      %2530 = vmatprep.subr.mxu0 0.0
      %2531 = vmatpush1.msra.mxu0 0.0
      %2532 = vmatprep.subr.mxu0 0.0
      %2533 = vmatpush1.msra.mxu0 0.0
      %2534 = vmatprep.subr.mxu0 0.0
      %2535 = vmatpush1.msra.mxu0 0.0
      %2536 = vmatprep.subr.mxu0 0.0
      %2537 = vmatpush1.msra.mxu0 0.0
      %2538 = vmatprep.subr.mxu0 0.0
      %2539 = vmatpush1.msra.mxu0 0.0
      %2540 = vmatprep.subr.mxu0 0.0
      %2541 = vmatpush1.msra.mxu0 0.0
      %2542 = vmatprep.subr.mxu0 0.0
      %2543 = vmatpush1.msra.mxu0 0.0
      %2544 = vmatprep.subr.mxu0 0.0
      %2545 = vmatpush1.msra.mxu0 0.0
      %2546 = vmatprep.subr.mxu0 0.0
      %2547 = vmatpush1.msra.mxu0 0.0
      %2548 = vmatprep.subr.mxu0 0.0
      %2549 = vmatpush1.msra.mxu0 0.0
      %2550 = vmatprep.subr.mxu0 0.0
      %2551 = vmatpush1.msra.mxu0 0.0
      %2552 = vmatprep.mubr.f32.mxu0 0.0
      %2553 = vmatmul.mubr.f32.gmra.mrb[0].mxu0 %v2250
      %v2554 = vpop.f32.mrb[0].mxu0
      %v2555 = vadd.f32 %v2480, %v2554
      %v2556 = vpop.f32.mrb[0].mxu0
      %2557 = vmatprep.mubr.f32.mxu0 0.0
      %2558 = vmatmul.mubr.f32.gmra.mrb[0].mxu0 %v2253
      %v2559 = vpop.f32.mrb[0].mxu0
      %v2560 = vadd.f32 %v2485, %v2559
      %v2561 = vpop.f32.mrb[0].mxu0
      %2562 = vdwg.mxu0
      %v2563 = vld [vmem:[%s17] sm:$0xff]
      %v2564 = vld [vmem:[%s17 + $0x8] sm:$0xff]
      %v2565 = vld [vmem:[%s17 + $0x10] sm:$0x3]
      %v2567 = vsel %vm2063, %v2411, 0
      %v2570 = vsel %vm2063, %v2412, 0
      %v2573 = vsel %vm2070, %v2565, 0
      %2575 = vmatprep.subr.mxu0 0.0
      %2576 = vmatpush1.msra.mxu0 %v2563
      %2577 = vmatprep.subr.mxu0 0.0
      %2578 = vmatpush1.msra.mxu0 %v2564
      %2579 = vmatprep.subr.mxu0 0.0
      %2580 = vmatpush1.msra.mxu0 %v2573
      %2581 = vmatprep.subr.mxu0 0.0
      %2582 = vmatpush1.msra.mxu0 0.0
      %2583 = vmatprep.subr.mxu0 0.0
      %2584 = vmatpush1.msra.mxu0 0.0
      %2585 = vmatprep.subr.mxu0 0.0
      %2586 = vmatpush1.msra.mxu0 0.0
      %2587 = vmatprep.subr.mxu0 0.0
      %2588 = vmatpush1.msra.mxu0 0.0
      %2589 = vmatprep.subr.mxu0 0.0
      %2590 = vmatpush1.msra.mxu0 0.0
      %2591 = vmatprep.subr.mxu0 0.0
      %2592 = vmatpush1.msra.mxu0 0.0
      %2593 = vmatprep.subr.mxu0 0.0
      %2594 = vmatpush1.msra.mxu0 0.0
      %2595 = vmatprep.subr.mxu0 0.0
      %2596 = vmatpush1.msra.mxu0 0.0
      %2597 = vmatprep.subr.mxu0 0.0
      %2598 = vmatpush1.msra.mxu0 0.0
      %2599 = vmatprep.subr.mxu0 0.0
      %2600 = vmatpush1.msra.mxu0 0.0
      %2601 = vmatprep.subr.mxu0 0.0
      %2602 = vmatpush1.msra.mxu0 0.0
      %2603 = vmatprep.subr.mxu0 0.0
      %2604 = vmatpush1.msra.mxu0 0.0
      %2605 = vmatprep.subr.mxu0 0.0
      %2606 = vmatpush1.msra.mxu0 0.0
      %2607 = vmatprep.subr.mxu0 0.0
      %2608 = vmatpush1.msra.mxu0 0.0
      %2609 = vmatprep.subr.mxu0 0.0
      %2610 = vmatpush1.msra.mxu0 0.0
      %2611 = vmatprep.subr.mxu0 0.0
      %2612 = vmatpush1.msra.mxu0 0.0
      %2613 = vmatprep.subr.mxu0 0.0
      %2614 = vmatpush1.msra.mxu0 0.0
      %2615 = vmatprep.subr.mxu0 0.0
      %2616 = vmatpush1.msra.mxu0 0.0
      %2617 = vmatprep.subr.mxu0 0.0
      %2618 = vmatpush1.msra.mxu0 0.0
      %2619 = vmatprep.subr.mxu0 0.0
      %2620 = vmatpush1.msra.mxu0 0.0
      %2621 = vmatprep.subr.mxu0 0.0
      %2622 = vmatpush1.msra.mxu0 0.0
      %2623 = vmatprep.subr.mxu0 0.0
      %2624 = vmatpush1.msra.mxu0 0.0
      %2625 = vmatprep.subr.mxu0 0.0
      %2626 = vmatpush1.msra.mxu0 0.0
      %2627 = vmatprep.subr.mxu0 0.0
      %2628 = vmatpush1.msra.mxu0 0.0
      %2629 = vmatprep.subr.mxu0 0.0
      %2630 = vmatpush1.msra.mxu0 0.0
      %2631 = vmatprep.subr.mxu0 0.0
      %2632 = vmatpush1.msra.mxu0 0.0
      %2633 = vmatprep.subr.mxu0 0.0
      %2634 = vmatpush1.msra.mxu0 0.0
      %2635 = vmatprep.subr.mxu0 0.0
      %2636 = vmatpush1.msra.mxu0 0.0
      %2637 = vmatprep.subr.mxu0 0.0
      %2638 = vmatpush1.msra.mxu0 0.0
      %2639 = vmatprep.mubr.f32.mxu0 0.0
      %2640 = vmatmul.mubr.f32.gmra.mrb[0].mxu0 %v2567
      %v2641 = vpop.f32.mrb[0].mxu0
      %v2642 = vadd.f32 0.0, %v2641
      %v2643 = vpop.f32.mrb[0].mxu0
      %2644 = vmatprep.mubr.f32.mxu0 0.0
      %2645 = vmatmul.mubr.f32.gmra.mrb[0].mxu0 %v2570
      %v2646 = vpop.f32.mrb[0].mxu0
      %v2647 = vadd.f32 0.0, %v2646
      %v2648 = vpop.f32.mrb[0].mxu0
      %2649 = vdwg.mxu0
      %s2650 = scalar_lea.vmem %s17, 24
      %v2651 = vld [vmem:[%s2650] sm:$0xff]
      %v2652 = vld [vmem:[%s2650 + $0x8] sm:$0xff]
      %v2653 = vld [vmem:[%s2650 + $0x10] sm:$0x3]
      %v2655 = vsel %vm2063, %v2555, 0
      %v2658 = vsel %vm2063, %v2560, 0
      %v2661 = vsel %vm2070, %v2653, 0
      %2663 = vmatprep.subr.mxu0 0.0
      %2664 = vmatpush1.msra.mxu0 %v2651
      %2665 = vmatprep.subr.mxu0 0.0
      %2666 = vmatpush1.msra.mxu0 %v2652
      %2667 = vmatprep.subr.mxu0 0.0
      %2668 = vmatpush1.msra.mxu0 %v2661
      %2669 = vmatprep.subr.mxu0 0.0
      %2670 = vmatpush1.msra.mxu0 0.0
      %2671 = vmatprep.subr.mxu0 0.0
      %2672 = vmatpush1.msra.mxu0 0.0
      %2673 = vmatprep.subr.mxu0 0.0
      %2674 = vmatpush1.msra.mxu0 0.0
      %2675 = vmatprep.subr.mxu0 0.0
      %2676 = vmatpush1.msra.mxu0 0.0
      %2677 = vmatprep.subr.mxu0 0.0
      %2678 = vmatpush1.msra.mxu0 0.0
      %2679 = vmatprep.subr.mxu0 0.0
      %2680 = vmatpush1.msra.mxu0 0.0
      %2681 = vmatprep.subr.mxu0 0.0
      %2682 = vmatpush1.msra.mxu0 0.0
      %2683 = vmatprep.subr.mxu0 0.0
      %2684 = vmatpush1.msra.mxu0 0.0
      %2685 = vmatprep.subr.mxu0 0.0
      %2686 = vmatpush1.msra.mxu0 0.0
      %2687 = vmatprep.subr.mxu0 0.0
      %2688 = vmatpush1.msra.mxu0 0.0
      %2689 = vmatprep.subr.mxu0 0.0
      %2690 = vmatpush1.msra.mxu0 0.0
      %2691 = vmatprep.subr.mxu0 0.0
      %2692 = vmatpush1.msra.mxu0 0.0
      %2693 = vmatprep.subr.mxu0 0.0
      %2694 = vmatpush1.msra.mxu0 0.0
      %2695 = vmatprep.subr.mxu0 0.0
      %2696 = vmatpush1.msra.mxu0 0.0
      %2697 = vmatprep.subr.mxu0 0.0
      %2698 = vmatpush1.msra.mxu0 0.0
      %2699 = vmatprep.subr.mxu0 0.0
      %2700 = vmatpush1.msra.mxu0 0.0
      %2701 = vmatprep.subr.mxu0 0.0
      %2702 = vmatpush1.msra.mxu0 0.0
      %2703 = vmatprep.subr.mxu0 0.0
      %2704 = vmatpush1.msra.mxu0 0.0
      %2705 = vmatprep.subr.mxu0 0.0
      %2706 = vmatpush1.msra.mxu0 0.0
      %2707 = vmatprep.subr.mxu0 0.0
      %2708 = vmatpush1.msra.mxu0 0.0
      %2709 = vmatprep.subr.mxu0 0.0
      %2710 = vmatpush1.msra.mxu0 0.0
      %2711 = vmatprep.subr.mxu0 0.0
      %2712 = vmatpush1.msra.mxu0 0.0
      %2713 = vmatprep.subr.mxu0 0.0
      %2714 = vmatpush1.msra.mxu0 0.0
      %2715 = vmatprep.subr.mxu0 0.0
      %2716 = vmatpush1.msra.mxu0 0.0
      %2717 = vmatprep.subr.mxu0 0.0
      %2718 = vmatpush1.msra.mxu0 0.0
      %2719 = vmatprep.subr.mxu0 0.0
      %2720 = vmatpush1.msra.mxu0 0.0
      %2721 = vmatprep.subr.mxu0 0.0
      %2722 = vmatpush1.msra.mxu0 0.0
      %2723 = vmatprep.subr.mxu0 0.0
      %2724 = vmatpush1.msra.mxu0 0.0
      %2725 = vmatprep.subr.mxu0 0.0
      %2726 = vmatpush1.msra.mxu0 0.0
      %2727 = vmatprep.mubr.f32.mxu0 0.0
      %2728 = vmatmul.mubr.f32.gmra.mrb[0].mxu0 %v2655
      %v2729 = vpop.f32.mrb[0].mxu0
      %v2730 = vadd.f32 0.0, %v2729
      %v2731 = vpop.f32.mrb[0].mxu0
      %2732 = vmatprep.mubr.f32.mxu0 0.0
      %2733 = vmatmul.mubr.f32.gmra.mrb[0].mxu0 %v2658
      %v2734 = vpop.f32.mrb[0].mxu0
      %v2735 = vadd.f32 0.0, %v2734
      %v2736 = vpop.f32.mrb[0].mxu0
      %2737 = vdwg.mxu0
      %v2738 = vsub.f32 %v2642, %v2730
      %v2739 = vsub.f32 %v2647, %v2735
      %v2740 = vadd.f32 %v2738, %v1571
      %v2741 = vadd.f32 %v2739, %v1572
      %v2742 = vld [vmem:[%s18] sm:$0xff]
      %v2743 = vld [vmem:[%s18 + $0x8] sm:$0xff]
      %v2744 = vld [vmem:[%s18 + $0x10] sm:$0xff]
      %v2745 = vld [vmem:[%s18 + $0x18] sm:$0xff]
      %v2746 = vld [vmem:[%s19] sm:$0x1]
      %v2748 = vlaneseq
      %v2749 = vshrl.u32 %v2748, 7
      %v2750 = vsub.s32 0, %v2749
      %v2751 = vrot.slane %v2746, %v2750
      %v2754 = vsel %vm1577, %v2740, 0
      %v2757 = vsel %vm1577, %v2741, 0
      %2759 = vmatprep.subr.mxu0 0.0
      %2760 = vmatpush1.msra.mxu0 %v2742
      %2761 = vmatprep.subr.mxu0 0.0
      %2762 = vmatpush1.msra.mxu0 %v2743
      %2763 = vmatprep.subr.mxu0 0.0
      %2764 = vmatpush1.msra.mxu0 %v2744
      %2765 = vmatprep.subr.mxu0 0.0
      %2766 = vmatpush1.msra.mxu0 %v2745
      %2767 = vmatprep.subr.mxu0 0.0
      %2768 = vmatpush1.msra.mxu0 0.0
      %2769 = vmatprep.subr.mxu0 0.0
      %2770 = vmatpush1.msra.mxu0 0.0
      %2771 = vmatprep.subr.mxu0 0.0
      %2772 = vmatpush1.msra.mxu0 0.0
      %2773 = vmatprep.subr.mxu0 0.0
      %2774 = vmatpush1.msra.mxu0 0.0
      %2775 = vmatprep.subr.mxu0 0.0
      %2776 = vmatpush1.msra.mxu0 0.0
      %2777 = vmatprep.subr.mxu0 0.0
      %2778 = vmatpush1.msra.mxu0 0.0
      %2779 = vmatprep.subr.mxu0 0.0
      %2780 = vmatpush1.msra.mxu0 0.0
      %2781 = vmatprep.subr.mxu0 0.0
      %2782 = vmatpush1.msra.mxu0 0.0
      %2783 = vmatprep.subr.mxu0 0.0
      %2784 = vmatpush1.msra.mxu0 0.0
      %2785 = vmatprep.subr.mxu0 0.0
      %2786 = vmatpush1.msra.mxu0 0.0
      %2787 = vmatprep.subr.mxu0 0.0
      %2788 = vmatpush1.msra.mxu0 0.0
      %2789 = vmatprep.subr.mxu0 0.0
      %2790 = vmatpush1.msra.mxu0 0.0
      %2791 = vmatprep.subr.mxu0 0.0
      %2792 = vmatpush1.msra.mxu0 0.0
      %2793 = vmatprep.subr.mxu0 0.0
      %2794 = vmatpush1.msra.mxu0 0.0
      %2795 = vmatprep.subr.mxu0 0.0
      %2796 = vmatpush1.msra.mxu0 0.0
      %2797 = vmatprep.subr.mxu0 0.0
      %2798 = vmatpush1.msra.mxu0 0.0
      %2799 = vmatprep.subr.mxu0 0.0
      %2800 = vmatpush1.msra.mxu0 0.0
      %2801 = vmatprep.subr.mxu0 0.0
      %2802 = vmatpush1.msra.mxu0 0.0
      %2803 = vmatprep.subr.mxu0 0.0
      %2804 = vmatpush1.msra.mxu0 0.0
      %2805 = vmatprep.subr.mxu0 0.0
      %2806 = vmatpush1.msra.mxu0 0.0
      %2807 = vmatprep.subr.mxu0 0.0
      %2808 = vmatpush1.msra.mxu0 0.0
      %2809 = vmatprep.subr.mxu0 0.0
      %2810 = vmatpush1.msra.mxu0 0.0
      %2811 = vmatprep.subr.mxu0 0.0
      %2812 = vmatpush1.msra.mxu0 0.0
      %2813 = vmatprep.subr.mxu0 0.0
      %2814 = vmatpush1.msra.mxu0 0.0
      %2815 = vmatprep.subr.mxu0 0.0
      %2816 = vmatpush1.msra.mxu0 0.0
      %2817 = vmatprep.subr.mxu0 0.0
      %2818 = vmatpush1.msra.mxu0 0.0
      %2819 = vmatprep.subr.mxu0 0.0
      %2820 = vmatpush1.msra.mxu0 0.0
      %2821 = vmatprep.subr.mxu0 0.0
      %2822 = vmatpush1.msra.mxu0 0.0
      %2823 = vmatprep.mubr.f32.mxu0 0.0
      %2824 = vmatmul.mubr.f32.gmra.mrb[0].mxu0 %v2754
      %v2825 = vpop.f32.mrb[0].mxu0
      %v2826 = vadd.f32 %v2751, %v2825
      %v2827 = vpop.f32.mrb[0].mxu0
      %2828 = vmatprep.mubr.f32.mxu0 0.0
      %2829 = vmatmul.mubr.f32.gmra.mrb[0].mxu0 %v2757
      %v2830 = vpop.f32.mrb[0].mxu0
      %v2831 = vadd.f32 %v2751, %v2830
      %v2832 = vpop.f32.mrb[0].mxu0
      %2833 = vdwg.mxu0
      %2836 = vrot.lane.b32.xlu0 %v1311, 64
      %v2837 = vpop.permute.xlu0 %2836
      %2838 = vrot.lane.b32.xlu0 %v1316, 64
      %v2839 = vpop.permute.xlu0 %2838
      %v2842 = vadd.f32 %v2826, %v2837
      %v2843 = vadd.f32 %v2831, %v2839
      %v2844 = vld [vmem:[%s20] sm:$0x1]
      %v2846 = vlaneseq
      %v2847 = vshrl.u32 %v2846, 7
      %v2848 = vsub.s32 0, %v2847
      %v2849 = vrot.slane %v2844, %v2848
      %v2851 = vmul.f32 %v2842, %v2849
      %v2852 = vmul.f32 %v2843, %v2849
      %v2853 = vld [vmem:[%s21] sm:$0x1]
      %v2855 = vlaneseq
      %v2856 = vshrl.u32 %v2855, 7
      %v2857 = vsub.s32 0, %v2856
      %v2858 = vrot.slane %v2853, %v2857
      %v2860 = vadd.f32 %v2851, %v2858
      %v2861 = vadd.f32 %v2852, %v2858
      %v2862 = vld [vmem:[%s22] sm:$0x1]
      %vm2863 = vcmp.ge.f32.partialorder %v2860, 0.0
      %vm2864 = vcmp.ge.f32.partialorder %v2861, 0.0
      %v2866 = vlaneseq
      %v2867 = vshrl.u32 %v2866, 7
      %v2868 = vsub.s32 0, %v2867
      %v2869 = vrot.slane %v2862, %v2868
      %v2871 = vmul.f32 %v2869, %v2860
      %v2872 = vmul.f32 %v2869, %v2861
      %v2873 = vsel %vm2863, %v2860, %v2871
      %v2874 = vsel %vm2864, %v2861, %v2872
      %v2875 = vadd.f32 %v2873, %v854
      %v2876 = vadd.f32 %v2874, %v855
      %2877 = vmatprep.subr.mxu0 0.0
      %2878 = vmatpush1.msra.mxu0 %v1464
      %2879 = vmatprep.subr.mxu0 0.0
      %2880 = vmatpush1.msra.mxu0 %v1465
      %2881 = vmatprep.subr.mxu0 0.0
      %2882 = vmatpush1.msra.mxu0 0.0
      %2883 = vmatprep.subr.mxu0 0.0
      %2884 = vmatpush1.msra.mxu0 0.0
      %2885 = vmatprep.subr.mxu0 0.0
      %2886 = vmatpush1.msra.mxu0 0.0
      %2887 = vmatprep.subr.mxu0 0.0
      %2888 = vmatpush1.msra.mxu0 0.0
      %2889 = vmatprep.subr.mxu0 0.0
      %2890 = vmatpush1.msra.mxu0 0.0
      %2891 = vmatprep.subr.mxu0 0.0
      %2892 = vmatpush1.msra.mxu0 0.0
      %2893 = vmatprep.subr.mxu0 0.0
      %2894 = vmatpush1.msra.mxu0 0.0
      %2895 = vmatprep.subr.mxu0 0.0
      %2896 = vmatpush1.msra.mxu0 0.0
      %2897 = vmatprep.subr.mxu0 0.0
      %2898 = vmatpush1.msra.mxu0 0.0
      %2899 = vmatprep.subr.mxu0 0.0
      %2900 = vmatpush1.msra.mxu0 0.0
      %2901 = vmatprep.subr.mxu0 0.0
      %2902 = vmatpush1.msra.mxu0 0.0
      %2903 = vmatprep.subr.mxu0 0.0
      %2904 = vmatpush1.msra.mxu0 0.0
      %2905 = vmatprep.subr.mxu0 0.0
      %2906 = vmatpush1.msra.mxu0 0.0
      %2907 = vmatprep.subr.mxu0 0.0
      %2908 = vmatpush1.msra.mxu0 0.0
      %2909 = vmatprep.subr.mxu0 0.0
      %2910 = vmatpush1.msra.mxu0 0.0
      %2911 = vmatprep.subr.mxu0 0.0
      %2912 = vmatpush1.msra.mxu0 0.0
      %2913 = vmatprep.subr.mxu0 0.0
      %2914 = vmatpush1.msra.mxu0 0.0
      %2915 = vmatprep.subr.mxu0 0.0
      %2916 = vmatpush1.msra.mxu0 0.0
      %2917 = vmatprep.subr.mxu0 0.0
      %2918 = vmatpush1.msra.mxu0 0.0
      %2919 = vmatprep.subr.mxu0 0.0
      %2920 = vmatpush1.msra.mxu0 0.0
      %2921 = vmatprep.subr.mxu0 0.0
      %2922 = vmatpush1.msra.mxu0 0.0
      %2923 = vmatprep.subr.mxu0 0.0
      %2924 = vmatpush1.msra.mxu0 0.0
      %2925 = vmatprep.subr.mxu0 0.0
      %2926 = vmatpush1.msra.mxu0 0.0
      %2927 = vmatprep.subr.mxu0 0.0
      %2928 = vmatpush1.msra.mxu0 0.0
      %2929 = vmatprep.subr.mxu0 0.0
      %2930 = vmatpush1.msra.mxu0 0.0
      %2931 = vmatprep.subr.mxu0 0.0
      %2932 = vmatpush1.msra.mxu0 0.0
      %2933 = vmatprep.subr.mxu0 0.0
      %2934 = vmatpush1.msra.mxu0 0.0
      %2935 = vmatprep.subr.mxu0 0.0
      %2936 = vmatpush1.msra.mxu0 0.0
      %2937 = vmatprep.subr.mxu0 0.0
      %2938 = vmatpush1.msra.mxu0 0.0
      %2939 = vmatprep.subr.mxu0 0.0
      %2940 = vmatpush1.msra.mxu0 0.0
      %2941 = vmatprep.mubr.f32.mxu0 0.0
      %2942 = vmatmul.mubr.f32.gmra.mrb[0].mxu0 %v875
      %v2943 = vpop.f32.mrb[0].mxu0
      %v2944 = vadd.f32 0.0, %v2943
      %v2945 = vpop.f32.mrb[0].mxu0
      %2946 = vmatprep.mubr.f32.mxu0 0.0
      %2947 = vmatmul.mubr.f32.gmra.mrb[0].mxu0 %v878
      %v2948 = vpop.f32.mrb[0].mxu0
      %v2949 = vadd.f32 0.0, %v2948
      %v2950 = vpop.f32.mrb[0].mxu0
      %2951 = vdwg.mxu0
      %2952 = vmatprep.subr.mxu0 0.0
      %2953 = vmatpush1.msra.mxu0 %v1464
      %2954 = vmatprep.subr.mxu0 0.0
      %2955 = vmatpush1.msra.mxu0 %v1465
      %2956 = vmatprep.subr.mxu0 0.0
      %2957 = vmatpush1.msra.mxu0 0.0
      %2958 = vmatprep.subr.mxu0 0.0
      %2959 = vmatpush1.msra.mxu0 0.0
      %2960 = vmatprep.subr.mxu0 0.0
      %2961 = vmatpush1.msra.mxu0 0.0
      %2962 = vmatprep.subr.mxu0 0.0
      %2963 = vmatpush1.msra.mxu0 0.0
      %2964 = vmatprep.subr.mxu0 0.0
      %2965 = vmatpush1.msra.mxu0 0.0
      %2966 = vmatprep.subr.mxu0 0.0
      %2967 = vmatpush1.msra.mxu0 0.0
      %2968 = vmatprep.subr.mxu0 0.0
      %2969 = vmatpush1.msra.mxu0 0.0
      %2970 = vmatprep.subr.mxu0 0.0
      %2971 = vmatpush1.msra.mxu0 0.0
      %2972 = vmatprep.subr.mxu0 0.0
      %2973 = vmatpush1.msra.mxu0 0.0
      %2974 = vmatprep.subr.mxu0 0.0
      %2975 = vmatpush1.msra.mxu0 0.0
      %2976 = vmatprep.subr.mxu0 0.0
      %2977 = vmatpush1.msra.mxu0 0.0
      %2978 = vmatprep.subr.mxu0 0.0
      %2979 = vmatpush1.msra.mxu0 0.0
      %2980 = vmatprep.subr.mxu0 0.0
      %2981 = vmatpush1.msra.mxu0 0.0
      %2982 = vmatprep.subr.mxu0 0.0
      %2983 = vmatpush1.msra.mxu0 0.0
      %2984 = vmatprep.subr.mxu0 0.0
      %2985 = vmatpush1.msra.mxu0 0.0
      %2986 = vmatprep.subr.mxu0 0.0
      %2987 = vmatpush1.msra.mxu0 0.0
      %2988 = vmatprep.subr.mxu0 0.0
      %2989 = vmatpush1.msra.mxu0 0.0
      %2990 = vmatprep.subr.mxu0 0.0
      %2991 = vmatpush1.msra.mxu0 0.0
      %2992 = vmatprep.subr.mxu0 0.0
      %2993 = vmatpush1.msra.mxu0 0.0
      %2994 = vmatprep.subr.mxu0 0.0
      %2995 = vmatpush1.msra.mxu0 0.0
      %2996 = vmatprep.subr.mxu0 0.0
      %2997 = vmatpush1.msra.mxu0 0.0
      %2998 = vmatprep.subr.mxu0 0.0
      %2999 = vmatpush1.msra.mxu0 0.0
      %3000 = vmatprep.subr.mxu0 0.0
      %3001 = vmatpush1.msra.mxu0 0.0
      %3002 = vmatprep.subr.mxu0 0.0
      %3003 = vmatpush1.msra.mxu0 0.0
      %3004 = vmatprep.subr.mxu0 0.0
      %3005 = vmatpush1.msra.mxu0 0.0
      %3006 = vmatprep.subr.mxu0 0.0
      %3007 = vmatpush1.msra.mxu0 0.0
      %3008 = vmatprep.subr.mxu0 0.0
      %3009 = vmatpush1.msra.mxu0 0.0
      %3010 = vmatprep.subr.mxu0 0.0
      %3011 = vmatpush1.msra.mxu0 0.0
      %3012 = vmatprep.subr.mxu0 0.0
      %3013 = vmatpush1.msra.mxu0 0.0
      %3014 = vmatprep.subr.mxu0 0.0
      %3015 = vmatpush1.msra.mxu0 0.0
      %3016 = vmatprep.mubr.f32.mxu0 0.0
      %3017 = vmatmul.mubr.f32.gmra.mrb[0].mxu0 %v956
      %v3018 = vpop.f32.mrb[0].mxu0
      %v3019 = vadd.f32 0.0, %v3018
      %v3020 = vpop.f32.mrb[0].mxu0
      %3021 = vmatprep.mubr.f32.mxu0 0.0
      %3022 = vmatmul.mubr.f32.gmra.mrb[0].mxu0 %v959
      %v3023 = vpop.f32.mrb[0].mxu0
      %v3024 = vadd.f32 0.0, %v3023
      %v3025 = vpop.f32.mrb[0].mxu0
      %3026 = vdwg.mxu0
      %3029 = vrot.lane.b32.xlu0 %v1464, 64
      %v3030 = vpop.permute.xlu0 %3029
      %3031 = vrot.lane.b32.xlu0 %v1465, 64
      %v3032 = vpop.permute.xlu0 %3031
      %v3035 = vsel %vm1044, %v2944, %v3030
      %v3036 = vsel %vm1044, %v2949, %v3032
      %v3037 = vld [vmem:[%s23] sm:$0xff]
      %v3038 = vld [vmem:[%s23 + $0x8] sm:$0xff]
      %v3039 = vld [vmem:[%s23 + $0x10] sm:$0xff]
      %v3040 = vld [vmem:[%s23 + $0x18] sm:$0xff]
      %v3041 = vld [vmem:[%s23 + $0x20] sm:$0xff]
      %v3042 = vld [vmem:[%s23 + $0x28] sm:$0xff]
      %v3043 = vld [vmem:[%s23 + $0x30] sm:$0xff]
      %v3044 = vld [vmem:[%s23 + $0x38] sm:$0xff]
      %v3045 = vld [vmem:[%s23 + $0x40] sm:$0xff]
      %v3046 = vld [vmem:[%s23 + $0x48] sm:$0xff]
      %v3047 = vld [vmem:[%s23 + $0x50] sm:$0xff]
      %v3048 = vld [vmem:[%s23 + $0x58] sm:$0xff]
      %v3049 = vld [vmem:[%s23 + $0x60] sm:$0xff]
      %v3050 = vld [vmem:[%s23 + $0x68] sm:$0xff]
      %v3051 = vld [vmem:[%s23 + $0x70] sm:$0xff]
      %v3052 = vld [vmem:[%s23 + $0x78] sm:$0xff]
      %v3053 = vld [vmem:[%s23 + $0x80] sm:$0xff]
      %v3054 = vld [vmem:[%s23 + $0x88] sm:$0xff]
      %v3055 = vld [vmem:[%s23 + $0x90] sm:$0xff]
      %v3056 = vld [vmem:[%s23 + $0x98] sm:$0xff]
      %v3057 = vld [vmem:[%s23 + $0xa0] sm:$0xff]
      %v3058 = vld [vmem:[%s23 + $0xa8] sm:$0xff]
      %v3059 = vld [vmem:[%s23 + $0xb0] sm:$0xff]
      %v3060 = vld [vmem:[%s23 + $0xb8] sm:$0xff]
      %3061 = vmatprep.subr.mxu0 0.0
      %3062 = vmatpush1.msra.mxu0 %v2875
      %3063 = vmatprep.subr.mxu0 0.0
      %3064 = vmatpush1.msra.mxu0 %v2876
      %3065 = vmatprep.subr.mxu0 0.0
      %3066 = vmatpush1.msra.mxu0 0.0
      %3067 = vmatprep.subr.mxu0 0.0
      %3068 = vmatpush1.msra.mxu0 0.0
      %3069 = vmatprep.subr.mxu0 0.0
      %3070 = vmatpush1.msra.mxu0 0.0
      %3071 = vmatprep.subr.mxu0 0.0
      %3072 = vmatpush1.msra.mxu0 0.0
      %3073 = vmatprep.subr.mxu0 0.0
      %3074 = vmatpush1.msra.mxu0 0.0
      %3075 = vmatprep.subr.mxu0 0.0
      %3076 = vmatpush1.msra.mxu0 0.0
      %3077 = vmatprep.subr.mxu0 0.0
      %3078 = vmatpush1.msra.mxu0 0.0
      %3079 = vmatprep.subr.mxu0 0.0
      %3080 = vmatpush1.msra.mxu0 0.0
      %3081 = vmatprep.subr.mxu0 0.0
      %3082 = vmatpush1.msra.mxu0 0.0
      %3083 = vmatprep.subr.mxu0 0.0
      %3084 = vmatpush1.msra.mxu0 0.0
      %3085 = vmatprep.subr.mxu0 0.0
      %3086 = vmatpush1.msra.mxu0 0.0
      %3087 = vmatprep.subr.mxu0 0.0
      %3088 = vmatpush1.msra.mxu0 0.0
      %3089 = vmatprep.subr.mxu0 0.0
      %3090 = vmatpush1.msra.mxu0 0.0
      %3091 = vmatprep.subr.mxu0 0.0
      %3092 = vmatpush1.msra.mxu0 0.0
      %3093 = vmatprep.subr.mxu0 0.0
      %3094 = vmatpush1.msra.mxu0 0.0
      %3095 = vmatprep.subr.mxu0 0.0
      %3096 = vmatpush1.msra.mxu0 0.0
      %3097 = vmatprep.subr.mxu0 0.0
      %3098 = vmatpush1.msra.mxu0 0.0
      %3099 = vmatprep.subr.mxu0 0.0
      %3100 = vmatpush1.msra.mxu0 0.0
      %3101 = vmatprep.subr.mxu0 0.0
      %3102 = vmatpush1.msra.mxu0 0.0
      %3103 = vmatprep.subr.mxu0 0.0
      %3104 = vmatpush1.msra.mxu0 0.0
      %3105 = vmatprep.subr.mxu0 0.0
      %3106 = vmatpush1.msra.mxu0 0.0
      %3107 = vmatprep.subr.mxu0 0.0
      %3108 = vmatpush1.msra.mxu0 0.0
      %3109 = vmatprep.subr.mxu0 0.0
      %3110 = vmatpush1.msra.mxu0 0.0
      %3111 = vmatprep.subr.mxu0 0.0
      %3112 = vmatpush1.msra.mxu0 0.0
      %3113 = vmatprep.subr.mxu0 0.0
      %3114 = vmatpush1.msra.mxu0 0.0
      %3115 = vmatprep.subr.mxu0 0.0
      %3116 = vmatpush1.msra.mxu0 0.0
      %3117 = vmatprep.subr.mxu0 0.0
      %3118 = vmatpush1.msra.mxu0 0.0
      %3119 = vmatprep.subr.mxu0 0.0
      %3120 = vmatpush1.msra.mxu0 0.0
      %3121 = vmatprep.subr.mxu0 0.0
      %3122 = vmatpush1.msra.mxu0 0.0
      %3123 = vmatprep.subr.mxu0 0.0
      %3124 = vmatpush1.msra.mxu0 0.0
      %3125 = vmatprep.mubr.f32.mxu0 0.0
      %3126 = vmatmul.mubr.f32.gmra.mrb[0].mxu0 %v875
      %v3127 = vpop.f32.mrb[0].mxu0
      %v3128 = vadd.f32 0.0, %v3127
      %v3129 = vpop.f32.mrb[0].mxu0
      %3130 = vmatprep.mubr.f32.mxu0 0.0
      %3131 = vmatmul.mubr.f32.gmra.mrb[0].mxu0 %v878
      %v3132 = vpop.f32.mrb[0].mxu0
      %v3133 = vadd.f32 0.0, %v3132
      %v3134 = vpop.f32.mrb[0].mxu0
      %3135 = vdwg.mxu0
      %3136 = vmatprep.subr.mxu0 0.0
      %3137 = vmatpush1.msra.mxu0 %v2875
      %3138 = vmatprep.subr.mxu0 0.0
      %3139 = vmatpush1.msra.mxu0 %v2876
      %3140 = vmatprep.subr.mxu0 0.0
      %3141 = vmatpush1.msra.mxu0 0.0
      %3142 = vmatprep.subr.mxu0 0.0
      %3143 = vmatpush1.msra.mxu0 0.0
      %3144 = vmatprep.subr.mxu0 0.0
      %3145 = vmatpush1.msra.mxu0 0.0
      %3146 = vmatprep.subr.mxu0 0.0
      %3147 = vmatpush1.msra.mxu0 0.0
      %3148 = vmatprep.subr.mxu0 0.0
      %3149 = vmatpush1.msra.mxu0 0.0
      %3150 = vmatprep.subr.mxu0 0.0
      %3151 = vmatpush1.msra.mxu0 0.0
      %3152 = vmatprep.subr.mxu0 0.0
      %3153 = vmatpush1.msra.mxu0 0.0
      %3154 = vmatprep.subr.mxu0 0.0
      %3155 = vmatpush1.msra.mxu0 0.0
      %3156 = vmatprep.subr.mxu0 0.0
      %3157 = vmatpush1.msra.mxu0 0.0
      %3158 = vmatprep.subr.mxu0 0.0
      %3159 = vmatpush1.msra.mxu0 0.0
      %3160 = vmatprep.subr.mxu0 0.0
      %3161 = vmatpush1.msra.mxu0 0.0
      %3162 = vmatprep.subr.mxu0 0.0
      %3163 = vmatpush1.msra.mxu0 0.0
      %3164 = vmatprep.subr.mxu0 0.0
      %3165 = vmatpush1.msra.mxu0 0.0
      %3166 = vmatprep.subr.mxu0 0.0
      %3167 = vmatpush1.msra.mxu0 0.0
      %3168 = vmatprep.subr.mxu0 0.0
      %3169 = vmatpush1.msra.mxu0 0.0
      %3170 = vmatprep.subr.mxu0 0.0
      %3171 = vmatpush1.msra.mxu0 0.0
      %3172 = vmatprep.subr.mxu0 0.0
      %3173 = vmatpush1.msra.mxu0 0.0
      %3174 = vmatprep.subr.mxu0 0.0
      %3175 = vmatpush1.msra.mxu0 0.0
      %3176 = vmatprep.subr.mxu0 0.0
      %3177 = vmatpush1.msra.mxu0 0.0
      %3178 = vmatprep.subr.mxu0 0.0
      %3179 = vmatpush1.msra.mxu0 0.0
      %3180 = vmatprep.subr.mxu0 0.0
      %3181 = vmatpush1.msra.mxu0 0.0
      %3182 = vmatprep.subr.mxu0 0.0
      %3183 = vmatpush1.msra.mxu0 0.0
      %3184 = vmatprep.subr.mxu0 0.0
      %3185 = vmatpush1.msra.mxu0 0.0
      %3186 = vmatprep.subr.mxu0 0.0
      %3187 = vmatpush1.msra.mxu0 0.0
      %3188 = vmatprep.subr.mxu0 0.0
      %3189 = vmatpush1.msra.mxu0 0.0
      %3190 = vmatprep.subr.mxu0 0.0
      %3191 = vmatpush1.msra.mxu0 0.0
      %3192 = vmatprep.subr.mxu0 0.0
      %3193 = vmatpush1.msra.mxu0 0.0
      %3194 = vmatprep.subr.mxu0 0.0
      %3195 = vmatpush1.msra.mxu0 0.0
      %3196 = vmatprep.subr.mxu0 0.0
      %3197 = vmatpush1.msra.mxu0 0.0
      %3198 = vmatprep.subr.mxu0 0.0
      %3199 = vmatpush1.msra.mxu0 0.0
      %3200 = vmatprep.mubr.f32.mxu0 0.0
      %3201 = vmatmul.mubr.f32.gmra.mrb[0].mxu0 %v956
      %v3202 = vpop.f32.mrb[0].mxu0
      %v3203 = vadd.f32 0.0, %v3202
      %v3204 = vpop.f32.mrb[0].mxu0
      %3205 = vmatprep.mubr.f32.mxu0 0.0
      %3206 = vmatmul.mubr.f32.gmra.mrb[0].mxu0 %v959
      %v3207 = vpop.f32.mrb[0].mxu0
      %v3208 = vadd.f32 0.0, %v3207
      %v3209 = vpop.f32.mrb[0].mxu0
      %3210 = vdwg.mxu0
      %3213 = vrot.lane.b32.xlu0 %v2875, 64
      %v3214 = vpop.permute.xlu0 %3213
      %3215 = vrot.lane.b32.xlu0 %v2876, 64
      %v3216 = vpop.permute.xlu0 %3215
      %v3219 = vsel %vm1044, %v3128, %v3214
      %v3220 = vsel %vm1044, %v3133, %v3216
      %v3221 = vld [vmem:[%s24] sm:$0xff]
      %v3222 = vld [vmem:[%s24 + $0x8] sm:$0xff]
      %v3223 = vld [vmem:[%s24 + $0x10] sm:$0xff]
      %v3224 = vld [vmem:[%s24 + $0x18] sm:$0xff]
      %v3225 = vld [vmem:[%s24 + $0x20] sm:$0xff]
      %v3226 = vld [vmem:[%s24 + $0x28] sm:$0xff]
      %v3227 = vld [vmem:[%s24 + $0x30] sm:$0xff]
      %v3228 = vld [vmem:[%s24 + $0x38] sm:$0xff]
      %v3229 = vld [vmem:[%s24 + $0x40] sm:$0xff]
      %v3230 = vld [vmem:[%s24 + $0x48] sm:$0xff]
      %v3231 = vld [vmem:[%s24 + $0x50] sm:$0xff]
      %v3232 = vld [vmem:[%s24 + $0x58] sm:$0xff]
      %v3233 = vld [vmem:[%s24 + $0x60] sm:$0xff]
      %v3234 = vld [vmem:[%s24 + $0x68] sm:$0xff]
      %v3235 = vld [vmem:[%s24 + $0x70] sm:$0xff]
      %v3236 = vld [vmem:[%s24 + $0x78] sm:$0xff]
      %v3237 = vld [vmem:[%s24 + $0x80] sm:$0xff]
      %v3238 = vld [vmem:[%s24 + $0x88] sm:$0xff]
      %v3239 = vld [vmem:[%s24 + $0x90] sm:$0xff]
      %v3240 = vld [vmem:[%s24 + $0x98] sm:$0xff]
      %v3241 = vld [vmem:[%s24 + $0xa0] sm:$0xff]
      %v3242 = vld [vmem:[%s24 + $0xa8] sm:$0xff]
      %v3243 = vld [vmem:[%s24 + $0xb0] sm:$0xff]
      %v3244 = vld [vmem:[%s24 + $0xb8] sm:$0xff]
      %v3246 = vsel %vm1044, %v3203, 0
      %v3249 = vsel %vm1044, %v3208, 0
      %3251 = vmatprep.subr.mxu0 0.0
      %3252 = vmatpush1.msra.mxu0 %v3221
      %3253 = vmatprep.subr.mxu0 0.0
      %3254 = vmatpush1.msra.mxu0 %v3222
      %3255 = vmatprep.subr.mxu0 0.0
      %3256 = vmatpush1.msra.mxu0 %v3223
      %3257 = vmatprep.subr.mxu0 0.0
      %3258 = vmatpush1.msra.mxu0 %v3224
      %3259 = vmatprep.subr.mxu0 0.0
      %3260 = vmatpush1.msra.mxu0 %v3225
      %3261 = vmatprep.subr.mxu0 0.0
      %3262 = vmatpush1.msra.mxu0 %v3226
      %3263 = vmatprep.subr.mxu0 0.0
      %3264 = vmatpush1.msra.mxu0 %v3227
      %3265 = vmatprep.subr.mxu0 0.0
      %3266 = vmatpush1.msra.mxu0 %v3228
      %3267 = vmatprep.subr.mxu0 0.0
      %3268 = vmatpush1.msra.mxu0 %v3229
      %3269 = vmatprep.subr.mxu0 0.0
      %3270 = vmatpush1.msra.mxu0 %v3230
      %3271 = vmatprep.subr.mxu0 0.0
      %3272 = vmatpush1.msra.mxu0 %v3231
      %3273 = vmatprep.subr.mxu0 0.0
      %3274 = vmatpush1.msra.mxu0 %v3232
      %3275 = vmatprep.subr.mxu0 0.0
      %3276 = vmatpush1.msra.mxu0 %v3233
      %3277 = vmatprep.subr.mxu0 0.0
      %3278 = vmatpush1.msra.mxu0 %v3234
      %3279 = vmatprep.subr.mxu0 0.0
      %3280 = vmatpush1.msra.mxu0 %v3235
      %3281 = vmatprep.subr.mxu0 0.0
      %3282 = vmatpush1.msra.mxu0 %v3236
      %3283 = vmatprep.subr.mxu0 0.0
      %3284 = vmatpush1.msra.mxu0 %v3237
      %3285 = vmatprep.subr.mxu0 0.0
      %3286 = vmatpush1.msra.mxu0 %v3238
      %3287 = vmatprep.subr.mxu0 0.0
      %3288 = vmatpush1.msra.mxu0 %v3239
      %3289 = vmatprep.subr.mxu0 0.0
      %3290 = vmatpush1.msra.mxu0 %v3240
      %3291 = vmatprep.subr.mxu0 0.0
      %3292 = vmatpush1.msra.mxu0 %v3241
      %3293 = vmatprep.subr.mxu0 0.0
      %3294 = vmatpush1.msra.mxu0 %v3242
      %3295 = vmatprep.subr.mxu0 0.0
      %3296 = vmatpush1.msra.mxu0 %v3243
      %3297 = vmatprep.subr.mxu0 0.0
      %3298 = vmatpush1.msra.mxu0 %v3244
      %3299 = vmatprep.subr.mxu0 0.0
      %3300 = vmatpush1.msra.mxu0 0.0
      %3301 = vmatprep.subr.mxu0 0.0
      %3302 = vmatpush1.msra.mxu0 0.0
      %3303 = vmatprep.subr.mxu0 0.0
      %3304 = vmatpush1.msra.mxu0 0.0
      %3305 = vmatprep.subr.mxu0 0.0
      %3306 = vmatpush1.msra.mxu0 0.0
      %3307 = vmatprep.subr.mxu0 0.0
      %3308 = vmatpush1.msra.mxu0 0.0
      %3309 = vmatprep.subr.mxu0 0.0
      %3310 = vmatpush1.msra.mxu0 0.0
      %3311 = vmatprep.subr.mxu0 0.0
      %3312 = vmatpush1.msra.mxu0 0.0
      %3313 = vmatprep.subr.mxu0 0.0
      %3314 = vmatpush1.msra.mxu0 0.0
      %3315 = vmatprep.mubr.f32.mxu0 %v3246
      %3316 = vmatmul.mubr.f32.gmra.mrb[0].mxu0 %v3219
      %v3317 = vpop.f32.mrb[0].mxu0
      %v3318 = vadd.f32 0.0, %v3317
      %v3319 = vpop.f32.mrb[0].mxu0
      %3320 = vmatprep.mubr.f32.mxu0 %v3249
      %3321 = vmatmul.mubr.f32.gmra.mrb[0].mxu0 %v3220
      %v3322 = vpop.f32.mrb[0].mxu0
      %v3323 = vadd.f32 0.0, %v3322
      %v3324 = vpop.f32.mrb[0].mxu0
      %3325 = vdwg.mxu0
      %v3327 = vsel %vm1044, %v3019, 0
      %v3330 = vsel %vm1044, %v3024, 0
      %3332 = vmatprep.subr.mxu0 0.0
      %3333 = vmatpush1.msra.mxu0 %v3037
      %3334 = vmatprep.subr.mxu0 0.0
      %3335 = vmatpush1.msra.mxu0 %v3038
      %3336 = vmatprep.subr.mxu0 0.0
      %3337 = vmatpush1.msra.mxu0 %v3039
      %3338 = vmatprep.subr.mxu0 0.0
      %3339 = vmatpush1.msra.mxu0 %v3040
      %3340 = vmatprep.subr.mxu0 0.0
      %3341 = vmatpush1.msra.mxu0 %v3041
      %3342 = vmatprep.subr.mxu0 0.0
      %3343 = vmatpush1.msra.mxu0 %v3042
      %3344 = vmatprep.subr.mxu0 0.0
      %3345 = vmatpush1.msra.mxu0 %v3043
      %3346 = vmatprep.subr.mxu0 0.0
      %3347 = vmatpush1.msra.mxu0 %v3044
      %3348 = vmatprep.subr.mxu0 0.0
      %3349 = vmatpush1.msra.mxu0 %v3045
      %3350 = vmatprep.subr.mxu0 0.0
      %3351 = vmatpush1.msra.mxu0 %v3046
      %3352 = vmatprep.subr.mxu0 0.0
      %3353 = vmatpush1.msra.mxu0 %v3047
      %3354 = vmatprep.subr.mxu0 0.0
      %3355 = vmatpush1.msra.mxu0 %v3048
      %3356 = vmatprep.subr.mxu0 0.0
      %3357 = vmatpush1.msra.mxu0 %v3049
      %3358 = vmatprep.subr.mxu0 0.0
      %3359 = vmatpush1.msra.mxu0 %v3050
      %3360 = vmatprep.subr.mxu0 0.0
      %3361 = vmatpush1.msra.mxu0 %v3051
      %3362 = vmatprep.subr.mxu0 0.0
      %3363 = vmatpush1.msra.mxu0 %v3052
      %3364 = vmatprep.subr.mxu0 0.0
      %3365 = vmatpush1.msra.mxu0 %v3053
      %3366 = vmatprep.subr.mxu0 0.0
      %3367 = vmatpush1.msra.mxu0 %v3054
      %3368 = vmatprep.subr.mxu0 0.0
      %3369 = vmatpush1.msra.mxu0 %v3055
      %3370 = vmatprep.subr.mxu0 0.0
      %3371 = vmatpush1.msra.mxu0 %v3056
      %3372 = vmatprep.subr.mxu0 0.0
      %3373 = vmatpush1.msra.mxu0 %v3057
      %3374 = vmatprep.subr.mxu0 0.0
      %3375 = vmatpush1.msra.mxu0 %v3058
      %3376 = vmatprep.subr.mxu0 0.0
      %3377 = vmatpush1.msra.mxu0 %v3059
      %3378 = vmatprep.subr.mxu0 0.0
      %3379 = vmatpush1.msra.mxu0 %v3060
      %3380 = vmatprep.subr.mxu0 0.0
      %3381 = vmatpush1.msra.mxu0 0.0
      %3382 = vmatprep.subr.mxu0 0.0
      %3383 = vmatpush1.msra.mxu0 0.0
      %3384 = vmatprep.subr.mxu0 0.0
      %3385 = vmatpush1.msra.mxu0 0.0
      %3386 = vmatprep.subr.mxu0 0.0
      %3387 = vmatpush1.msra.mxu0 0.0
      %3388 = vmatprep.subr.mxu0 0.0
      %3389 = vmatpush1.msra.mxu0 0.0
      %3390 = vmatprep.subr.mxu0 0.0
      %3391 = vmatpush1.msra.mxu0 0.0
      %3392 = vmatprep.subr.mxu0 0.0
      %3393 = vmatpush1.msra.mxu0 0.0
      %3394 = vmatprep.subr.mxu0 0.0
      %3395 = vmatpush1.msra.mxu0 0.0
      %3396 = vmatprep.mubr.f32.mxu0 %v3327
      %3397 = vmatmul.mubr.f32.gmra.mrb[0].mxu0 %v3035
      %v3398 = vpop.f32.mrb[0].mxu0
      %v3399 = vadd.f32 %v3318, %v3398
      %v3400 = vpop.f32.mrb[0].mxu0
      %3401 = vmatprep.mubr.f32.mxu0 %v3330
      %3402 = vmatmul.mubr.f32.gmra.mrb[0].mxu0 %v3036
      %v3403 = vpop.f32.mrb[0].mxu0
      %v3404 = vadd.f32 %v3323, %v3403
      %v3405 = vpop.f32.mrb[0].mxu0
      %3406 = vdwg.mxu0
      %v3407 = vld [vmem:[%s25] sm:$0x1]
      %v3409 = vlaneseq
      %v3410 = vshrl.u32 %v3409, 7
      %v3411 = vsub.s32 0, %v3410
      %v3412 = vrot.slane %v3407, %v3411
      %v3414 = vadd.f32 %v3399, %v3412
      %v3415 = vadd.f32 %v3404, %v3412
      %3416 = vst [vmem:[%s846] sm:$0xff] %v3414
      %3417 = vst [vmem:[%s846 + $0x8] sm:$0xff] %v3415
      %v3418 = vsel %vm1044, %v1464, %v3214
      %v3419 = vsel %vm1044, %v1465, %v3216
      %3420 = vst [vmem:[%s851] sm:$0xff] %v3418
      %3421 = vst [vmem:[%s851 + $0x8] sm:$0xff] %v3419
      %p3422 = scmp.lt.s32.totalorder %s39, 1
      %s3423 = scalar_select %p3422, %s39, 1
      %s3424 = smul.addr %s3423, 2
      %s3425 = smul.addr %s3424, 8
      %s3426 = scalar_lea.vmem %s26, %s3425
      %p3427 = scmp.lt.s32.totalorder %s39, 1
      %s3428 = scalar_select %p3427, %s39, 1
      %s3429 = smul.addr %s3428, 2
      %s3430 = smul.addr %s3429, 8
      %s3431 = scalar_lea.vmem %s27, %s3430
      // Predicated region
      $region125: #{fastfc_forward.1} parent=123 // pred_check
        %p3432 = pneg %p613
      $region126: #{fastfc_forward.1} parent=123 // pred_check_branch
        %3434 = sbr.rel (%p3432) target = $region128
      $region127: #{fastfc_forward.1} parent=123 // pred_region
        _
      $region128: #{fastfc_forward.1} parent=123 // pred_fallthru
        _
      // Predicated region
      $region129: #{fastfc_forward.1} parent=123 // pred_check
        %p3435 = pneg %p639
      $region130: #{fastfc_forward.1} parent=123 // pred_check_branch
        %3437 = sbr.rel (%p3435) target = $region132
      $region131: #{fastfc_forward.1} parent=123 // pred_region
        _
      $region132: #{fastfc_forward.1} parent=123 // pred_fallthru
        _
    $region124: #{fastfc_forward.1} parent=5 // pred_fallthru
      _
    %p3438 = scmp.le.s32.totalorder 2, %s34
    // Predicated region
    $region133: #{fastfc_forward.1} parent=5 // pred_check
      %p3439 = pneg %p3438
    $region134: #{fastfc_forward.1} parent=5 // pred_check_branch
      %3441 = sbr.rel (%p3439) target = $region136
    $region135: #{fastfc_forward.1} parent=5 // pred_region
      %s3442 = ssub.s32 %s34, 2
      // Predicated region
      $region137: #{fastfc_forward.1} parent=135 // pred_check
        %p3443 = pneg %p619
      $region138: #{fastfc_forward.1} parent=135 // pred_check_branch
        %3445 = sbr.rel (%p3443) target = $region140
      $region139: #{fastfc_forward.1} parent=135 // pred_region
        %p3446 = scmp.lt.s32.totalorder %s40, 1
        %s3447 = scalar_select %p3446, %s40, 1
        %s3448 = smul.addr %s3447, 2
        %s3449 = smul.addr %s3448, 8
        %s3450 = scalar_lea.vmem %s26, %s3449
      $region140: #{fastfc_forward.1} parent=135 // pred_fallthru
        _
      // Predicated region
      $region141: #{fastfc_forward.1} parent=135 // pred_check
        %p3451 = pneg %p645
      $region142: #{fastfc_forward.1} parent=135 // pred_check_branch
        %3453 = sbr.rel (%p3451) target = $region144
      $region143: #{fastfc_forward.1} parent=135 // pred_region
        %p3454 = scmp.lt.s32.totalorder %s40, 1
        %s3455 = scalar_select %p3454, %s40, 1
        %s3456 = smul.addr %s3455, 2
        %s3457 = smul.addr %s3456, 8
        %s3458 = scalar_lea.vmem %s27, %s3457
      $region144: #{fastfc_forward.1} parent=135 // pred_fallthru
        _
    $region136: #{fastfc_forward.1} parent=5 // pred_fallthru
      _
  $region6: #{fastfc_forward.1} parent=0 // loop_footer
    %s38 = sadd.s32 1, %s34
  $region7: #{fastfc_forward.1} parent=0 // loop_footer_branch
    %33 = sbr.rel target = $region3
  $region8: #{fastfc_forward.1} parent=0 // loop_exit
    _

</llo_original>
